<compile_context>
chip_gen: v5e
topology: v5e:2x2
jax: 0.10.0
libtpu: 0.0.40
codegen_flags: <defaults>
</compile_context>

<pallas_src>
import functools

import jax
import jax.numpy as jnp
from jax import lax
from jax.experimental import pallas as pl
from jax.experimental.pallas import tpu as pltpu


_MM_DTYPE = jnp.bfloat16        # matmul-operand dtype (accumulation stays f32)


def _round_up(x, m):
    return ((x + m - 1) // m) * m


# ------------------------------ in-kernel math ----------------------------- #
def _conv_branch(x_ref, wpad, lout_t, xb_ref, taps_ref,
                 w1s_ref, b1_ref, w2_ref, b2_ref):
    """tanh(conv1x1(relu(conv3x3(x)))) on a lane-dense haloed tile.

    x_ref holds one (batch, H-tile) window of the zero-padded input flattened
    to (1, 1, C, (t_h+3)*(W+2)); the (ky, kx) tap of the 3x3 conv is the lane
    slice starting at ky*wpad + kx.  The nine taps are staged once (bf16) into
    taps_ref and consumed by a single stacked (C, 9C_pad) @ (9C_pad, lout_t)
    MXU matmul (K = 9C_pad, f32 accumulation).
    """
    c = b1_ref.shape[0]
    c_pad = taps_ref.shape[0] // 9

    # One bf16 cast of the haloed tile; the 9 overlapping taps re-read the
    # bf16 copy instead of re-casting the f32 slab nine times.
    xb_ref[...] = x_ref[0, 0, :, :].astype(_MM_DTYPE)
    for ky in range(3):
        for kx in range(3):
            k = ky * 3 + kx
            off = ky * wpad + kx                       # static lane offset
            taps_ref[k * c_pad:k * c_pad + c, :] = xb_ref[:, off:off + lout_t]

    # conv3x3 as one stacked matmul; bias folded into the ReLU pass.
    acc = jnp.dot(w1s_ref[...], taps_ref[...],
                  preferred_element_type=jnp.float32)  # (C, lout_t)
    h = jnp.maximum(acc + b1_ref[...], 0.0)            # ReLU
    y = jnp.dot(w2_ref[...], h.astype(_MM_DTYPE),
                preferred_element_type=jnp.float32) + b2_ref[...]
    return jnp.tanh(y)                                 # Tanh


def _maybe_zero_taps(taps_ref, c):
    # When C is padded up to the bf16 packing quantum, the pad rows of the
    # staging scratch are never written -> clear them (their weight columns
    # are zero, but uninitialized VMEM could hold NaNs).
    if taps_ref.shape[0] != 9 * c:
        taps_ref[...] = jnp.zeros(taps_ref.shape, taps_ref.dtype)


def _stage1_kernel(wpad, lout_t,
                   xe_ref, xo_ref,
                   pw1, pb1, pw2, pb2, uw1, ub1, uw2, ub2,
                   d_ref, s_ref,
                   xb_ref, taps_ref):
    """d = xo - predictor(xe),  s = xe + updater(xo)  (fused, one launch)."""
    _maybe_zero_taps(taps_ref, pb1.shape[0])
    ctr = wpad + 1                                     # centre tap offset
    xe_c = xe_ref[0, 0, :, ctr:ctr + lout_t]           # f32 bases
    xo_c = xo_ref[0, 0, :, ctr:ctr + lout_t]

    pred = _conv_branch(xe_ref, wpad, lout_t, xb_ref, taps_ref,
                        pw1, pb1, pw2, pb2)
    d_ref[0] = (xo_c - pred).astype(d_ref.dtype)

    upd = _conv_branch(xo_ref, wpad, lout_t, xb_ref, taps_ref,
                       uw1, ub1, uw2, ub2)
    s_ref[0] = (xe_c + upd).astype(s_ref.dtype)


def _stage23_kernel(wpad, lout_t,
                    se_ref, so_ref, de_ref, do_ref,
                    pw1, pb1, pw2, pb2, uw1, ub1, uw2, ub2,
                    out_ref,
                    xb_ref, taps_ref):
    """out = (so - P(se)) + (se + U(so)) + (do - P(de)) + (de + U(do))."""
    _maybe_zero_taps(taps_ref, pb1.shape[0])
    ctr = wpad + 1
    se_c = se_ref[0, 0, :, ctr:ctr + lout_t]
    so_c = so_ref[0, 0, :, ctr:ctr + lout_t]
    de_c = de_ref[0, 0, :, ctr:ctr + lout_t]
    do_c = do_ref[0, 0, :, ctr:ctr + lout_t]

    acc = so_c - _conv_branch(se_ref, wpad, lout_t, xb_ref, taps_ref,
                              pw1, pb1, pw2, pb2)                      # LL
    acc = acc + (se_c + _conv_branch(so_ref, wpad, lout_t, xb_ref, taps_ref,
                                     uw1, ub1, uw2, ub2))              # + LH
    acc = acc + (do_c - _conv_branch(de_ref, wpad, lout_t, xb_ref, taps_ref,
                                     pw1, pb1, pw2, pb2))              # + HL
    acc = acc + (de_c + _conv_branch(do_ref, wpad, lout_t, xb_ref, taps_ref,
                                     uw1, ub1, uw2, ub2))              # + HH
    out_ref[0] = acc.astype(out_ref.dtype)


# --------------------------------- glue ------------------------------------ #
def _prep_params(params):
    """PyTorch conv params -> kernel layout.

    w1s: (O, 9*C_pad) bf16 stacked 3x3 weight (column block k = ky*3+kx holds
         tap k; pad columns are zero so uninitialized scratch pad rows are
         inert), b1/b2: (O, 1) f32, w2: (O, C) bf16."""
    w1, b1, w2, b2 = params      # (O,I,3,3), (O,), (O,I,1,1), (O,)
    o, i = w1.shape[0], w1.shape[1]
    c_pad = _round_up(i, 16)     # bf16 sublane packing quantum
    w1t = jnp.transpose(w1, (0, 2, 3, 1))                      # (O, 3, 3, I)
    w1t = jnp.pad(w1t, ((0, 0), (0, 0), (0, 0), (0, c_pad - i)))
    w1s = w1t.reshape(o, 9 * c_pad)
    return (w1s.astype(_MM_DTYPE),
            b1.reshape(o, 1).astype(jnp.float32),
            w2[:, :, 0, 0].astype(_MM_DTYPE),
            b2.reshape(o, 1).astype(jnp.float32))


def _pad_flat(x):
    """(N,C,Hc,Wc) -> (N, C, (Hc+3)*(Wc+2)): 1-halo zero pad (plus one extra
    bottom row so every tap slice stays in bounds), spatial dims flattened
    onto the lane axis."""
    n, c, hc, wc = x.shape
    xp = jnp.pad(x, ((0, 0), (0, 0), (1, 2), (1, 1)))
    return xp.reshape(n, c, (hc + 3) * (wc + 2))


def _window(flat, n_t, t_h, wpad):
    """(N, C, (hc+3)*wpad) -> (N, n_t, C, (t_h+3)*wpad) overlapping haloed
    H-tiles (identity reshape when n_t == 1)."""
    n, c, lp = flat.shape
    if n_t == 1:
        return flat.reshape(n, 1, c, lp)
    l_tile = (t_h + 3) * wpad
    parts = [flat[:, None, :, t * t_h * wpad: t * t_h * wpad + l_tile]
             for t in range(n_t)]
    return jnp.concatenate(parts, axis=1)


def _vmem_capacity_bytes():
    try:
        cap = getattr(pltpu.get_tpu_info(), "vmem_capacity_bytes", None)
        if cap:
            return int(cap)
    except Exception:
        pass
    return 64 * 1024 * 1024     # conservative fallback (v7x per-TC VMEM)


def _vmem_need_bytes(c, t_h, wpad, n_in, n_out):
    c_pad = _round_up(c, 16)
    l_tile = (t_h + 3) * wpad
    lout_t = t_h * wpad
    need = n_in * c * l_tile * 4 * 2                 # f32 input windows, 2x buffered
    need += n_out * c * lout_t * 4 * 2               # f32 output tiles, 2x buffered
    need += c * l_tile * 2 + 9 * c_pad * lout_t * 2  # bf16 slab + taps scratch
    need += 2 * (9 * c_pad * c * 2 + c * c * 2 + 2 * c * 4) * 2   # weights
    need += 6 * c * lout_t * 4                       # elementwise temporaries (rough)
    return need


def _choose_tiles(batch, hc, wpad, c, n_in, n_out, budget):
    """Coarsest H split whose output tile keeps the lane dim Mosaic-tileable
    (multiple of 128, or the whole slab) and fits the VMEM budget."""
    cands = [1] + [n for n in range(2, hc + 1)
                   if hc % n == 0 and ((hc // n) * wpad) % 128 == 0]
    n_t = None
    for cand in cands:                               # coarsest first
        if _vmem_need_bytes(c, hc // cand, wpad, n_in, n_out) <= budget:
            n_t = cand
            break
    if n_t is None:
        n_t = cands[-1]                              # best effort: finest split
    # v7x megacore: expose >= 2 parallel grid iterations when possible.
    if batch * n_t < 2:
        for cand in cands:
            if cand > 1 and _vmem_need_bytes(c, hc // cand, wpad,
                                             n_in, n_out) <= budget:
                n_t = cand
                break
    return n_t, hc // n_t


def _call_lift(kernel_fn, flat_inputs, hc, wc, pred_mm, upd_mm, num_outputs):
    """Shared pallas_call wrapper for the two fused lifting kernels."""
    n, c, lp = flat_inputs[0].shape
    wpad = wc + 2
    lout = hc * wpad
    assert lp == (hc + 3) * wpad
    n_in = len(flat_inputs)
    c_pad = pred_mm[0].shape[1] // 9

    cap = _vmem_capacity_bytes()
    budget = int(cap * 0.7)
    n_t, t_h = _choose_tiles(n, hc, wpad, c, n_in, num_outputs, budget)
    lout_t = t_h * wpad
    l_tile = (t_h + 3) * wpad

    wins = [_window(f, n_t, t_h, wpad) for f in flat_inputs]

    in_win_spec = pl.BlockSpec((1, 1, c, l_tile), lambda i, t: (i, t, 0, 0))
    w1_spec = pl.BlockSpec((c, 9 * c_pad), lambda i, t: (0, 0))
    mat_spec = pl.BlockSpec((c, c), lambda i, t: (0, 0))
    vec_spec = pl.BlockSpec((c, 1), lambda i, t: (0, 0))
    out_spec = pl.BlockSpec((1, c, lout_t), lambda i, t: (i, 0, t))

    in_specs = ([in_win_spec] * n_in
                + [w1_spec, vec_spec, mat_spec, vec_spec] * 2)
    out_shape = tuple(jax.ShapeDtypeStruct((n, c, lout), flat_inputs[0].dtype)
                      for _ in range(num_outputs))

    need = _vmem_need_bytes(c, t_h, wpad, n_in, num_outputs)
    vmem_limit = int(min(cap * 0.9, max(need * 3 // 2, 32 * 1024 * 1024)))

    outs = pl.pallas_call(
        functools.partial(kernel_fn, wpad, lout_t),
        out_shape=out_shape,
        grid_spec=pltpu.PrefetchScalarGridSpec(
            num_scalar_prefetch=0,
            grid=(n, n_t),
            in_specs=in_specs,
            out_specs=[out_spec] * num_outputs,
            scratch_shapes=[pltpu.VMEM((c, l_tile), _MM_DTYPE),
                            pltpu.VMEM((9 * c_pad, lout_t), _MM_DTYPE)]),
        compiler_params=pltpu.CompilerParams(
            dimension_semantics=("parallel", "parallel"),
            vmem_limit_bytes=vmem_limit),
    )(*wins, *pred_mm, *upd_mm)

    if not isinstance(outs, (list, tuple)):
        outs = (outs,)
    return tuple(outs)


@jax.jit
def lift_down_pool(x, pred_params, upd_params):
    """Forward pass of LiftDownPool.  x is NCHW (PyTorch convention)."""
    pred_mm = _prep_params(pred_params)
    upd_mm = _prep_params(upd_params)

    n, c, h, w = x.shape
    wc = w // 2
    wpad = wc + 2

    xe = x[:, :, :, 0::2]
    xo = x[:, :, :, 1::2]

    # Stage 1 (fused predictor + updater): d = xo - P(xe), s = xe + U(xo)
    d_flat, s_flat = _call_lift(_stage1_kernel,
                                (_pad_flat(xe), _pad_flat(xo)),
                                h, wc, pred_mm, upd_mm, 2)

    d4 = d_flat.reshape(n, c, h, wpad)
    s4 = s_flat.reshape(n, c, h, wpad)
    d = d4[:, :, :, :wc]
    s = s4[:, :, :, :wc]

    # Stage-2/3 inputs: even/odd row selection + re-padding fused into a
    # single XLA slice+pad per tensor, reading the flat stage-1 outputs
    # directly (no unpad -> strided split -> re-pad HBM round trips).
    def even_odd_pad(t4, row0):
        sel = t4[:, :, row0::2, :wc]
        return jnp.pad(sel, ((0, 0), (0, 0), (1, 2), (1, 1))).reshape(n, c, -1)

    se_f = even_odd_pad(s4, 0)
    so_f = even_odd_pad(s4, 1)
    de_f = even_odd_pad(d4, 0)
    do_f = even_odd_pad(d4, 1)

    # Stages 2+3 and the final four-way sum fused into one launch.
    (out_flat,) = _call_lift(_stage23_kernel, (se_f, so_f, de_f, do_f),
                             h // 2, wc, pred_mm, upd_mm, 1)
    out = out_flat.reshape(n, c, h // 2, wpad)[:, :, :, :wc]
    return out, d, s, xe, xo


# ----------------------- pure-JAX (XLA) reference -------------------------- #
def _ref_net(x, params):
    w1, b1, w2, b2 = params
    dn = ("NCHW", "OIHW", "NCHW")
    h = lax.conv_general_dilated(x, w1, (1, 1), ((1, 1), (1, 1)),
                                 dimension_numbers=dn)
    h = jnp.maximum(h + b1[None, :, None, None], 0.0)
    y = lax.conv_general_dilated(h, w2, (1, 1), "VALID",
                                 dimension_numbers=dn)
    return jnp.tanh(y + b2[None, :, None, None])


def _ref_forward(x, pred, upd):
    xe = x[:, :, :, ::2]
    xo = x[:, :, :, 1::2]
    d = xo - _ref_net(xe, pred)
    s = xe + _ref_net(xo, upd)
    se = s[:, :, ::2, :]
    so = s[:, :, 1::2, :]
    LL = so - _ref_net(se, pred)
    LH = se + _ref_net(so, upd)
    de = d[:, :, ::2, :]
    do = d[:, :, 1::2, :]
    HL = do - _ref_net(de, pred)
    HH = de + _ref_net(do, upd)
    return LL + LH + HL + HH, d, s, xe, xo


# ---------------------------------- main ----------------------------------- #
if __name__ == "__main__":
    key = jax.random.PRNGKey(0)
    n, c, h, w = 2, 4, 16, 16
    kx_, kp, ku = jax.random.split(key, 3)
    x = jax.random.normal(kx_, (n, c, h, w), jnp.float32)

    def init_branch(k):
        k1, k2, k3, k4 = jax.random.split(k, 4)
        b3 = 1.0 / (c * 9) ** 0.5   # fan_in bound for 3x3 conv
        bp = 1.0 / c ** 0.5         # fan_in bound for 1x1 conv
        return (jax.random.uniform(k1, (c, c, 3, 3), jnp.float32, -b3, b3),
                jax.random.uniform(k2, (c,), jnp.float32, -b3, b3),
                jax.random.uniform(k3, (c, c, 1, 1), jnp.float32, -bp, bp),
                jax.random.uniform(k4, (c,), jnp.float32, -bp, bp))

    pred_params = init_branch(kp)
    upd_params = init_branch(ku)

    outs = lift_down_pool(x, pred_params, upd_params)
    jax.block_until_ready(outs)

    refs = _ref_forward(x, pred_params, upd_params)
    # Tolerance accounts for the (intentional) bf16 MXU operands in the kernel
    # vs. the f32 XLA reference convolutions.
    for name, a, b in zip(("out", "d", "s", "xe", "xo"), outs, refs):
        err = float(jnp.max(jnp.abs(a - b)))
        if err > 5e-2:
            raise AssertionError(f"{name}: max abs err {err}")

    print("KERNEL_OK")
</pallas_src>

<mosaic_0001>
module attributes {stable_mosaic.version = 11 : i64} {
  func.func @_stage1_kernel(%arg0: i32, %arg1: i32, %arg2: memref<1x1x4x190xf32, #tpu.memory_space<vmem>>, %arg3: memref<1x1x4x190xf32, #tpu.memory_space<vmem>>, %arg4: memref<4x144xbf16, #tpu.memory_space<vmem>>, %arg5: memref<4x1xf32, #tpu.memory_space<vmem>>, %arg6: memref<4x4xbf16, #tpu.memory_space<vmem>>, %arg7: memref<4x1xf32, #tpu.memory_space<vmem>>, %arg8: memref<4x144xbf16, #tpu.memory_space<vmem>>, %arg9: memref<4x1xf32, #tpu.memory_space<vmem>>, %arg10: memref<4x4xbf16, #tpu.memory_space<vmem>>, %arg11: memref<4x1xf32, #tpu.memory_space<vmem>>, %arg12: memref<1x4x160xf32, #tpu.memory_space<vmem>>, %arg13: memref<1x4x160xf32, #tpu.memory_space<vmem>>, %arg14: memref<4x190xbf16, #tpu.memory_space<vmem>>, %arg15: memref<144x160xbf16, #tpu.memory_space<vmem>>) attributes {dimension_semantics = [#tpu.dimension_semantics<parallel>, #tpu.dimension_semantics<parallel>], iteration_bounds = array<i64: 2, 1>, scalar_prefetch = 0 : i64, scratch_operands = 2 : i64, tpu.core_type = #tpu.core_type<tc>, window_params = [{transform_indices = @transform_0, window_bounds = array<i64: 1, 1, 4, 190>}, {transform_indices = @transform_1, window_bounds = array<i64: 1, 1, 4, 190>}, {pipeline_mode = #tpu.pipeline_mode<synchronous>, transform_indices = @transform_2, window_bounds = array<i64: 4, 144>}, {pipeline_mode = #tpu.pipeline_mode<synchronous>, transform_indices = @transform_3, window_bounds = array<i64: 4, 1>}, {pipeline_mode = #tpu.pipeline_mode<synchronous>, transform_indices = @transform_4, window_bounds = array<i64: 4, 4>}, {pipeline_mode = #tpu.pipeline_mode<synchronous>, transform_indices = @transform_5, window_bounds = array<i64: 4, 1>}, {pipeline_mode = #tpu.pipeline_mode<synchronous>, transform_indices = @transform_6, window_bounds = array<i64: 4, 144>}, {pipeline_mode = #tpu.pipeline_mode<synchronous>, transform_indices = @transform_7, window_bounds = array<i64: 4, 1>}, {pipeline_mode = #tpu.pipeline_mode<synchronous>, transform_indices = @transform_8, window_bounds = array<i64: 4, 4>}, {pipeline_mode = #tpu.pipeline_mode<synchronous>, transform_indices = @transform_9, window_bounds = array<i64: 4, 1>}, {transform_indices = @transform_10, window_bounds = array<i64: 1, 4, 160>}, {transform_indices = @transform_11, window_bounds = array<i64: 1, 4, 160>}]} {
    %cst = arith.constant 0.000000e+00 : bf16
    %0 = vector.broadcast %cst : bf16 to vector<144x160xbf16>
    %c0 = arith.constant 0 : index
    %c0_0 = arith.constant 0 : index
    %1 = vector.load %arg15[%c0, %c0_0] : memref<144x160xbf16, #tpu.memory_space<vmem>>, vector<144x160xbf16>
    tpu.vector_store %arg15[%c0, %c0_0], %0 {strides = array<i32>} : memref<144x160xbf16, #tpu.memory_space<vmem>>, vector<144x160xbf16>,
    %c0_1 = arith.constant 0 : index
    %c0_2 = arith.constant 0 : index
    %c0_3 = arith.constant 0 : index
    %c11 = arith.constant 11 : index
    %2 = vector.load %arg2[%c0_1, %c0_2, %c0_3, %c11] : memref<1x1x4x190xf32, #tpu.memory_space<vmem>>, vector<1x1x4x160xf32>
    %3 = vector.shape_cast %2 : vector<1x1x4x160xf32> to vector<4x160xf32>
    %c0_4 = arith.constant 0 : index
    %c0_5 = arith.constant 0 : index
    %c0_6 = arith.constant 0 : index
    %c11_7 = arith.constant 11 : index
    %4 = vector.load %arg3[%c0_4, %c0_5, %c0_6, %c11_7] : memref<1x1x4x190xf32, #tpu.memory_space<vmem>>, vector<1x1x4x160xf32>
    %5 = vector.shape_cast %4 : vector<1x1x4x160xf32> to vector<4x160xf32>
    %c0_8 = arith.constant 0 : index
    %c0_9 = arith.constant 0 : index
    %c0_10 = arith.constant 0 : index
    %c0_11 = arith.constant 0 : index
    %6 = vector.load %arg2[%c0_8, %c0_9, %c0_10, %c0_11] : memref<1x1x4x190xf32, #tpu.memory_space<vmem>>, vector<1x1x4x190xf32>
    %7 = vector.shape_cast %6 : vector<1x1x4x190xf32> to vector<4x190xf32>
    %8 = arith.truncf %7 : vector<4x190xf32> to vector<4x190xbf16>
    %c0_12 = arith.constant 0 : index
    %c0_13 = arith.constant 0 : index
    %9 = vector.load %arg14[%c0_12, %c0_13] : memref<4x190xbf16, #tpu.memory_space<vmem>>, vector<4x190xbf16>
    tpu.vector_store %arg14[%c0_12, %c0_13], %8 {strides = array<i32>} : memref<4x190xbf16, #tpu.memory_space<vmem>>, vector<4x190xbf16>,
    %c0_14 = arith.constant 0 : index
    %c0_15 = arith.constant 0 : index
    %10 = vector.load %arg14[%c0_14, %c0_15] : memref<4x190xbf16, #tpu.memory_space<vmem>>, vector<4x160xbf16>
    %c0_16 = arith.constant 0 : index
    %c0_17 = arith.constant 0 : index
    %11 = vector.load %arg15[%c0_16, %c0_17] : memref<144x160xbf16, #tpu.memory_space<vmem>>, vector<4x160xbf16>
    tpu.vector_store %arg15[%c0_16, %c0_17], %10 {strides = array<i32>} : memref<144x160xbf16, #tpu.memory_space<vmem>>, vector<4x160xbf16>,
    %c0_18 = arith.constant 0 : index
    %c1 = arith.constant 1 : index
    %12 = vector.load %arg14[%c0_18, %c1] : memref<4x190xbf16, #tpu.memory_space<vmem>>, vector<4x160xbf16>
    %c16 = arith.constant 16 : index
    %c0_19 = arith.constant 0 : index
    %13 = vector.load %arg15[%c16, %c0_19] : memref<144x160xbf16, #tpu.memory_space<vmem>>, vector<4x160xbf16>
    tpu.vector_store %arg15[%c16, %c0_19], %12 {strides = array<i32>} : memref<144x160xbf16, #tpu.memory_space<vmem>>, vector<4x160xbf16>,
    %c0_20 = arith.constant 0 : index
    %c2 = arith.constant 2 : index
    %14 = vector.load %arg14[%c0_20, %c2] : memref<4x190xbf16, #tpu.memory_space<vmem>>, vector<4x160xbf16>
    %c32 = arith.constant 32 : index
    %c0_21 = arith.constant 0 : index
    %15 = vector.load %arg15[%c32, %c0_21] : memref<144x160xbf16, #tpu.memory_space<vmem>>, vector<4x160xbf16>
    tpu.vector_store %arg15[%c32, %c0_21], %14 {strides = array<i32>} : memref<144x160xbf16, #tpu.memory_space<vmem>>, vector<4x160xbf16>,
    %c0_22 = arith.constant 0 : index
    %c10 = arith.constant 10 : index
    %16 = vector.load %arg14[%c0_22, %c10] : memref<4x190xbf16, #tpu.memory_space<vmem>>, vector<4x160xbf16>
    %c48 = arith.constant 48 : index
    %c0_23 = arith.constant 0 : index
    %17 = vector.load %arg15[%c48, %c0_23] : memref<144x160xbf16, #tpu.memory_space<vmem>>, vector<4x160xbf16>
    tpu.vector_store %arg15[%c48, %c0_23], %16 {strides = array<i32>} : memref<144x160xbf16, #tpu.memory_space<vmem>>, vector<4x160xbf16>,
    %c0_24 = arith.constant 0 : index
    %c11_25 = arith.constant 11 : index
    %18 = vector.load %arg14[%c0_24, %c11_25] : memref<4x190xbf16, #tpu.memory_space<vmem>>, vector<4x160xbf16>
    %c64 = arith.constant 64 : index
    %c0_26 = arith.constant 0 : index
    %19 = vector.load %arg15[%c64, %c0_26] : memref<144x160xbf16, #tpu.memory_space<vmem>>, vector<4x160xbf16>
    tpu.vector_store %arg15[%c64, %c0_26], %18 {strides = array<i32>} : memref<144x160xbf16, #tpu.memory_space<vmem>>, vector<4x160xbf16>,
    %c0_27 = arith.constant 0 : index
    %c12 = arith.constant 12 : index
    %20 = vector.load %arg14[%c0_27, %c12] : memref<4x190xbf16, #tpu.memory_space<vmem>>, vector<4x160xbf16>
    %c80 = arith.constant 80 : index
    %c0_28 = arith.constant 0 : index
    %21 = vector.load %arg15[%c80, %c0_28] : memref<144x160xbf16, #tpu.memory_space<vmem>>, vector<4x160xbf16>
    tpu.vector_store %arg15[%c80, %c0_28], %20 {strides = array<i32>} : memref<144x160xbf16, #tpu.memory_space<vmem>>, vector<4x160xbf16>,
    %c0_29 = arith.constant 0 : index
    %c20 = arith.constant 20 : index
    %22 = vector.load %arg14[%c0_29, %c20] : memref<4x190xbf16, #tpu.memory_space<vmem>>, vector<4x160xbf16>
    %c96 = arith.constant 96 : index
    %c0_30 = arith.constant 0 : index
    %23 = vector.load %arg15[%c96, %c0_30] : memref<144x160xbf16, #tpu.memory_space<vmem>>, vector<4x160xbf16>
    tpu.vector_store %arg15[%c96, %c0_30], %22 {strides = array<i32>} : memref<144x160xbf16, #tpu.memory_space<vmem>>, vector<4x160xbf16>,
    %c0_31 = arith.constant 0 : index
    %c21 = arith.constant 21 : index
    %24 = vector.load %arg14[%c0_31, %c21] : memref<4x190xbf16, #tpu.memory_space<vmem>>, vector<4x160xbf16>
    %c112 = arith.constant 112 : index
    %c0_32 = arith.constant 0 : index
    %25 = vector.load %arg15[%c112, %c0_32] : memref<144x160xbf16, #tpu.memory_space<vmem>>, vector<4x160xbf16>
    tpu.vector_store %arg15[%c112, %c0_32], %24 {strides = array<i32>} : memref<144x160xbf16, #tpu.memory_space<vmem>>, vector<4x160xbf16>,
    %c0_33 = arith.constant 0 : index
    %c22 = arith.constant 22 : index
    %26 = vector.load %arg14[%c0_33, %c22] : memref<4x190xbf16, #tpu.memory_space<vmem>>, vector<4x160xbf16>
    %c128 = arith.constant 128 : index
    %c0_34 = arith.constant 0 : index
    %27 = vector.load %arg15[%c128, %c0_34] : memref<144x160xbf16, #tpu.memory_space<vmem>>, vector<4x160xbf16>
    tpu.vector_store %arg15[%c128, %c0_34], %26 {strides = array<i32>} : memref<144x160xbf16, #tpu.memory_space<vmem>>, vector<4x160xbf16>,
    %c0_35 = arith.constant 0 : index
    %c0_36 = arith.constant 0 : index
    %28 = vector.load %arg4[%c0_35, %c0_36] : memref<4x144xbf16, #tpu.memory_space<vmem>>, vector<4x144xbf16>
    %c0_37 = arith.constant 0 : index
    %c0_38 = arith.constant 0 : index
    %29 = vector.load %arg15[%c0_37, %c0_38] : memref<144x160xbf16, #tpu.memory_space<vmem>>, vector<144x160xbf16>
    %cst_39 = arith.constant dense<0.000000e+00> : vector<4x160xf32>
    %30 = tpu.matmul %28, %29, %cst_39 {dimension_numbers = #tpu.dot_dimension_numbers<[1], [0], [0], [1], [0, 0, 1, 1], [], []>} : vector<4x144xbf16>, vector<144x160xbf16>, vector<4x160xf32> -> vector<4x160xf32>
    %c0_40 = arith.constant 0 : index
    %c0_41 = arith.constant 0 : index
    %31 = vector.load %arg5[%c0_40, %c0_41] : memref<4x1xf32, #tpu.memory_space<vmem>>, vector<4x1xf32>
    %32 = vector.broadcast %31 : vector<4x1xf32> to vector<4x160xf32>
    %33 = arith.addf %30, %32 : vector<4x160xf32>
    %cst_42 = arith.constant 0.000000e+00 : f32
    %34 = vector.broadcast %cst_42 : f32 to vector<4x160xf32>
    %35 = arith.maximumf %33, %34 : vector<4x160xf32>
    %c0_43 = arith.constant 0 : index
    %c0_44 = arith.constant 0 : index
    %36 = vector.load %arg6[%c0_43, %c0_44] : memref<4x4xbf16, #tpu.memory_space<vmem>>, vector<4x4xbf16>
    %37 = arith.truncf %35 : vector<4x160xf32> to vector<4x160xbf16>
    %cst_45 = arith.constant dense<0.000000e+00> : vector<4x160xf32>
    %38 = tpu.matmul %36, %37, %cst_45 {dimension_numbers = #tpu.dot_dimension_numbers<[1], [0], [0], [1], [0, 0, 1, 1], [], []>} : vector<4x4xbf16>, vector<4x160xbf16>, vector<4x160xf32> -> vector<4x160xf32>
    %c0_46 = arith.constant 0 : index
    %c0_47 = arith.constant 0 : index
    %39 = vector.load %arg7[%c0_46, %c0_47] : memref<4x1xf32, #tpu.memory_space<vmem>>, vector<4x1xf32>
    %40 = vector.broadcast %39 : vector<4x1xf32> to vector<4x160xf32>
    %41 = arith.addf %38, %40 : vector<4x160xf32>
    %42 = math.tanh %41 : vector<4x160xf32>
    %43 = arith.subf %5, %42 : vector<4x160xf32>
    %c0_48 = arith.constant 0 : index
    %c0_49 = arith.constant 0 : index
    %c0_50 = arith.constant 0 : index
    %44 = vector.load %arg12[%c0_48, %c0_49, %c0_50] : memref<1x4x160xf32, #tpu.memory_space<vmem>>, vector<1x4x160xf32>
    %45 = vector.shape_cast %44 : vector<1x4x160xf32> to vector<4x160xf32>
    %46 = vector.shape_cast %43 : vector<4x160xf32> to vector<1x4x160xf32>
    tpu.vector_store %arg12[%c0_48, %c0_49, %c0_50], %46 {strides = array<i32>} : memref<1x4x160xf32, #tpu.memory_space<vmem>>, vector<1x4x160xf32>,
    %c0_51 = arith.constant 0 : index
    %c0_52 = arith.constant 0 : index
    %c0_53 = arith.constant 0 : index
    %c0_54 = arith.constant 0 : index
    %47 = vector.load %arg3[%c0_51, %c0_52, %c0_53, %c0_54] : memref<1x1x4x190xf32, #tpu.memory_space<vmem>>, vector<1x1x4x190xf32>
    %48 = vector.shape_cast %47 : vector<1x1x4x190xf32> to vector<4x190xf32>
    %49 = arith.truncf %48 : vector<4x190xf32> to vector<4x190xbf16>
    %c0_55 = arith.constant 0 : index
    %c0_56 = arith.constant 0 : index
    %50 = vector.load %arg14[%c0_55, %c0_56] : memref<4x190xbf16, #tpu.memory_space<vmem>>, vector<4x190xbf16>
    tpu.vector_store %arg14[%c0_55, %c0_56], %49 {strides = array<i32>} : memref<4x190xbf16, #tpu.memory_space<vmem>>, vector<4x190xbf16>,
    %c0_57 = arith.constant 0 : index
    %c0_58 = arith.constant 0 : index
    %51 = vector.load %arg14[%c0_57, %c0_58] : memref<4x190xbf16, #tpu.memory_space<vmem>>, vector<4x160xbf16>
    %c0_59 = arith.constant 0 : index
    %c0_60 = arith.constant 0 : index
    %52 = vector.load %arg15[%c0_59, %c0_60] : memref<144x160xbf16, #tpu.memory_space<vmem>>, vector<4x160xbf16>
    tpu.vector_store %arg15[%c0_59, %c0_60], %51 {strides = array<i32>} : memref<144x160xbf16, #tpu.memory_space<vmem>>, vector<4x160xbf16>,
    %c0_61 = arith.constant 0 : index
    %c1_62 = arith.constant 1 : index
    %53 = vector.load %arg14[%c0_61, %c1_62] : memref<4x190xbf16, #tpu.memory_space<vmem>>, vector<4x160xbf16>
    %c16_63 = arith.constant 16 : index
    %c0_64 = arith.constant 0 : index
    %54 = vector.load %arg15[%c16_63, %c0_64] : memref<144x160xbf16, #tpu.memory_space<vmem>>, vector<4x160xbf16>
    tpu.vector_store %arg15[%c16_63, %c0_64], %53 {strides = array<i32>} : memref<144x160xbf16, #tpu.memory_space<vmem>>, vector<4x160xbf16>,
    %c0_65 = arith.constant 0 : index
    %c2_66 = arith.constant 2 : index
    %55 = vector.load %arg14[%c0_65, %c2_66] : memref<4x190xbf16, #tpu.memory_space<vmem>>, vector<4x160xbf16>
    %c32_67 = arith.constant 32 : index
    %c0_68 = arith.constant 0 : index
    %56 = vector.load %arg15[%c32_67, %c0_68] : memref<144x160xbf16, #tpu.memory_space<vmem>>, vector<4x160xbf16>
    tpu.vector_store %arg15[%c32_67, %c0_68], %55 {strides = array<i32>} : memref<144x160xbf16, #tpu.memory_space<vmem>>, vector<4x160xbf16>,
    %c0_69 = arith.constant 0 : index
    %c10_70 = arith.constant 10 : index
    %57 = vector.load %arg14[%c0_69, %c10_70] : memref<4x190xbf16, #tpu.memory_space<vmem>>, vector<4x160xbf16>
    %c48_71 = arith.constant 48 : index
    %c0_72 = arith.constant 0 : index
    %58 = vector.load %arg15[%c48_71, %c0_72] : memref<144x160xbf16, #tpu.memory_space<vmem>>, vector<4x160xbf16>
    tpu.vector_store %arg15[%c48_71, %c0_72], %57 {strides = array<i32>} : memref<144x160xbf16, #tpu.memory_space<vmem>>, vector<4x160xbf16>,
    %c0_73 = arith.constant 0 : index
    %c11_74 = arith.constant 11 : index
    %59 = vector.load %arg14[%c0_73, %c11_74] : memref<4x190xbf16, #tpu.memory_space<vmem>>, vector<4x160xbf16>
    %c64_75 = arith.constant 64 : index
    %c0_76 = arith.constant 0 : index
    %60 = vector.load %arg15[%c64_75, %c0_76] : memref<144x160xbf16, #tpu.memory_space<vmem>>, vector<4x160xbf16>
    tpu.vector_store %arg15[%c64_75, %c0_76], %59 {strides = array<i32>} : memref<144x160xbf16, #tpu.memory_space<vmem>>, vector<4x160xbf16>,
    %c0_77 = arith.constant 0 : index
    %c12_78 = arith.constant 12 : index
    %61 = vector.load %arg14[%c0_77, %c12_78] : memref<4x190xbf16, #tpu.memory_space<vmem>>, vector<4x160xbf16>
    %c80_79 = arith.constant 80 : index
    %c0_80 = arith.constant 0 : index
    %62 = vector.load %arg15[%c80_79, %c0_80] : memref<144x160xbf16, #tpu.memory_space<vmem>>, vector<4x160xbf16>
    tpu.vector_store %arg15[%c80_79, %c0_80], %61 {strides = array<i32>} : memref<144x160xbf16, #tpu.memory_space<vmem>>, vector<4x160xbf16>,
    %c0_81 = arith.constant 0 : index
    %c20_82 = arith.constant 20 : index
    %63 = vector.load %arg14[%c0_81, %c20_82] : memref<4x190xbf16, #tpu.memory_space<vmem>>, vector<4x160xbf16>
    %c96_83 = arith.constant 96 : index
    %c0_84 = arith.constant 0 : index
    %64 = vector.load %arg15[%c96_83, %c0_84] : memref<144x160xbf16, #tpu.memory_space<vmem>>, vector<4x160xbf16>
    tpu.vector_store %arg15[%c96_83, %c0_84], %63 {strides = array<i32>} : memref<144x160xbf16, #tpu.memory_space<vmem>>, vector<4x160xbf16>,
    %c0_85 = arith.constant 0 : index
    %c21_86 = arith.constant 21 : index
    %65 = vector.load %arg14[%c0_85, %c21_86] : memref<4x190xbf16, #tpu.memory_space<vmem>>, vector<4x160xbf16>
    %c112_87 = arith.constant 112 : index
    %c0_88 = arith.constant 0 : index
    %66 = vector.load %arg15[%c112_87, %c0_88] : memref<144x160xbf16, #tpu.memory_space<vmem>>, vector<4x160xbf16>
    tpu.vector_store %arg15[%c112_87, %c0_88], %65 {strides = array<i32>} : memref<144x160xbf16, #tpu.memory_space<vmem>>, vector<4x160xbf16>,
    %c0_89 = arith.constant 0 : index
    %c22_90 = arith.constant 22 : index
    %67 = vector.load %arg14[%c0_89, %c22_90] : memref<4x190xbf16, #tpu.memory_space<vmem>>, vector<4x160xbf16>
    %c128_91 = arith.constant 128 : index
    %c0_92 = arith.constant 0 : index
    %68 = vector.load %arg15[%c128_91, %c0_92] : memref<144x160xbf16, #tpu.memory_space<vmem>>, vector<4x160xbf16>
    tpu.vector_store %arg15[%c128_91, %c0_92], %67 {strides = array<i32>} : memref<144x160xbf16, #tpu.memory_space<vmem>>, vector<4x160xbf16>,
    %c0_93 = arith.constant 0 : index
    %c0_94 = arith.constant 0 : index
    %69 = vector.load %arg8[%c0_93, %c0_94] : memref<4x144xbf16, #tpu.memory_space<vmem>>, vector<4x144xbf16>
    %c0_95 = arith.constant 0 : index
    %c0_96 = arith.constant 0 : index
    %70 = vector.load %arg15[%c0_95, %c0_96] : memref<144x160xbf16, #tpu.memory_space<vmem>>, vector<144x160xbf16>
    %cst_97 = arith.constant dense<0.000000e+00> : vector<4x160xf32>
    %71 = tpu.matmul %69, %70, %cst_97 {dimension_numbers = #tpu.dot_dimension_numbers<[1], [0], [0], [1], [0, 0, 1, 1], [], []>} : vector<4x144xbf16>, vector<144x160xbf16>, vector<4x160xf32> -> vector<4x160xf32>
    %c0_98 = arith.constant 0 : index
    %c0_99 = arith.constant 0 : index
    %72 = vector.load %arg9[%c0_98, %c0_99] : memref<4x1xf32, #tpu.memory_space<vmem>>, vector<4x1xf32>
    %73 = vector.broadcast %72 : vector<4x1xf32> to vector<4x160xf32>
    %74 = arith.addf %71, %73 : vector<4x160xf32>
    %cst_100 = arith.constant 0.000000e+00 : f32
    %75 = vector.broadcast %cst_100 : f32 to vector<4x160xf32>
    %76 = arith.maximumf %74, %75 : vector<4x160xf32>
    %c0_101 = arith.constant 0 : index
    %c0_102 = arith.constant 0 : index
    %77 = vector.load %arg10[%c0_101, %c0_102] : memref<4x4xbf16, #tpu.memory_space<vmem>>, vector<4x4xbf16>
    %78 = arith.truncf %76 : vector<4x160xf32> to vector<4x160xbf16>
    %cst_103 = arith.constant dense<0.000000e+00> : vector<4x160xf32>
    %79 = tpu.matmul %77, %78, %cst_103 {dimension_numbers = #tpu.dot_dimension_numbers<[1], [0], [0], [1], [0, 0, 1, 1], [], []>} : vector<4x4xbf16>, vector<4x160xbf16>, vector<4x160xf32> -> vector<4x160xf32>
    %c0_104 = arith.constant 0 : index
    %c0_105 = arith.constant 0 : index
    %80 = vector.load %arg11[%c0_104, %c0_105] : memref<4x1xf32, #tpu.memory_space<vmem>>, vector<4x1xf32>
    %81 = vector.broadcast %80 : vector<4x1xf32> to vector<4x160xf32>
    %82 = arith.addf %79, %81 : vector<4x160xf32>
    %83 = math.tanh %82 : vector<4x160xf32>
    %84 = arith.addf %3, %83 : vector<4x160xf32>
    %c0_106 = arith.constant 0 : index
    %c0_107 = arith.constant 0 : index
    %c0_108 = arith.constant 0 : index
    %85 = vector.load %arg13[%c0_106, %c0_107, %c0_108] : memref<1x4x160xf32, #tpu.memory_space<vmem>>, vector<1x4x160xf32>
    %86 = vector.shape_cast %85 : vector<1x4x160xf32> to vector<4x160xf32>
    %87 = vector.shape_cast %84 : vector<4x160xf32> to vector<1x4x160xf32>
    tpu.vector_store %arg13[%c0_106, %c0_107, %c0_108], %87 {strides = array<i32>} : memref<1x4x160xf32, #tpu.memory_space<vmem>>, vector<1x4x160xf32>,
    return
  }
  func.func @transform_0(%arg0: i32, %arg1: i32) -> (i32, i32, i32, i32) {
    %c0_i32 = arith.constant 0 : i32
    %c0_i32_0 = arith.constant 0 : i32
    %c0_i32_1 = arith.constant 0 : i32
    return %arg0, %arg1, %c0_i32, %c0_i32_0 : i32, i32, i32, i32
  }
  func.func @transform_1(%arg0: i32, %arg1: i32) -> (i32, i32, i32, i32) {
    %c0_i32 = arith.constant 0 : i32
    %c0_i32_0 = arith.constant 0 : i32
    %c0_i32_1 = arith.constant 0 : i32
    return %arg0, %arg1, %c0_i32, %c0_i32_0 : i32, i32, i32, i32
  }
  func.func @transform_2(%arg0: i32, %arg1: i32) -> (i32, i32) {
    %c0_i32 = arith.constant 0 : i32
    %c0_i32_0 = arith.constant 0 : i32
    %c0_i32_1 = arith.constant 0 : i32
    return %c0_i32, %c0_i32_0 : i32, i32
  }
  func.func @transform_3(%arg0: i32, %arg1: i32) -> (i32, i32) {
    %c0_i32 = arith.constant 0 : i32
    %c0_i32_0 = arith.constant 0 : i32
    %c0_i32_1 = arith.constant 0 : i32
    return %c0_i32, %c0_i32_0 : i32, i32
  }
  func.func @transform_4(%arg0: i32, %arg1: i32) -> (i32, i32) {
    %c0_i32 = arith.constant 0 : i32
    %c0_i32_0 = arith.constant 0 : i32
    %c0_i32_1 = arith.constant 0 : i32
    return %c0_i32, %c0_i32_0 : i32, i32
  }
  func.func @transform_5(%arg0: i32, %arg1: i32) -> (i32, i32) {
    %c0_i32 = arith.constant 0 : i32
    %c0_i32_0 = arith.constant 0 : i32
    %c0_i32_1 = arith.constant 0 : i32
    return %c0_i32, %c0_i32_0 : i32, i32
  }
  func.func @transform_6(%arg0: i32, %arg1: i32) -> (i32, i32) {
    %c0_i32 = arith.constant 0 : i32
    %c0_i32_0 = arith.constant 0 : i32
    %c0_i32_1 = arith.constant 0 : i32
    return %c0_i32, %c0_i32_0 : i32, i32
  }
  func.func @transform_7(%arg0: i32, %arg1: i32) -> (i32, i32) {
    %c0_i32 = arith.constant 0 : i32
    %c0_i32_0 = arith.constant 0 : i32
    %c0_i32_1 = arith.constant 0 : i32
    return %c0_i32, %c0_i32_0 : i32, i32
  }
  func.func @transform_8(%arg0: i32, %arg1: i32) -> (i32, i32) {
    %c0_i32 = arith.constant 0 : i32
    %c0_i32_0 = arith.constant 0 : i32
    %c0_i32_1 = arith.constant 0 : i32
    return %c0_i32, %c0_i32_0 : i32, i32
  }
  func.func @transform_9(%arg0: i32, %arg1: i32) -> (i32, i32) {
    %c0_i32 = arith.constant 0 : i32
    %c0_i32_0 = arith.constant 0 : i32
    %c0_i32_1 = arith.constant 0 : i32
    return %c0_i32, %c0_i32_0 : i32, i32
  }
  func.func @transform_10(%arg0: i32, %arg1: i32) -> (i32, i32, i32) {
    %c0_i32 = arith.constant 0 : i32
    %c0_i32_0 = arith.constant 0 : i32
    return %arg0, %c0_i32, %arg1 : i32, i32, i32
  }
  func.func @transform_11(%arg0: i32, %arg1: i32) -> (i32, i32, i32) {
    %c0_i32 = arith.constant 0 : i32
    %c0_i32_0 = arith.constant 0 : i32
    return %arg0, %c0_i32, %arg1 : i32, i32, i32
  }
}

module attributes {stable_mosaic.version = 11 : i64} {
  func.func @_stage23_kernel(%arg0: i32, %arg1: i32, %arg2: memref<1x1x4x110xf32, #tpu.memory_space<vmem>>, %arg3: memref<1x1x4x110xf32, #tpu.memory_space<vmem>>, %arg4: memref<1x1x4x110xf32, #tpu.memory_space<vmem>>, %arg5: memref<1x1x4x110xf32, #tpu.memory_space<vmem>>, %arg6: memref<4x144xbf16, #tpu.memory_space<vmem>>, %arg7: memref<4x1xf32, #tpu.memory_space<vmem>>, %arg8: memref<4x4xbf16, #tpu.memory_space<vmem>>, %arg9: memref<4x1xf32, #tpu.memory_space<vmem>>, %arg10: memref<4x144xbf16, #tpu.memory_space<vmem>>, %arg11: memref<4x1xf32, #tpu.memory_space<vmem>>, %arg12: memref<4x4xbf16, #tpu.memory_space<vmem>>, %arg13: memref<4x1xf32, #tpu.memory_space<vmem>>, %arg14: memref<1x4x80xf32, #tpu.memory_space<vmem>>, %arg15: memref<4x110xbf16, #tpu.memory_space<vmem>>, %arg16: memref<144x80xbf16, #tpu.memory_space<vmem>>) attributes {dimension_semantics = [#tpu.dimension_semantics<parallel>, #tpu.dimension_semantics<parallel>], iteration_bounds = array<i64: 2, 1>, scalar_prefetch = 0 : i64, scratch_operands = 2 : i64, tpu.core_type = #tpu.core_type<tc>, window_params = [{transform_indices = @transform_0, window_bounds = array<i64: 1, 1, 4, 110>}, {transform_indices = @transform_1, window_bounds = array<i64: 1, 1, 4, 110>}, {transform_indices = @transform_2, window_bounds = array<i64: 1, 1, 4, 110>}, {transform_indices = @transform_3, window_bounds = array<i64: 1, 1, 4, 110>}, {pipeline_mode = #tpu.pipeline_mode<synchronous>, transform_indices = @transform_4, window_bounds = array<i64: 4, 144>}, {pipeline_mode = #tpu.pipeline_mode<synchronous>, transform_indices = @transform_5, window_bounds = array<i64: 4, 1>}, {pipeline_mode = #tpu.pipeline_mode<synchronous>, transform_indices = @transform_6, window_bounds = array<i64: 4, 4>}, {pipeline_mode = #tpu.pipeline_mode<synchronous>, transform_indices = @transform_7, window_bounds = array<i64: 4, 1>}, {pipeline_mode = #tpu.pipeline_mode<synchronous>, transform_indices = @transform_8, window_bounds = array<i64: 4, 144>}, {pipeline_mode = #tpu.pipeline_mode<synchronous>, transform_indices = @transform_9, window_bounds = array<i64: 4, 1>}, {pipeline_mode = #tpu.pipeline_mode<synchronous>, transform_indices = @transform_10, window_bounds = array<i64: 4, 4>}, {pipeline_mode = #tpu.pipeline_mode<synchronous>, transform_indices = @transform_11, window_bounds = array<i64: 4, 1>}, {transform_indices = @transform_12, window_bounds = array<i64: 1, 4, 80>}]} {
    %cst = arith.constant 0.000000e+00 : bf16
    %0 = vector.broadcast %cst : bf16 to vector<144x80xbf16>
    %c0 = arith.constant 0 : index
    %c0_0 = arith.constant 0 : index
    %1 = vector.load %arg16[%c0, %c0_0] : memref<144x80xbf16, #tpu.memory_space<vmem>>, vector<144x80xbf16>
    tpu.vector_store %arg16[%c0, %c0_0], %0 {strides = array<i32>} : memref<144x80xbf16, #tpu.memory_space<vmem>>, vector<144x80xbf16>,
    %c0_1 = arith.constant 0 : index
    %c0_2 = arith.constant 0 : index
    %c0_3 = arith.constant 0 : index
    %c11 = arith.constant 11 : index
    %2 = vector.load %arg2[%c0_1, %c0_2, %c0_3, %c11] : memref<1x1x4x110xf32, #tpu.memory_space<vmem>>, vector<1x1x4x80xf32>
    %3 = vector.shape_cast %2 : vector<1x1x4x80xf32> to vector<4x80xf32>
    %c0_4 = arith.constant 0 : index
    %c0_5 = arith.constant 0 : index
    %c0_6 = arith.constant 0 : index
    %c11_7 = arith.constant 11 : index
    %4 = vector.load %arg3[%c0_4, %c0_5, %c0_6, %c11_7] : memref<1x1x4x110xf32, #tpu.memory_space<vmem>>, vector<1x1x4x80xf32>
    %5 = vector.shape_cast %4 : vector<1x1x4x80xf32> to vector<4x80xf32>
    %c0_8 = arith.constant 0 : index
    %c0_9 = arith.constant 0 : index
    %c0_10 = arith.constant 0 : index
    %c11_11 = arith.constant 11 : index
    %6 = vector.load %arg4[%c0_8, %c0_9, %c0_10, %c11_11] : memref<1x1x4x110xf32, #tpu.memory_space<vmem>>, vector<1x1x4x80xf32>
    %7 = vector.shape_cast %6 : vector<1x1x4x80xf32> to vector<4x80xf32>
    %c0_12 = arith.constant 0 : index
    %c0_13 = arith.constant 0 : index
    %c0_14 = arith.constant 0 : index
    %c11_15 = arith.constant 11 : index
    %8 = vector.load %arg5[%c0_12, %c0_13, %c0_14, %c11_15] : memref<1x1x4x110xf32, #tpu.memory_space<vmem>>, vector<1x1x4x80xf32>
    %9 = vector.shape_cast %8 : vector<1x1x4x80xf32> to vector<4x80xf32>
    %c0_16 = arith.constant 0 : index
    %c0_17 = arith.constant 0 : index
    %c0_18 = arith.constant 0 : index
    %c0_19 = arith.constant 0 : index
    %10 = vector.load %arg2[%c0_16, %c0_17, %c0_18, %c0_19] : memref<1x1x4x110xf32, #tpu.memory_space<vmem>>, vector<1x1x4x110xf32>
    %11 = vector.shape_cast %10 : vector<1x1x4x110xf32> to vector<4x110xf32>
    %12 = arith.truncf %11 : vector<4x110xf32> to vector<4x110xbf16>
    %c0_20 = arith.constant 0 : index
    %c0_21 = arith.constant 0 : index
    %13 = vector.load %arg15[%c0_20, %c0_21] : memref<4x110xbf16, #tpu.memory_space<vmem>>, vector<4x110xbf16>
    tpu.vector_store %arg15[%c0_20, %c0_21], %12 {strides = array<i32>} : memref<4x110xbf16, #tpu.memory_space<vmem>>, vector<4x110xbf16>,
    %c0_22 = arith.constant 0 : index
    %c0_23 = arith.constant 0 : index
    %14 = vector.load %arg15[%c0_22, %c0_23] : memref<4x110xbf16, #tpu.memory_space<vmem>>, vector<4x80xbf16>
    %c0_24 = arith.constant 0 : index
    %c0_25 = arith.constant 0 : index
    %15 = vector.load %arg16[%c0_24, %c0_25] : memref<144x80xbf16, #tpu.memory_space<vmem>>, vector<4x80xbf16>
    tpu.vector_store %arg16[%c0_24, %c0_25], %14 {strides = array<i32>} : memref<144x80xbf16, #tpu.memory_space<vmem>>, vector<4x80xbf16>,
    %c0_26 = arith.constant 0 : index
    %c1 = arith.constant 1 : index
    %16 = vector.load %arg15[%c0_26, %c1] : memref<4x110xbf16, #tpu.memory_space<vmem>>, vector<4x80xbf16>
    %c16 = arith.constant 16 : index
    %c0_27 = arith.constant 0 : index
    %17 = vector.load %arg16[%c16, %c0_27] : memref<144x80xbf16, #tpu.memory_space<vmem>>, vector<4x80xbf16>
    tpu.vector_store %arg16[%c16, %c0_27], %16 {strides = array<i32>} : memref<144x80xbf16, #tpu.memory_space<vmem>>, vector<4x80xbf16>,
    %c0_28 = arith.constant 0 : index
    %c2 = arith.constant 2 : index
    %18 = vector.load %arg15[%c0_28, %c2] : memref<4x110xbf16, #tpu.memory_space<vmem>>, vector<4x80xbf16>
    %c32 = arith.constant 32 : index
    %c0_29 = arith.constant 0 : index
    %19 = vector.load %arg16[%c32, %c0_29] : memref<144x80xbf16, #tpu.memory_space<vmem>>, vector<4x80xbf16>
    tpu.vector_store %arg16[%c32, %c0_29], %18 {strides = array<i32>} : memref<144x80xbf16, #tpu.memory_space<vmem>>, vector<4x80xbf16>,
    %c0_30 = arith.constant 0 : index
    %c10 = arith.constant 10 : index
    %20 = vector.load %arg15[%c0_30, %c10] : memref<4x110xbf16, #tpu.memory_space<vmem>>, vector<4x80xbf16>
    %c48 = arith.constant 48 : index
    %c0_31 = arith.constant 0 : index
    %21 = vector.load %arg16[%c48, %c0_31] : memref<144x80xbf16, #tpu.memory_space<vmem>>, vector<4x80xbf16>
    tpu.vector_store %arg16[%c48, %c0_31], %20 {strides = array<i32>} : memref<144x80xbf16, #tpu.memory_space<vmem>>, vector<4x80xbf16>,
    %c0_32 = arith.constant 0 : index
    %c11_33 = arith.constant 11 : index
    %22 = vector.load %arg15[%c0_32, %c11_33] : memref<4x110xbf16, #tpu.memory_space<vmem>>, vector<4x80xbf16>
    %c64 = arith.constant 64 : index
    %c0_34 = arith.constant 0 : index
    %23 = vector.load %arg16[%c64, %c0_34] : memref<144x80xbf16, #tpu.memory_space<vmem>>, vector<4x80xbf16>
    tpu.vector_store %arg16[%c64, %c0_34], %22 {strides = array<i32>} : memref<144x80xbf16, #tpu.memory_space<vmem>>, vector<4x80xbf16>,
    %c0_35 = arith.constant 0 : index
    %c12 = arith.constant 12 : index
    %24 = vector.load %arg15[%c0_35, %c12] : memref<4x110xbf16, #tpu.memory_space<vmem>>, vector<4x80xbf16>
    %c80 = arith.constant 80 : index
    %c0_36 = arith.constant 0 : index
    %25 = vector.load %arg16[%c80, %c0_36] : memref<144x80xbf16, #tpu.memory_space<vmem>>, vector<4x80xbf16>
    tpu.vector_store %arg16[%c80, %c0_36], %24 {strides = array<i32>} : memref<144x80xbf16, #tpu.memory_space<vmem>>, vector<4x80xbf16>,
    %c0_37 = arith.constant 0 : index
    %c20 = arith.constant 20 : index
    %26 = vector.load %arg15[%c0_37, %c20] : memref<4x110xbf16, #tpu.memory_space<vmem>>, vector<4x80xbf16>
    %c96 = arith.constant 96 : index
    %c0_38 = arith.constant 0 : index
    %27 = vector.load %arg16[%c96, %c0_38] : memref<144x80xbf16, #tpu.memory_space<vmem>>, vector<4x80xbf16>
    tpu.vector_store %arg16[%c96, %c0_38], %26 {strides = array<i32>} : memref<144x80xbf16, #tpu.memory_space<vmem>>, vector<4x80xbf16>,
    %c0_39 = arith.constant 0 : index
    %c21 = arith.constant 21 : index
    %28 = vector.load %arg15[%c0_39, %c21] : memref<4x110xbf16, #tpu.memory_space<vmem>>, vector<4x80xbf16>
    %c112 = arith.constant 112 : index
    %c0_40 = arith.constant 0 : index
    %29 = vector.load %arg16[%c112, %c0_40] : memref<144x80xbf16, #tpu.memory_space<vmem>>, vector<4x80xbf16>
    tpu.vector_store %arg16[%c112, %c0_40], %28 {strides = array<i32>} : memref<144x80xbf16, #tpu.memory_space<vmem>>, vector<4x80xbf16>,
    %c0_41 = arith.constant 0 : index
    %c22 = arith.constant 22 : index
    %30 = vector.load %arg15[%c0_41, %c22] : memref<4x110xbf16, #tpu.memory_space<vmem>>, vector<4x80xbf16>
    %c128 = arith.constant 128 : index
    %c0_42 = arith.constant 0 : index
    %31 = vector.load %arg16[%c128, %c0_42] : memref<144x80xbf16, #tpu.memory_space<vmem>>, vector<4x80xbf16>
    tpu.vector_store %arg16[%c128, %c0_42], %30 {strides = array<i32>} : memref<144x80xbf16, #tpu.memory_space<vmem>>, vector<4x80xbf16>,
    %c0_43 = arith.constant 0 : index
    %c0_44 = arith.constant 0 : index
    %32 = vector.load %arg6[%c0_43, %c0_44] : memref<4x144xbf16, #tpu.memory_space<vmem>>, vector<4x144xbf16>
    %c0_45 = arith.constant 0 : index
    %c0_46 = arith.constant 0 : index
    %33 = vector.load %arg16[%c0_45, %c0_46] : memref<144x80xbf16, #tpu.memory_space<vmem>>, vector<144x80xbf16>
    %cst_47 = arith.constant dense<0.000000e+00> : vector<4x80xf32>
    %34 = tpu.matmul %32, %33, %cst_47 {dimension_numbers = #tpu.dot_dimension_numbers<[1], [0], [0], [1], [0, 0, 1, 1], [], []>} : vector<4x144xbf16>, vector<144x80xbf16>, vector<4x80xf32> -> vector<4x80xf32>
    %c0_48 = arith.constant 0 : index
    %c0_49 = arith.constant 0 : index
    %35 = vector.load %arg7[%c0_48, %c0_49] : memref<4x1xf32, #tpu.memory_space<vmem>>, vector<4x1xf32>
    %36 = vector.broadcast %35 : vector<4x1xf32> to vector<4x80xf32>
    %37 = arith.addf %34, %36 : vector<4x80xf32>
    %cst_50 = arith.constant 0.000000e+00 : f32
    %38 = vector.broadcast %cst_50 : f32 to vector<4x80xf32>
    %39 = arith.maximumf %37, %38 : vector<4x80xf32>
    %c0_51 = arith.constant 0 : index
    %c0_52 = arith.constant 0 : index
    %40 = vector.load %arg8[%c0_51, %c0_52] : memref<4x4xbf16, #tpu.memory_space<vmem>>, vector<4x4xbf16>
    %41 = arith.truncf %39 : vector<4x80xf32> to vector<4x80xbf16>
    %cst_53 = arith.constant dense<0.000000e+00> : vector<4x80xf32>
    %42 = tpu.matmul %40, %41, %cst_53 {dimension_numbers = #tpu.dot_dimension_numbers<[1], [0], [0], [1], [0, 0, 1, 1], [], []>} : vector<4x4xbf16>, vector<4x80xbf16>, vector<4x80xf32> -> vector<4x80xf32>
    %c0_54 = arith.constant 0 : index
    %c0_55 = arith.constant 0 : index
    %43 = vector.load %arg9[%c0_54, %c0_55] : memref<4x1xf32, #tpu.memory_space<vmem>>, vector<4x1xf32>
    %44 = vector.broadcast %43 : vector<4x1xf32> to vector<4x80xf32>
    %45 = arith.addf %42, %44 : vector<4x80xf32>
    %46 = math.tanh %45 : vector<4x80xf32>
    %47 = arith.subf %5, %46 : vector<4x80xf32>
    %c0_56 = arith.constant 0 : index
    %c0_57 = arith.constant 0 : index
    %c0_58 = arith.constant 0 : index
    %c0_59 = arith.constant 0 : index
    %48 = vector.load %arg3[%c0_56, %c0_57, %c0_58, %c0_59] : memref<1x1x4x110xf32, #tpu.memory_space<vmem>>, vector<1x1x4x110xf32>
    %49 = vector.shape_cast %48 : vector<1x1x4x110xf32> to vector<4x110xf32>
    %50 = arith.truncf %49 : vector<4x110xf32> to vector<4x110xbf16>
    %c0_60 = arith.constant 0 : index
    %c0_61 = arith.constant 0 : index
    %51 = vector.load %arg15[%c0_60, %c0_61] : memref<4x110xbf16, #tpu.memory_space<vmem>>, vector<4x110xbf16>
    tpu.vector_store %arg15[%c0_60, %c0_61], %50 {strides = array<i32>} : memref<4x110xbf16, #tpu.memory_space<vmem>>, vector<4x110xbf16>,
    %c0_62 = arith.constant 0 : index
    %c0_63 = arith.constant 0 : index
    %52 = vector.load %arg15[%c0_62, %c0_63] : memref<4x110xbf16, #tpu.memory_space<vmem>>, vector<4x80xbf16>
    %c0_64 = arith.constant 0 : index
    %c0_65 = arith.constant 0 : index
    %53 = vector.load %arg16[%c0_64, %c0_65] : memref<144x80xbf16, #tpu.memory_space<vmem>>, vector<4x80xbf16>
    tpu.vector_store %arg16[%c0_64, %c0_65], %52 {strides = array<i32>} : memref<144x80xbf16, #tpu.memory_space<vmem>>, vector<4x80xbf16>,
    %c0_66 = arith.constant 0 : index
    %c1_67 = arith.constant 1 : index
    %54 = vector.load %arg15[%c0_66, %c1_67] : memref<4x110xbf16, #tpu.memory_space<vmem>>, vector<4x80xbf16>
    %c16_68 = arith.constant 16 : index
    %c0_69 = arith.constant 0 : index
    %55 = vector.load %arg16[%c16_68, %c0_69] : memref<144x80xbf16, #tpu.memory_space<vmem>>, vector<4x80xbf16>
    tpu.vector_store %arg16[%c16_68, %c0_69], %54 {strides = array<i32>} : memref<144x80xbf16, #tpu.memory_space<vmem>>, vector<4x80xbf16>,
    %c0_70 = arith.constant 0 : index
    %c2_71 = arith.constant 2 : index
    %56 = vector.load %arg15[%c0_70, %c2_71] : memref<4x110xbf16, #tpu.memory_space<vmem>>, vector<4x80xbf16>
    %c32_72 = arith.constant 32 : index
    %c0_73 = arith.constant 0 : index
    %57 = vector.load %arg16[%c32_72, %c0_73] : memref<144x80xbf16, #tpu.memory_space<vmem>>, vector<4x80xbf16>
    tpu.vector_store %arg16[%c32_72, %c0_73], %56 {strides = array<i32>} : memref<144x80xbf16, #tpu.memory_space<vmem>>, vector<4x80xbf16>,
    %c0_74 = arith.constant 0 : index
    %c10_75 = arith.constant 10 : index
    %58 = vector.load %arg15[%c0_74, %c10_75] : memref<4x110xbf16, #tpu.memory_space<vmem>>, vector<4x80xbf16>
    %c48_76 = arith.constant 48 : index
    %c0_77 = arith.constant 0 : index
    %59 = vector.load %arg16[%c48_76, %c0_77] : memref<144x80xbf16, #tpu.memory_space<vmem>>, vector<4x80xbf16>
    tpu.vector_store %arg16[%c48_76, %c0_77], %58 {strides = array<i32>} : memref<144x80xbf16, #tpu.memory_space<vmem>>, vector<4x80xbf16>,
    %c0_78 = arith.constant 0 : index
    %c11_79 = arith.constant 11 : index
    %60 = vector.load %arg15[%c0_78, %c11_79] : memref<4x110xbf16, #tpu.memory_space<vmem>>, vector<4x80xbf16>
    %c64_80 = arith.constant 64 : index
    %c0_81 = arith.constant 0 : index
    %61 = vector.load %arg16[%c64_80, %c0_81] : memref<144x80xbf16, #tpu.memory_space<vmem>>, vector<4x80xbf16>
    tpu.vector_store %arg16[%c64_80, %c0_81], %60 {strides = array<i32>} : memref<144x80xbf16, #tpu.memory_space<vmem>>, vector<4x80xbf16>,
    %c0_82 = arith.constant 0 : index
    %c12_83 = arith.constant 12 : index
    %62 = vector.load %arg15[%c0_82, %c12_83] : memref<4x110xbf16, #tpu.memory_space<vmem>>, vector<4x80xbf16>
    %c80_84 = arith.constant 80 : index
    %c0_85 = arith.constant 0 : index
    %63 = vector.load %arg16[%c80_84, %c0_85] : memref<144x80xbf16, #tpu.memory_space<vmem>>, vector<4x80xbf16>
    tpu.vector_store %arg16[%c80_84, %c0_85], %62 {strides = array<i32>} : memref<144x80xbf16, #tpu.memory_space<vmem>>, vector<4x80xbf16>,
    %c0_86 = arith.constant 0 : index
    %c20_87 = arith.constant 20 : index
    %64 = vector.load %arg15[%c0_86, %c20_87] : memref<4x110xbf16, #tpu.memory_space<vmem>>, vector<4x80xbf16>
    %c96_88 = arith.constant 96 : index
    %c0_89 = arith.constant 0 : index
    %65 = vector.load %arg16[%c96_88, %c0_89] : memref<144x80xbf16, #tpu.memory_space<vmem>>, vector<4x80xbf16>
    tpu.vector_store %arg16[%c96_88, %c0_89], %64 {strides = array<i32>} : memref<144x80xbf16, #tpu.memory_space<vmem>>, vector<4x80xbf16>,
    %c0_90 = arith.constant 0 : index
    %c21_91 = arith.constant 21 : index
    %66 = vector.load %arg15[%c0_90, %c21_91] : memref<4x110xbf16, #tpu.memory_space<vmem>>, vector<4x80xbf16>
    %c112_92 = arith.constant 112 : index
    %c0_93 = arith.constant 0 : index
    %67 = vector.load %arg16[%c112_92, %c0_93] : memref<144x80xbf16, #tpu.memory_space<vmem>>, vector<4x80xbf16>
    tpu.vector_store %arg16[%c112_92, %c0_93], %66 {strides = array<i32>} : memref<144x80xbf16, #tpu.memory_space<vmem>>, vector<4x80xbf16>,
    %c0_94 = arith.constant 0 : index
    %c22_95 = arith.constant 22 : index
    %68 = vector.load %arg15[%c0_94, %c22_95] : memref<4x110xbf16, #tpu.memory_space<vmem>>, vector<4x80xbf16>
    %c128_96 = arith.constant 128 : index
    %c0_97 = arith.constant 0 : index
    %69 = vector.load %arg16[%c128_96, %c0_97] : memref<144x80xbf16, #tpu.memory_space<vmem>>, vector<4x80xbf16>
    tpu.vector_store %arg16[%c128_96, %c0_97], %68 {strides = array<i32>} : memref<144x80xbf16, #tpu.memory_space<vmem>>, vector<4x80xbf16>,
    %c0_98 = arith.constant 0 : index
    %c0_99 = arith.constant 0 : index
    %70 = vector.load %arg10[%c0_98, %c0_99] : memref<4x144xbf16, #tpu.memory_space<vmem>>, vector<4x144xbf16>
    %c0_100 = arith.constant 0 : index
    %c0_101 = arith.constant 0 : index
    %71 = vector.load %arg16[%c0_100, %c0_101] : memref<144x80xbf16, #tpu.memory_space<vmem>>, vector<144x80xbf16>
    %cst_102 = arith.constant dense<0.000000e+00> : vector<4x80xf32>
    %72 = tpu.matmul %70, %71, %cst_102 {dimension_numbers = #tpu.dot_dimension_numbers<[1], [0], [0], [1], [0, 0, 1, 1], [], []>} : vector<4x144xbf16>, vector<144x80xbf16>, vector<4x80xf32> -> vector<4x80xf32>
    %c0_103 = arith.constant 0 : index
    %c0_104 = arith.constant 0 : index
    %73 = vector.load %arg11[%c0_103, %c0_104] : memref<4x1xf32, #tpu.memory_space<vmem>>, vector<4x1xf32>
    %74 = vector.broadcast %73 : vector<4x1xf32> to vector<4x80xf32>
    %75 = arith.addf %72, %74 : vector<4x80xf32>
    %cst_105 = arith.constant 0.000000e+00 : f32
    %76 = vector.broadcast %cst_105 : f32 to vector<4x80xf32>
    %77 = arith.maximumf %75, %76 : vector<4x80xf32>
    %c0_106 = arith.constant 0 : index
    %c0_107 = arith.constant 0 : index
    %78 = vector.load %arg12[%c0_106, %c0_107] : memref<4x4xbf16, #tpu.memory_space<vmem>>, vector<4x4xbf16>
    %79 = arith.truncf %77 : vector<4x80xf32> to vector<4x80xbf16>
    %cst_108 = arith.constant dense<0.000000e+00> : vector<4x80xf32>
    %80 = tpu.matmul %78, %79, %cst_108 {dimension_numbers = #tpu.dot_dimension_numbers<[1], [0], [0], [1], [0, 0, 1, 1], [], []>} : vector<4x4xbf16>, vector<4x80xbf16>, vector<4x80xf32> -> vector<4x80xf32>
    %c0_109 = arith.constant 0 : index
    %c0_110 = arith.constant 0 : index
    %81 = vector.load %arg13[%c0_109, %c0_110] : memref<4x1xf32, #tpu.memory_space<vmem>>, vector<4x1xf32>
    %82 = vector.broadcast %81 : vector<4x1xf32> to vector<4x80xf32>
    %83 = arith.addf %80, %82 : vector<4x80xf32>
    %84 = math.tanh %83 : vector<4x80xf32>
    %85 = arith.addf %3, %84 : vector<4x80xf32>
    %86 = arith.addf %47, %85 : vector<4x80xf32>
    %c0_111 = arith.constant 0 : index
    %c0_112 = arith.constant 0 : index
    %c0_113 = arith.constant 0 : index
    %c0_114 = arith.constant 0 : index
    %87 = vector.load %arg4[%c0_111, %c0_112, %c0_113, %c0_114] : memref<1x1x4x110xf32, #tpu.memory_space<vmem>>, vector<1x1x4x110xf32>
    %88 = vector.shape_cast %87 : vector<1x1x4x110xf32> to vector<4x110xf32>
    %89 = arith.truncf %88 : vector<4x110xf32> to vector<4x110xbf16>
    %c0_115 = arith.constant 0 : index
    %c0_116 = arith.constant 0 : index
    %90 = vector.load %arg15[%c0_115, %c0_116] : memref<4x110xbf16, #tpu.memory_space<vmem>>, vector<4x110xbf16>
    tpu.vector_store %arg15[%c0_115, %c0_116], %89 {strides = array<i32>} : memref<4x110xbf16, #tpu.memory_space<vmem>>, vector<4x110xbf16>,
    %c0_117 = arith.constant 0 : index
    %c0_118 = arith.constant 0 : index
    %91 = vector.load %arg15[%c0_117, %c0_118] : memref<4x110xbf16, #tpu.memory_space<vmem>>, vector<4x80xbf16>
    %c0_119 = arith.constant 0 : index
    %c0_120 = arith.constant 0 : index
    %92 = vector.load %arg16[%c0_119, %c0_120] : memref<144x80xbf16, #tpu.memory_space<vmem>>, vector<4x80xbf16>
    tpu.vector_store %arg16[%c0_119, %c0_120], %91 {strides = array<i32>} : memref<144x80xbf16, #tpu.memory_space<vmem>>, vector<4x80xbf16>,
    %c0_121 = arith.constant 0 : index
    %c1_122 = arith.constant 1 : index
    %93 = vector.load %arg15[%c0_121, %c1_122] : memref<4x110xbf16, #tpu.memory_space<vmem>>, vector<4x80xbf16>
    %c16_123 = arith.constant 16 : index
    %c0_124 = arith.constant 0 : index
    %94 = vector.load %arg16[%c16_123, %c0_124] : memref<144x80xbf16, #tpu.memory_space<vmem>>, vector<4x80xbf16>
    tpu.vector_store %arg16[%c16_123, %c0_124], %93 {strides = array<i32>} : memref<144x80xbf16, #tpu.memory_space<vmem>>, vector<4x80xbf16>,
    %c0_125 = arith.constant 0 : index
    %c2_126 = arith.constant 2 : index
    %95 = vector.load %arg15[%c0_125, %c2_126] : memref<4x110xbf16, #tpu.memory_space<vmem>>, vector<4x80xbf16>
    %c32_127 = arith.constant 32 : index
    %c0_128 = arith.constant 0 : index
    %96 = vector.load %arg16[%c32_127, %c0_128] : memref<144x80xbf16, #tpu.memory_space<vmem>>, vector<4x80xbf16>
    tpu.vector_store %arg16[%c32_127, %c0_128], %95 {strides = array<i32>} : memref<144x80xbf16, #tpu.memory_space<vmem>>, vector<4x80xbf16>,
    %c0_129 = arith.constant 0 : index
    %c10_130 = arith.constant 10 : index
    %97 = vector.load %arg15[%c0_129, %c10_130] : memref<4x110xbf16, #tpu.memory_space<vmem>>, vector<4x80xbf16>
    %c48_131 = arith.constant 48 : index
    %c0_132 = arith.constant 0 : index
    %98 = vector.load %arg16[%c48_131, %c0_132] : memref<144x80xbf16, #tpu.memory_space<vmem>>, vector<4x80xbf16>
    tpu.vector_store %arg16[%c48_131, %c0_132], %97 {strides = array<i32>} : memref<144x80xbf16, #tpu.memory_space<vmem>>, vector<4x80xbf16>,
    %c0_133 = arith.constant 0 : index
    %c11_134 = arith.constant 11 : index
    %99 = vector.load %arg15[%c0_133, %c11_134] : memref<4x110xbf16, #tpu.memory_space<vmem>>, vector<4x80xbf16>
    %c64_135 = arith.constant 64 : index
    %c0_136 = arith.constant 0 : index
    %100 = vector.load %arg16[%c64_135, %c0_136] : memref<144x80xbf16, #tpu.memory_space<vmem>>, vector<4x80xbf16>
    tpu.vector_store %arg16[%c64_135, %c0_136], %99 {strides = array<i32>} : memref<144x80xbf16, #tpu.memory_space<vmem>>, vector<4x80xbf16>,
    %c0_137 = arith.constant 0 : index
    %c12_138 = arith.constant 12 : index
    %101 = vector.load %arg15[%c0_137, %c12_138] : memref<4x110xbf16, #tpu.memory_space<vmem>>, vector<4x80xbf16>
    %c80_139 = arith.constant 80 : index
    %c0_140 = arith.constant 0 : index
    %102 = vector.load %arg16[%c80_139, %c0_140] : memref<144x80xbf16, #tpu.memory_space<vmem>>, vector<4x80xbf16>
    tpu.vector_store %arg16[%c80_139, %c0_140], %101 {strides = array<i32>} : memref<144x80xbf16, #tpu.memory_space<vmem>>, vector<4x80xbf16>,
    %c0_141 = arith.constant 0 : index
    %c20_142 = arith.constant 20 : index
    %103 = vector.load %arg15[%c0_141, %c20_142] : memref<4x110xbf16, #tpu.memory_space<vmem>>, vector<4x80xbf16>
    %c96_143 = arith.constant 96 : index
    %c0_144 = arith.constant 0 : index
    %104 = vector.load %arg16[%c96_143, %c0_144] : memref<144x80xbf16, #tpu.memory_space<vmem>>, vector<4x80xbf16>
    tpu.vector_store %arg16[%c96_143, %c0_144], %103 {strides = array<i32>} : memref<144x80xbf16, #tpu.memory_space<vmem>>, vector<4x80xbf16>,
    %c0_145 = arith.constant 0 : index
    %c21_146 = arith.constant 21 : index
    %105 = vector.load %arg15[%c0_145, %c21_146] : memref<4x110xbf16, #tpu.memory_space<vmem>>, vector<4x80xbf16>
    %c112_147 = arith.constant 112 : index
    %c0_148 = arith.constant 0 : index
    %106 = vector.load %arg16[%c112_147, %c0_148] : memref<144x80xbf16, #tpu.memory_space<vmem>>, vector<4x80xbf16>
    tpu.vector_store %arg16[%c112_147, %c0_148], %105 {strides = array<i32>} : memref<144x80xbf16, #tpu.memory_space<vmem>>, vector<4x80xbf16>,
    %c0_149 = arith.constant 0 : index
    %c22_150 = arith.constant 22 : index
    %107 = vector.load %arg15[%c0_149, %c22_150] : memref<4x110xbf16, #tpu.memory_space<vmem>>, vector<4x80xbf16>
    %c128_151 = arith.constant 128 : index
    %c0_152 = arith.constant 0 : index
    %108 = vector.load %arg16[%c128_151, %c0_152] : memref<144x80xbf16, #tpu.memory_space<vmem>>, vector<4x80xbf16>
    tpu.vector_store %arg16[%c128_151, %c0_152], %107 {strides = array<i32>} : memref<144x80xbf16, #tpu.memory_space<vmem>>, vector<4x80xbf16>,
    %c0_153 = arith.constant 0 : index
    %c0_154 = arith.constant 0 : index
    %109 = vector.load %arg6[%c0_153, %c0_154] : memref<4x144xbf16, #tpu.memory_space<vmem>>, vector<4x144xbf16>
    %c0_155 = arith.constant 0 : index
    %c0_156 = arith.constant 0 : index
    %110 = vector.load %arg16[%c0_155, %c0_156] : memref<144x80xbf16, #tpu.memory_space<vmem>>, vector<144x80xbf16>
    %cst_157 = arith.constant dense<0.000000e+00> : vector<4x80xf32>
    %111 = tpu.matmul %109, %110, %cst_157 {dimension_numbers = #tpu.dot_dimension_numbers<[1], [0], [0], [1], [0, 0, 1, 1], [], []>} : vector<4x144xbf16>, vector<144x80xbf16>, vector<4x80xf32> -> vector<4x80xf32>
    %c0_158 = arith.constant 0 : index
    %c0_159 = arith.constant 0 : index
    %112 = vector.load %arg7[%c0_158, %c0_159] : memref<4x1xf32, #tpu.memory_space<vmem>>, vector<4x1xf32>
    %113 = vector.broadcast %112 : vector<4x1xf32> to vector<4x80xf32>
    %114 = arith.addf %111, %113 : vector<4x80xf32>
    %cst_160 = arith.constant 0.000000e+00 : f32
    %115 = vector.broadcast %cst_160 : f32 to vector<4x80xf32>
    %116 = arith.maximumf %114, %115 : vector<4x80xf32>
    %c0_161 = arith.constant 0 : index
    %c0_162 = arith.constant 0 : index
    %117 = vector.load %arg8[%c0_161, %c0_162] : memref<4x4xbf16, #tpu.memory_space<vmem>>, vector<4x4xbf16>
    %118 = arith.truncf %116 : vector<4x80xf32> to vector<4x80xbf16>
    %cst_163 = arith.constant dense<0.000000e+00> : vector<4x80xf32>
    %119 = tpu.matmul %117, %118, %cst_163 {dimension_numbers = #tpu.dot_dimension_numbers<[1], [0], [0], [1], [0, 0, 1, 1], [], []>} : vector<4x4xbf16>, vector<4x80xbf16>, vector<4x80xf32> -> vector<4x80xf32>
    %c0_164 = arith.constant 0 : index
    %c0_165 = arith.constant 0 : index
    %120 = vector.load %arg9[%c0_164, %c0_165] : memref<4x1xf32, #tpu.memory_space<vmem>>, vector<4x1xf32>
    %121 = vector.broadcast %120 : vector<4x1xf32> to vector<4x80xf32>
    %122 = arith.addf %119, %121 : vector<4x80xf32>
    %123 = math.tanh %122 : vector<4x80xf32>
    %124 = arith.subf %9, %123 : vector<4x80xf32>
    %125 = arith.addf %86, %124 : vector<4x80xf32>
    %c0_166 = arith.constant 0 : index
    %c0_167 = arith.constant 0 : index
    %c0_168 = arith.constant 0 : index
    %c0_169 = arith.constant 0 : index
    %126 = vector.load %arg5[%c0_166, %c0_167, %c0_168, %c0_169] : memref<1x1x4x110xf32, #tpu.memory_space<vmem>>, vector<1x1x4x110xf32>
    %127 = vector.shape_cast %126 : vector<1x1x4x110xf32> to vector<4x110xf32>
    %128 = arith.truncf %127 : vector<4x110xf32> to vector<4x110xbf16>
    %c0_170 = arith.constant 0 : index
    %c0_171 = arith.constant 0 : index
    %129 = vector.load %arg15[%c0_170, %c0_171] : memref<4x110xbf16, #tpu.memory_space<vmem>>, vector<4x110xbf16>
    tpu.vector_store %arg15[%c0_170, %c0_171], %128 {strides = array<i32>} : memref<4x110xbf16, #tpu.memory_space<vmem>>, vector<4x110xbf16>,
    %c0_172 = arith.constant 0 : index
    %c0_173 = arith.constant 0 : index
    %130 = vector.load %arg15[%c0_172, %c0_173] : memref<4x110xbf16, #tpu.memory_space<vmem>>, vector<4x80xbf16>
    %c0_174 = arith.constant 0 : index
    %c0_175 = arith.constant 0 : index
    %131 = vector.load %arg16[%c0_174, %c0_175] : memref<144x80xbf16, #tpu.memory_space<vmem>>, vector<4x80xbf16>
    tpu.vector_store %arg16[%c0_174, %c0_175], %130 {strides = array<i32>} : memref<144x80xbf16, #tpu.memory_space<vmem>>, vector<4x80xbf16>,
    %c0_176 = arith.constant 0 : index
    %c1_177 = arith.constant 1 : index
    %132 = vector.load %arg15[%c0_176, %c1_177] : memref<4x110xbf16, #tpu.memory_space<vmem>>, vector<4x80xbf16>
    %c16_178 = arith.constant 16 : index
    %c0_179 = arith.constant 0 : index
    %133 = vector.load %arg16[%c16_178, %c0_179] : memref<144x80xbf16, #tpu.memory_space<vmem>>, vector<4x80xbf16>
    tpu.vector_store %arg16[%c16_178, %c0_179], %132 {strides = array<i32>} : memref<144x80xbf16, #tpu.memory_space<vmem>>, vector<4x80xbf16>,
    %c0_180 = arith.constant 0 : index
    %c2_181 = arith.constant 2 : index
    %134 = vector.load %arg15[%c0_180, %c2_181] : memref<4x110xbf16, #tpu.memory_space<vmem>>, vector<4x80xbf16>
    %c32_182 = arith.constant 32 : index
    %c0_183 = arith.constant 0 : index
    %135 = vector.load %arg16[%c32_182, %c0_183] : memref<144x80xbf16, #tpu.memory_space<vmem>>, vector<4x80xbf16>
    tpu.vector_store %arg16[%c32_182, %c0_183], %134 {strides = array<i32>} : memref<144x80xbf16, #tpu.memory_space<vmem>>, vector<4x80xbf16>,
    %c0_184 = arith.constant 0 : index
    %c10_185 = arith.constant 10 : index
    %136 = vector.load %arg15[%c0_184, %c10_185] : memref<4x110xbf16, #tpu.memory_space<vmem>>, vector<4x80xbf16>
    %c48_186 = arith.constant 48 : index
    %c0_187 = arith.constant 0 : index
    %137 = vector.load %arg16[%c48_186, %c0_187] : memref<144x80xbf16, #tpu.memory_space<vmem>>, vector<4x80xbf16>
    tpu.vector_store %arg16[%c48_186, %c0_187], %136 {strides = array<i32>} : memref<144x80xbf16, #tpu.memory_space<vmem>>, vector<4x80xbf16>,
    %c0_188 = arith.constant 0 : index
    %c11_189 = arith.constant 11 : index
    %138 = vector.load %arg15[%c0_188, %c11_189] : memref<4x110xbf16, #tpu.memory_space<vmem>>, vector<4x80xbf16>
    %c64_190 = arith.constant 64 : index
    %c0_191 = arith.constant 0 : index
    %139 = vector.load %arg16[%c64_190, %c0_191] : memref<144x80xbf16, #tpu.memory_space<vmem>>, vector<4x80xbf16>
    tpu.vector_store %arg16[%c64_190, %c0_191], %138 {strides = array<i32>} : memref<144x80xbf16, #tpu.memory_space<vmem>>, vector<4x80xbf16>,
    %c0_192 = arith.constant 0 : index
    %c12_193 = arith.constant 12 : index
    %140 = vector.load %arg15[%c0_192, %c12_193] : memref<4x110xbf16, #tpu.memory_space<vmem>>, vector<4x80xbf16>
    %c80_194 = arith.constant 80 : index
    %c0_195 = arith.constant 0 : index
    %141 = vector.load %arg16[%c80_194, %c0_195] : memref<144x80xbf16, #tpu.memory_space<vmem>>, vector<4x80xbf16>
    tpu.vector_store %arg16[%c80_194, %c0_195], %140 {strides = array<i32>} : memref<144x80xbf16, #tpu.memory_space<vmem>>, vector<4x80xbf16>,
    %c0_196 = arith.constant 0 : index
    %c20_197 = arith.constant 20 : index
    %142 = vector.load %arg15[%c0_196, %c20_197] : memref<4x110xbf16, #tpu.memory_space<vmem>>, vector<4x80xbf16>
    %c96_198 = arith.constant 96 : index
    %c0_199 = arith.constant 0 : index
    %143 = vector.load %arg16[%c96_198, %c0_199] : memref<144x80xbf16, #tpu.memory_space<vmem>>, vector<4x80xbf16>
    tpu.vector_store %arg16[%c96_198, %c0_199], %142 {strides = array<i32>} : memref<144x80xbf16, #tpu.memory_space<vmem>>, vector<4x80xbf16>,
    %c0_200 = arith.constant 0 : index
    %c21_201 = arith.constant 21 : index
    %144 = vector.load %arg15[%c0_200, %c21_201] : memref<4x110xbf16, #tpu.memory_space<vmem>>, vector<4x80xbf16>
    %c112_202 = arith.constant 112 : index
    %c0_203 = arith.constant 0 : index
    %145 = vector.load %arg16[%c112_202, %c0_203] : memref<144x80xbf16, #tpu.memory_space<vmem>>, vector<4x80xbf16>
    tpu.vector_store %arg16[%c112_202, %c0_203], %144 {strides = array<i32>} : memref<144x80xbf16, #tpu.memory_space<vmem>>, vector<4x80xbf16>,
    %c0_204 = arith.constant 0 : index
    %c22_205 = arith.constant 22 : index
    %146 = vector.load %arg15[%c0_204, %c22_205] : memref<4x110xbf16, #tpu.memory_space<vmem>>, vector<4x80xbf16>
    %c128_206 = arith.constant 128 : index
    %c0_207 = arith.constant 0 : index
    %147 = vector.load %arg16[%c128_206, %c0_207] : memref<144x80xbf16, #tpu.memory_space<vmem>>, vector<4x80xbf16>
    tpu.vector_store %arg16[%c128_206, %c0_207], %146 {strides = array<i32>} : memref<144x80xbf16, #tpu.memory_space<vmem>>, vector<4x80xbf16>,
    %c0_208 = arith.constant 0 : index
    %c0_209 = arith.constant 0 : index
    %148 = vector.load %arg10[%c0_208, %c0_209] : memref<4x144xbf16, #tpu.memory_space<vmem>>, vector<4x144xbf16>
    %c0_210 = arith.constant 0 : index
    %c0_211 = arith.constant 0 : index
    %149 = vector.load %arg16[%c0_210, %c0_211] : memref<144x80xbf16, #tpu.memory_space<vmem>>, vector<144x80xbf16>
    %cst_212 = arith.constant dense<0.000000e+00> : vector<4x80xf32>
    %150 = tpu.matmul %148, %149, %cst_212 {dimension_numbers = #tpu.dot_dimension_numbers<[1], [0], [0], [1], [0, 0, 1, 1], [], []>} : vector<4x144xbf16>, vector<144x80xbf16>, vector<4x80xf32> -> vector<4x80xf32>
    %c0_213 = arith.constant 0 : index
    %c0_214 = arith.constant 0 : index
    %151 = vector.load %arg11[%c0_213, %c0_214] : memref<4x1xf32, #tpu.memory_space<vmem>>, vector<4x1xf32>
    %152 = vector.broadcast %151 : vector<4x1xf32> to vector<4x80xf32>
    %153 = arith.addf %150, %152 : vector<4x80xf32>
    %cst_215 = arith.constant 0.000000e+00 : f32
    %154 = vector.broadcast %cst_215 : f32 to vector<4x80xf32>
    %155 = arith.maximumf %153, %154 : vector<4x80xf32>
    %c0_216 = arith.constant 0 : index
    %c0_217 = arith.constant 0 : index
    %156 = vector.load %arg12[%c0_216, %c0_217] : memref<4x4xbf16, #tpu.memory_space<vmem>>, vector<4x4xbf16>
    %157 = arith.truncf %155 : vector<4x80xf32> to vector<4x80xbf16>
    %cst_218 = arith.constant dense<0.000000e+00> : vector<4x80xf32>
    %158 = tpu.matmul %156, %157, %cst_218 {dimension_numbers = #tpu.dot_dimension_numbers<[1], [0], [0], [1], [0, 0, 1, 1], [], []>} : vector<4x4xbf16>, vector<4x80xbf16>, vector<4x80xf32> -> vector<4x80xf32>
    %c0_219 = arith.constant 0 : index
    %c0_220 = arith.constant 0 : index
    %159 = vector.load %arg13[%c0_219, %c0_220] : memref<4x1xf32, #tpu.memory_space<vmem>>, vector<4x1xf32>
    %160 = vector.broadcast %159 : vector<4x1xf32> to vector<4x80xf32>
    %161 = arith.addf %158, %160 : vector<4x80xf32>
    %162 = math.tanh %161 : vector<4x80xf32>
    %163 = arith.addf %7, %162 : vector<4x80xf32>
    %164 = arith.addf %125, %163 : vector<4x80xf32>
    %c0_221 = arith.constant 0 : index
    %c0_222 = arith.constant 0 : index
    %c0_223 = arith.constant 0 : index
    %165 = vector.load %arg14[%c0_221, %c0_222, %c0_223] : memref<1x4x80xf32, #tpu.memory_space<vmem>>, vector<1x4x80xf32>
    %166 = vector.shape_cast %165 : vector<1x4x80xf32> to vector<4x80xf32>
    %167 = vector.shape_cast %164 : vector<4x80xf32> to vector<1x4x80xf32>
    tpu.vector_store %arg14[%c0_221, %c0_222, %c0_223], %167 {strides = array<i32>} : memref<1x4x80xf32, #tpu.memory_space<vmem>>, vector<1x4x80xf32>,
    return
  }
  func.func @transform_0(%arg0: i32, %arg1: i32) -> (i32, i32, i32, i32) {
    %c0_i32 = arith.constant 0 : i32
    %c0_i32_0 = arith.constant 0 : i32
    %c0_i32_1 = arith.constant 0 : i32
    return %arg0, %arg1, %c0_i32, %c0_i32_0 : i32, i32, i32, i32
  }
  func.func @transform_1(%arg0: i32, %arg1: i32) -> (i32, i32, i32, i32) {
    %c0_i32 = arith.constant 0 : i32
    %c0_i32_0 = arith.constant 0 : i32
    %c0_i32_1 = arith.constant 0 : i32
    return %arg0, %arg1, %c0_i32, %c0_i32_0 : i32, i32, i32, i32
  }
  func.func @transform_2(%arg0: i32, %arg1: i32) -> (i32, i32, i32, i32) {
    %c0_i32 = arith.constant 0 : i32
    %c0_i32_0 = arith.constant 0 : i32
    %c0_i32_1 = arith.constant 0 : i32
    return %arg0, %arg1, %c0_i32, %c0_i32_0 : i32, i32, i32, i32
  }
  func.func @transform_3(%arg0: i32, %arg1: i32) -> (i32, i32, i32, i32) {
    %c0_i32 = arith.constant 0 : i32
    %c0_i32_0 = arith.constant 0 : i32
    %c0_i32_1 = arith.constant 0 : i32
    return %arg0, %arg1, %c0_i32, %c0_i32_0 : i32, i32, i32, i32
  }
  func.func @transform_4(%arg0: i32, %arg1: i32) -> (i32, i32) {
    %c0_i32 = arith.constant 0 : i32
    %c0_i32_0 = arith.constant 0 : i32
    %c0_i32_1 = arith.constant 0 : i32
    return %c0_i32, %c0_i32_0 : i32, i32
  }
  func.func @transform_5(%arg0: i32, %arg1: i32) -> (i32, i32) {
    %c0_i32 = arith.constant 0 : i32
    %c0_i32_0 = arith.constant 0 : i32
    %c0_i32_1 = arith.constant 0 : i32
    return %c0_i32, %c0_i32_0 : i32, i32
  }
  func.func @transform_6(%arg0: i32, %arg1: i32) -> (i32, i32) {
    %c0_i32 = arith.constant 0 : i32
    %c0_i32_0 = arith.constant 0 : i32
    %c0_i32_1 = arith.constant 0 : i32
    return %c0_i32, %c0_i32_0 : i32, i32
  }
  func.func @transform_7(%arg0: i32, %arg1: i32) -> (i32, i32) {
    %c0_i32 = arith.constant 0 : i32
    %c0_i32_0 = arith.constant 0 : i32
    %c0_i32_1 = arith.constant 0 : i32
    return %c0_i32, %c0_i32_0 : i32, i32
  }
  func.func @transform_8(%arg0: i32, %arg1: i32) -> (i32, i32) {
    %c0_i32 = arith.constant 0 : i32
    %c0_i32_0 = arith.constant 0 : i32
    %c0_i32_1 = arith.constant 0 : i32
    return %c0_i32, %c0_i32_0 : i32, i32
  }
  func.func @transform_9(%arg0: i32, %arg1: i32) -> (i32, i32) {
    %c0_i32 = arith.constant 0 : i32
    %c0_i32_0 = arith.constant 0 : i32
    %c0_i32_1 = arith.constant 0 : i32
    return %c0_i32, %c0_i32_0 : i32, i32
  }
  func.func @transform_10(%arg0: i32, %arg1: i32) -> (i32, i32) {
    %c0_i32 = arith.constant 0 : i32
    %c0_i32_0 = arith.constant 0 : i32
    %c0_i32_1 = arith.constant 0 : i32
    return %c0_i32, %c0_i32_0 : i32, i32
  }
  func.func @transform_11(%arg0: i32, %arg1: i32) -> (i32, i32) {
    %c0_i32 = arith.constant 0 : i32
    %c0_i32_0 = arith.constant 0 : i32
    %c0_i32_1 = arith.constant 0 : i32
    return %c0_i32, %c0_i32_0 : i32, i32
  }
  func.func @transform_12(%arg0: i32, %arg1: i32) -> (i32, i32, i32) {
    %c0_i32 = arith.constant 0 : i32
    %c0_i32_0 = arith.constant 0 : i32
    return %arg0, %c0_i32, %arg1 : i32, i32, i32
  }
}

</mosaic_0001>

<llo_original>
// kernel: lift_down_pool.2
$region0: #{lift_down_pool.2}
  #allocation0 [shape = 'u32[]', space=smem, size = 0x4, offset = 0x4, fixed_abs, tag = 'smem constant byte address 0x4 - core index']
  #allocation1 [shape = 'u32[72,128]{1,0:T(1,128)}', space=vmem, size = 0x9000, scoped, tag = 'internal scratch']
  #allocation2 [shape = 'bf16[4,190]{1,0:T(4,128)(2,1)}', space=vmem, size = 0x800, scoped, tag = 'scratch operand']
  #allocation3 [shape = 'bf16[144,160]{1,0:T(8,128)(2,1)}', space=vmem, size = 0x12000, scoped, tag = 'scratch operand']
  %s0 = inlined_call_operand.vmem [shape: f32[2,1,4,190], index: 0, kind: input, shape index: {}]
  %s1 = inlined_call_operand.vmem [shape: f32[2,1,4,190], index: 1, kind: input, shape index: {}]
  %s2 = inlined_call_operand.vmem [shape: bf16[4,144], index: 2, kind: input, shape index: {}]
  %s3 = inlined_call_operand.vmem [shape: f32[4,1], index: 3, kind: input, shape index: {}]
  %s4 = inlined_call_operand.vmem [shape: bf16[4,4], index: 4, kind: input, shape index: {}]
  %s5 = inlined_call_operand.vmem [shape: f32[4,1], index: 5, kind: input, shape index: {}]
  %s6 = inlined_call_operand.vmem [shape: bf16[4,144], index: 6, kind: input, shape index: {}]
  %s7 = inlined_call_operand.vmem [shape: f32[4,1], index: 7, kind: input, shape index: {}]
  %s8 = inlined_call_operand.vmem [shape: bf16[4,4], index: 8, kind: input, shape index: {}]
  %s9 = inlined_call_operand.vmem [shape: f32[4,1], index: 9, kind: input, shape index: {}]
  %s10 = inlined_call_operand.vmem [shape: f32[2,4,160], index: 10, kind: output, shape index: {0}]
  %s11 = inlined_call_operand.vmem [shape: f32[2,4,160], index: 11, kind: output, shape index: {1}]
  %12 = xla_tuple %s10, %s11
  %s13 = sld [smem:[#allocation0]]
  $region81: #{lift_down_pool.2} parent=0
    _
  %s15 = ssub.s32 1, %s13
  %s16 = scalar_select 0, %s15, %s13
  loop: start=0, step=1, limit=4
  $region2: #{lift_down_pool.2} parent=0 // loop_pre_header
    _
  $region3: #{lift_down_pool.2} parent=0 // loop_header
    %s18 = sphi 0, %s22
    %p19 = scmp.ge.s32.totalorder %s18, 4
    %s25 = sphi 0, %s37
    %s26 = sphi 0, %s33
    %s27 = sphi 0, %s25
    %s28 = sphi 0, %s26
    %s29 = sphi 0, %s27
    %s30 = sphi 0, %s28
    %s42 = sphi 0, %s44
    %s45 = sphi 0, %s42
    %s46 = sphi 0, %s45
    %s62 = sphi 0, %s46
    %s70 = sphi 0, %s72
    %s73 = sphi 0, %s70
    %s74 = sphi 0, %s73
    %s90 = sphi 0, %s74
    %s94 = sphi 0, %s94
    %s96 = sphi 0, %s94
    %s97 = sphi 0, %s96
    %s111 = sphi 0, %s97
    %s115 = sphi 0, %s115
    %s117 = sphi 0, %s115
    %s118 = sphi 0, %s117
    %s132 = sphi 0, %s118
    %s136 = sphi 0, %s136
    %s138 = sphi 0, %s136
    %s139 = sphi 0, %s138
    %s153 = sphi 0, %s139
    %s157 = sphi 0, %s157
    %s159 = sphi 0, %s157
    %s160 = sphi 0, %s159
    %s174 = sphi 0, %s160
    %s178 = sphi 0, %s178
    %s180 = sphi 0, %s178
    %s181 = sphi 0, %s180
    %s195 = sphi 0, %s181
    %s199 = sphi 0, %s199
    %s201 = sphi 0, %s199
    %s202 = sphi 0, %s201
    %s216 = sphi 0, %s202
    %s220 = sphi 0, %s220
    %s222 = sphi 0, %s220
    %s223 = sphi 0, %s222
    %s237 = sphi 0, %s223
    %s241 = sphi 0, %s241
    %s243 = sphi 0, %s241
    %s244 = sphi 0, %s243
    %s258 = sphi 0, %s244
    %s266 = sphi 0, %s268
    %s269 = sphi 0, %s266
    %s270 = sphi 0, %s269
    %s286 = sphi 0, %s270
    %s294 = sphi 0, %s296
    %s297 = sphi 0, %s294
    %s298 = sphi 0, %s297
    %s314 = sphi 0, %s298
  $region4: #{lift_down_pool.2} parent=0 // loop_header_branch
    %21 = sbr.rel (%p19) target = $region8
  $region5: #{lift_down_pool.2} parent=0 // loop_body
    %s23 = ssub.s32 %s18, 1
    %s24 = ssub.s32 %s18, 2
    %s31 = sadd.s32 1, %s26
    %p32 = scmp.ge.s32.totalorder %s31, 1
    %s33 = scalar_select %p32, 0, %s31
    %s34 = sadd.s32 1, %s25
    %s35 = scalar_select %p32, %s34, %s25
    %p36 = scmp.ge.s32.totalorder %s35, 2
    %s37 = scalar_select %p36, 0, %s35
    %s38 = ssub.s32 %s25, %s37
    %s39 = ssub.s32 %s26, %s33
    %s40 = sor.u32 %s38, %s39
    %p41 = scmp.eq.s32.totalorder %s40, 0
    %s43 = sadd.s32 %s42, 1
    %s44 = scalar_select %p41, %s42, %s43
    %p47 = pneg %p41
    %p48 = scmp.eq.s32.totalorder %s18, 1
    %p49 = por %p47, %p48
    %p50 = scmp.ne.s32.totalorder %s42, %s45
    %p51 = scmp.eq.s32.totalorder %s18, 0
    %p52 = por %p50, %p51
    %p53 = scmp.ne.s32.totalorder %s42, %s45
    %p54 = scmp.eq.s32.totalorder %s23, 1
    %p55 = por %p53, %p54
    %p56 = scmp.ne.s32.totalorder %s45, %s46
    %p57 = scmp.eq.s32.totalorder %s23, 0
    %p58 = por %p56, %p57
    %p59 = scmp.ne.s32.totalorder %s45, %s46
    %p60 = scmp.eq.s32.totalorder %s24, 1
    %p61 = por %p59, %p60
    %p63 = scmp.ne.s32.totalorder %s46, %s62
    %p64 = scmp.eq.s32.totalorder %s24, 0
    %p65 = por %p63, %p64
    %s66 = ssub.s32 %s25, %s37
    %s67 = ssub.s32 %s26, %s33
    %s68 = sor.u32 %s66, %s67
    %p69 = scmp.eq.s32.totalorder %s68, 0
    %s71 = sadd.s32 %s70, 1
    %s72 = scalar_select %p69, %s70, %s71
    %p75 = pneg %p69
    %p76 = scmp.eq.s32.totalorder %s18, 1
    %p77 = por %p75, %p76
    %p78 = scmp.ne.s32.totalorder %s70, %s73
    %p79 = scmp.eq.s32.totalorder %s18, 0
    %p80 = por %p78, %p79
    %p81 = scmp.ne.s32.totalorder %s70, %s73
    %p82 = scmp.eq.s32.totalorder %s23, 1
    %p83 = por %p81, %p82
    %p84 = scmp.ne.s32.totalorder %s73, %s74
    %p85 = scmp.eq.s32.totalorder %s23, 0
    %p86 = por %p84, %p85
    %p87 = scmp.ne.s32.totalorder %s73, %s74
    %p88 = scmp.eq.s32.totalorder %s24, 1
    %p89 = por %p87, %p88
    %p91 = scmp.ne.s32.totalorder %s74, %s90
    %p92 = scmp.eq.s32.totalorder %s24, 0
    %p93 = por %p91, %p92
    %s95 = sadd.s32 %s94, 1
    %p98 = scmp.eq.s32.totalorder %s18, 1
    %p99 = scmp.ne.s32.totalorder %s94, %s96
    %p100 = scmp.eq.s32.totalorder %s18, 0
    %p101 = por %p99, %p100
    %p102 = scmp.ne.s32.totalorder %s94, %s96
    %p103 = scmp.eq.s32.totalorder %s23, 1
    %p104 = por %p102, %p103
    %p105 = scmp.ne.s32.totalorder %s96, %s97
    %p106 = scmp.eq.s32.totalorder %s23, 0
    %p107 = por %p105, %p106
    %p108 = scmp.ne.s32.totalorder %s96, %s97
    %p109 = scmp.eq.s32.totalorder %s24, 1
    %p110 = por %p108, %p109
    %p112 = scmp.ne.s32.totalorder %s97, %s111
    %p113 = scmp.eq.s32.totalorder %s24, 0
    %p114 = por %p112, %p113
    %s116 = sadd.s32 %s115, 1
    %p119 = scmp.eq.s32.totalorder %s18, 1
    %p120 = scmp.ne.s32.totalorder %s115, %s117
    %p121 = scmp.eq.s32.totalorder %s18, 0
    %p122 = por %p120, %p121
    %p123 = scmp.ne.s32.totalorder %s115, %s117
    %p124 = scmp.eq.s32.totalorder %s23, 1
    %p125 = por %p123, %p124
    %p126 = scmp.ne.s32.totalorder %s117, %s118
    %p127 = scmp.eq.s32.totalorder %s23, 0
    %p128 = por %p126, %p127
    %p129 = scmp.ne.s32.totalorder %s117, %s118
    %p130 = scmp.eq.s32.totalorder %s24, 1
    %p131 = por %p129, %p130
    %p133 = scmp.ne.s32.totalorder %s118, %s132
    %p134 = scmp.eq.s32.totalorder %s24, 0
    %p135 = por %p133, %p134
    %s137 = sadd.s32 %s136, 1
    %p140 = scmp.eq.s32.totalorder %s18, 1
    %p141 = scmp.ne.s32.totalorder %s136, %s138
    %p142 = scmp.eq.s32.totalorder %s18, 0
    %p143 = por %p141, %p142
    %p144 = scmp.ne.s32.totalorder %s136, %s138
    %p145 = scmp.eq.s32.totalorder %s23, 1
    %p146 = por %p144, %p145
    %p147 = scmp.ne.s32.totalorder %s138, %s139
    %p148 = scmp.eq.s32.totalorder %s23, 0
    %p149 = por %p147, %p148
    %p150 = scmp.ne.s32.totalorder %s138, %s139
    %p151 = scmp.eq.s32.totalorder %s24, 1
    %p152 = por %p150, %p151
    %p154 = scmp.ne.s32.totalorder %s139, %s153
    %p155 = scmp.eq.s32.totalorder %s24, 0
    %p156 = por %p154, %p155
    %s158 = sadd.s32 %s157, 1
    %p161 = scmp.eq.s32.totalorder %s18, 1
    %p162 = scmp.ne.s32.totalorder %s157, %s159
    %p163 = scmp.eq.s32.totalorder %s18, 0
    %p164 = por %p162, %p163
    %p165 = scmp.ne.s32.totalorder %s157, %s159
    %p166 = scmp.eq.s32.totalorder %s23, 1
    %p167 = por %p165, %p166
    %p168 = scmp.ne.s32.totalorder %s159, %s160
    %p169 = scmp.eq.s32.totalorder %s23, 0
    %p170 = por %p168, %p169
    %p171 = scmp.ne.s32.totalorder %s159, %s160
    %p172 = scmp.eq.s32.totalorder %s24, 1
    %p173 = por %p171, %p172
    %p175 = scmp.ne.s32.totalorder %s160, %s174
    %p176 = scmp.eq.s32.totalorder %s24, 0
    %p177 = por %p175, %p176
    %s179 = sadd.s32 %s178, 1
    %p182 = scmp.eq.s32.totalorder %s18, 1
    %p183 = scmp.ne.s32.totalorder %s178, %s180
    %p184 = scmp.eq.s32.totalorder %s18, 0
    %p185 = por %p183, %p184
    %p186 = scmp.ne.s32.totalorder %s178, %s180
    %p187 = scmp.eq.s32.totalorder %s23, 1
    %p188 = por %p186, %p187
    %p189 = scmp.ne.s32.totalorder %s180, %s181
    %p190 = scmp.eq.s32.totalorder %s23, 0
    %p191 = por %p189, %p190
    %p192 = scmp.ne.s32.totalorder %s180, %s181
    %p193 = scmp.eq.s32.totalorder %s24, 1
    %p194 = por %p192, %p193
    %p196 = scmp.ne.s32.totalorder %s181, %s195
    %p197 = scmp.eq.s32.totalorder %s24, 0
    %p198 = por %p196, %p197
    %s200 = sadd.s32 %s199, 1
    %p203 = scmp.eq.s32.totalorder %s18, 1
    %p204 = scmp.ne.s32.totalorder %s199, %s201
    %p205 = scmp.eq.s32.totalorder %s18, 0
    %p206 = por %p204, %p205
    %p207 = scmp.ne.s32.totalorder %s199, %s201
    %p208 = scmp.eq.s32.totalorder %s23, 1
    %p209 = por %p207, %p208
    %p210 = scmp.ne.s32.totalorder %s201, %s202
    %p211 = scmp.eq.s32.totalorder %s23, 0
    %p212 = por %p210, %p211
    %p213 = scmp.ne.s32.totalorder %s201, %s202
    %p214 = scmp.eq.s32.totalorder %s24, 1
    %p215 = por %p213, %p214
    %p217 = scmp.ne.s32.totalorder %s202, %s216
    %p218 = scmp.eq.s32.totalorder %s24, 0
    %p219 = por %p217, %p218
    %s221 = sadd.s32 %s220, 1
    %p224 = scmp.eq.s32.totalorder %s18, 1
    %p225 = scmp.ne.s32.totalorder %s220, %s222
    %p226 = scmp.eq.s32.totalorder %s18, 0
    %p227 = por %p225, %p226
    %p228 = scmp.ne.s32.totalorder %s220, %s222
    %p229 = scmp.eq.s32.totalorder %s23, 1
    %p230 = por %p228, %p229
    %p231 = scmp.ne.s32.totalorder %s222, %s223
    %p232 = scmp.eq.s32.totalorder %s23, 0
    %p233 = por %p231, %p232
    %p234 = scmp.ne.s32.totalorder %s222, %s223
    %p235 = scmp.eq.s32.totalorder %s24, 1
    %p236 = por %p234, %p235
    %p238 = scmp.ne.s32.totalorder %s223, %s237
    %p239 = scmp.eq.s32.totalorder %s24, 0
    %p240 = por %p238, %p239
    %s242 = sadd.s32 %s241, 1
    %p245 = scmp.eq.s32.totalorder %s18, 1
    %p246 = scmp.ne.s32.totalorder %s241, %s243
    %p247 = scmp.eq.s32.totalorder %s18, 0
    %p248 = por %p246, %p247
    %p249 = scmp.ne.s32.totalorder %s241, %s243
    %p250 = scmp.eq.s32.totalorder %s23, 1
    %p251 = por %p249, %p250
    %p252 = scmp.ne.s32.totalorder %s243, %s244
    %p253 = scmp.eq.s32.totalorder %s23, 0
    %p254 = por %p252, %p253
    %p255 = scmp.ne.s32.totalorder %s243, %s244
    %p256 = scmp.eq.s32.totalorder %s24, 1
    %p257 = por %p255, %p256
    %p259 = scmp.ne.s32.totalorder %s244, %s258
    %p260 = scmp.eq.s32.totalorder %s24, 0
    %p261 = por %p259, %p260
    %s262 = ssub.s32 %s25, %s37
    %s263 = ssub.s32 %s26, %s33
    %s264 = sor.u32 %s262, %s263
    %p265 = scmp.eq.s32.totalorder %s264, 0
    %s267 = sadd.s32 %s266, 1
    %s268 = scalar_select %p265, %s266, %s267
    %p271 = pneg %p265
    %p272 = scmp.eq.s32.totalorder %s18, 1
    %p273 = por %p271, %p272
    %p274 = scmp.ne.s32.totalorder %s266, %s269
    %p275 = scmp.eq.s32.totalorder %s18, 0
    %p276 = por %p274, %p275
    %p277 = scmp.ne.s32.totalorder %s266, %s269
    %p278 = scmp.eq.s32.totalorder %s23, 1
    %p279 = por %p277, %p278
    %p280 = scmp.ne.s32.totalorder %s269, %s270
    %p281 = scmp.eq.s32.totalorder %s23, 0
    %p282 = por %p280, %p281
    %p283 = scmp.ne.s32.totalorder %s269, %s270
    %p284 = scmp.eq.s32.totalorder %s24, 1
    %p285 = por %p283, %p284
    %p287 = scmp.ne.s32.totalorder %s270, %s286
    %p288 = scmp.eq.s32.totalorder %s24, 0
    %p289 = por %p287, %p288
    %s290 = ssub.s32 %s25, %s37
    %s291 = ssub.s32 %s26, %s33
    %s292 = sor.u32 %s290, %s291
    %p293 = scmp.eq.s32.totalorder %s292, 0
    %s295 = sadd.s32 %s294, 1
    %s296 = scalar_select %p293, %s294, %s295
    %p299 = pneg %p293
    %p300 = scmp.eq.s32.totalorder %s18, 1
    %p301 = por %p299, %p300
    %p302 = scmp.ne.s32.totalorder %s294, %s297
    %p303 = scmp.eq.s32.totalorder %s18, 0
    %p304 = por %p302, %p303
    %p305 = scmp.ne.s32.totalorder %s294, %s297
    %p306 = scmp.eq.s32.totalorder %s23, 1
    %p307 = por %p305, %p306
    %p308 = scmp.ne.s32.totalorder %s297, %s298
    %p309 = scmp.eq.s32.totalorder %s23, 0
    %p310 = por %p308, %p309
    %p311 = scmp.ne.s32.totalorder %s297, %s298
    %p312 = scmp.eq.s32.totalorder %s24, 1
    %p313 = por %p311, %p312
    %p315 = scmp.ne.s32.totalorder %s298, %s314
    %p316 = scmp.eq.s32.totalorder %s24, 0
    %p317 = por %p315, %p316
    %p318 = scmp.le.s32.totalorder 1, %s18
    %p319 = scmp.lt.s32.totalorder %s18, 3
    %p320 = pnand %p318, %p319
    %p321 = pneg %p320
    // Predicated region
    $region9: #{lift_down_pool.2} parent=5 // pred_check
      _
    $region10: #{lift_down_pool.2} parent=5 // pred_check_branch
      %323 = sbr.rel (%p320) target = $region12
    $region11: #{lift_down_pool.2} parent=5 // pred_region
      %s324 = ssub.s32 %s18, 1
      // Predicated region
      $region13: #{lift_down_pool.2} parent=11 // pred_check
        %p325 = pneg %p107
      $region14: #{lift_down_pool.2} parent=11 // pred_check_branch
        %327 = sbr.rel (%p325) target = $region16
      $region15: #{lift_down_pool.2} parent=11 // pred_region
        _
      $region16: #{lift_down_pool.2} parent=11 // pred_fallthru
        _
      // Predicated region
      $region17: #{lift_down_pool.2} parent=11 // pred_check
        %p328 = pneg %p128
      $region18: #{lift_down_pool.2} parent=11 // pred_check_branch
        %330 = sbr.rel (%p328) target = $region20
      $region19: #{lift_down_pool.2} parent=11 // pred_region
        _
      $region20: #{lift_down_pool.2} parent=11 // pred_fallthru
        _
      // Predicated region
      $region21: #{lift_down_pool.2} parent=11 // pred_check
        %p331 = pneg %p149
      $region22: #{lift_down_pool.2} parent=11 // pred_check_branch
        %333 = sbr.rel (%p331) target = $region24
      $region23: #{lift_down_pool.2} parent=11 // pred_region
        _
      $region24: #{lift_down_pool.2} parent=11 // pred_fallthru
        _
      // Predicated region
      $region25: #{lift_down_pool.2} parent=11 // pred_check
        %p334 = pneg %p170
      $region26: #{lift_down_pool.2} parent=11 // pred_check_branch
        %336 = sbr.rel (%p334) target = $region28
      $region27: #{lift_down_pool.2} parent=11 // pred_region
        _
      $region28: #{lift_down_pool.2} parent=11 // pred_fallthru
        _
      // Predicated region
      $region29: #{lift_down_pool.2} parent=11 // pred_check
        %p337 = pneg %p191
      $region30: #{lift_down_pool.2} parent=11 // pred_check_branch
        %339 = sbr.rel (%p337) target = $region32
      $region31: #{lift_down_pool.2} parent=11 // pred_region
        _
      $region32: #{lift_down_pool.2} parent=11 // pred_fallthru
        _
      // Predicated region
      $region33: #{lift_down_pool.2} parent=11 // pred_check
        %p340 = pneg %p212
      $region34: #{lift_down_pool.2} parent=11 // pred_check_branch
        %342 = sbr.rel (%p340) target = $region36
      $region35: #{lift_down_pool.2} parent=11 // pred_region
        _
      $region36: #{lift_down_pool.2} parent=11 // pred_fallthru
        _
      // Predicated region
      $region37: #{lift_down_pool.2} parent=11 // pred_check
        %p343 = pneg %p233
      $region38: #{lift_down_pool.2} parent=11 // pred_check_branch
        %345 = sbr.rel (%p343) target = $region40
      $region39: #{lift_down_pool.2} parent=11 // pred_region
        _
      $region40: #{lift_down_pool.2} parent=11 // pred_fallthru
        _
      // Predicated region
      $region41: #{lift_down_pool.2} parent=11 // pred_check
        %p346 = pneg %p254
      $region42: #{lift_down_pool.2} parent=11 // pred_check_branch
        %348 = sbr.rel (%p346) target = $region44
      $region43: #{lift_down_pool.2} parent=11 // pred_region
        _
      $region44: #{lift_down_pool.2} parent=11 // pred_fallthru
        _
    $region12: #{lift_down_pool.2} parent=5 // pred_fallthru
      _
    %p349 = scmp.lt.s32.totalorder %s18, 2
    // Predicated region
    $region45: #{lift_down_pool.2} parent=5 // pred_check
      %p350 = pneg %p349
    $region46: #{lift_down_pool.2} parent=5 // pred_check_branch
      %352 = sbr.rel (%p350) target = $region48
    $region47: #{lift_down_pool.2} parent=5 // pred_region
      // Predicated region
      $region49: #{lift_down_pool.2} parent=47 // pred_check
        %p353 = pneg %p52
      $region50: #{lift_down_pool.2} parent=47 // pred_check_branch
        %355 = sbr.rel (%p353) target = $region52
      $region51: #{lift_down_pool.2} parent=47 // pred_region
        %p356 = scmp.lt.s32.totalorder %s25, 1
        %s357 = scalar_select %p356, %s25, 1
        %p358 = scmp.lt.s32.totalorder %s26, 0
        %s359 = scalar_select %p358, %s26, 0
        %s360 = smul.addr %s359, 2
        %s361 = smul.addr %s357, 2
        %s362 = sadd.s32 %s360, %s361
        %s363 = smul.addr %s362, 4
        %s364 = scalar_lea.vmem %s0, %s363
      $region52: #{lift_down_pool.2} parent=47 // pred_fallthru
        _
      // Predicated region
      $region53: #{lift_down_pool.2} parent=47 // pred_check
        %p365 = pneg %p80
      $region54: #{lift_down_pool.2} parent=47 // pred_check_branch
        %367 = sbr.rel (%p365) target = $region56
      $region55: #{lift_down_pool.2} parent=47 // pred_region
        %p368 = scmp.lt.s32.totalorder %s25, 1
        %s369 = scalar_select %p368, %s25, 1
        %p370 = scmp.lt.s32.totalorder %s26, 0
        %s371 = scalar_select %p370, %s26, 0
        %s372 = smul.addr %s371, 2
        %s373 = smul.addr %s369, 2
        %s374 = sadd.s32 %s372, %s373
        %s375 = smul.addr %s374, 4
        %s376 = scalar_lea.vmem %s1, %s375
      $region56: #{lift_down_pool.2} parent=47 // pred_fallthru
        _
    $region48: #{lift_down_pool.2} parent=5 // pred_fallthru
      _
    %p377 = scmp.le.s32.totalorder 1, %s18
    %p378 = scmp.lt.s32.totalorder %s18, 3
    %p379 = pnand %p377, %p378
    %p380 = pneg %p379
    // Predicated region
    $region57: #{lift_down_pool.2} parent=5 // pred_check
      _
    $region58: #{lift_down_pool.2} parent=5 // pred_check_branch
      %382 = sbr.rel (%p379) target = $region60
    $region59: #{lift_down_pool.2} parent=5 // pred_region
      %s383 = ssub.s32 %s18, 1
      %p384 = scmp.lt.s32.totalorder %s27, 1
      %s385 = scalar_select %p384, %s27, 1
      %p386 = scmp.lt.s32.totalorder %s28, 0
      %s387 = scalar_select %p386, %s28, 0
      %s388 = smul.addr %s387, 2
      %s389 = smul.addr %s385, 2
      %s390 = sadd.s32 %s388, %s389
      %s391 = smul.addr %s390, 4
      %s392 = scalar_lea.vmem %s0, %s391
      %p393 = pneg %p58
      %p394 = pneg %p55
      %p395 = scmp.lt.s32.totalorder %s27, 1
      %s396 = scalar_select %p395, %s27, 1
      %p397 = scmp.lt.s32.totalorder %s28, 0
      %s398 = scalar_select %p397, %s28, 0
      %s399 = smul.addr %s398, 2
      %s400 = smul.addr %s396, 2
      %s401 = sadd.s32 %s399, %s400
      %s402 = smul.addr %s401, 4
      %s403 = scalar_lea.vmem %s1, %s402
      %p404 = pneg %p86
      %p405 = pneg %p83
      %p406 = pneg %p107
      %p407 = pneg %p104
      %p408 = pneg %p128
      %p409 = pneg %p125
      %p410 = pneg %p149
      %p411 = pneg %p146
      %p412 = pneg %p170
      %p413 = pneg %p167
      %p414 = pneg %p191
      %p415 = pneg %p188
      %p416 = pneg %p212
      %p417 = pneg %p209
      %p418 = pneg %p233
      %p419 = pneg %p230
      %p420 = pneg %p254
      %p421 = pneg %p251
      %p422 = pneg %p282
      %p423 = pneg %p279
      %s424 = smul.u32 2, %s28
      %p425 = scmp.lt.s32.totalorder %s27, 1
      %s426 = scalar_select %p425, %s27, 1
      %p427 = scmp.lt.s32.totalorder %s424, 1
      %s428 = scalar_select %p427, %s424, 1
      %s429 = smul.addr %s426, 2
      %s430 = sadd.s32 %s428, %s429
      %s431 = smul.addr %s430, 4
      %s432 = scalar_lea.vmem %s10, %s431
      %p433 = pneg %p310
      %p434 = pneg %p307
      %s435 = smul.u32 2, %s28
      %p436 = scmp.lt.s32.totalorder %s27, 1
      %s437 = scalar_select %p436, %s27, 1
      %p438 = scmp.lt.s32.totalorder %s435, 1
      %s439 = scalar_select %p438, %s435, 1
      %s440 = smul.addr %s437, 2
      %s441 = sadd.s32 %s439, %s440
      %s442 = smul.addr %s441, 4
      %s443 = scalar_lea.vmem %s11, %s442
      %p444 = scmp.lt.s32.totalorder %s27, 1
      %s445 = scalar_select %p444, %s27, 1
      %p446 = scmp.lt.s32.totalorder %s28, 0
      %s447 = scalar_select %p446, %s28, 0
      %s448 = smul.addr %s447, 2
      %s449 = smul.addr %s445, 2
      %s450 = sadd.s32 %s448, %s449
      %s451 = smul.addr %s450, 4
      %s452 = scalar_lea.vmem %s0, %s451
      %p453 = scmp.lt.s32.totalorder %s27, 1
      %s454 = scalar_select %p453, %s27, 1
      %p455 = scmp.lt.s32.totalorder %s28, 0
      %s456 = scalar_select %p455, %s28, 0
      %s457 = smul.addr %s456, 2
      %s458 = smul.addr %s454, 2
      %s459 = sadd.s32 %s457, %s458
      %s460 = smul.addr %s459, 4
      %s461 = scalar_lea.vmem %s1, %s460
      %s462 = smul.u32 2, %s28
      %p463 = scmp.lt.s32.totalorder %s27, 1
      %s464 = scalar_select %p463, %s27, 1
      %p465 = scmp.lt.s32.totalorder %s462, 1
      %s466 = scalar_select %p465, %s462, 1
      %s467 = smul.addr %s464, 2
      %s468 = sadd.s32 %s466, %s467
      %s469 = smul.addr %s468, 4
      %s470 = scalar_lea.vmem %s10, %s469
      %s471 = smul.u32 2, %s28
      %s472 = smul.u32 2, %s28
      %p473 = scmp.lt.s32.totalorder %s27, 1
      %s474 = scalar_select %p473, %s27, 1
      %p475 = scmp.lt.s32.totalorder %s472, 1
      %s476 = scalar_select %p475, %s472, 1
      %s477 = smul.addr %s474, 2
      %s478 = sadd.s32 %s476, %s477
      %s479 = smul.addr %s478, 4
      %s480 = scalar_lea.vmem %s11, %s479
      %s481 = smul.u32 2, %s28
      %vm483 = vcmask 1043456
      %vm484 = vcmask 261124
      %vm485 = vmor %vm484, %vm483
      %486 = vst.msk [vmem:[#allocation3] sm:$0xff] %vm485, 0
      %487 = vst.msk [vmem:[#allocation3 + $0x8] sm:$0xff] %vm485, 0
      %488 = vst.msk [vmem:[#allocation3 + $0x10] sm:$0xff] %vm485, 0
      %489 = vst.msk [vmem:[#allocation3 + $0x18] sm:$0xff] %vm485, 0
      %490 = vst.msk [vmem:[#allocation3 + $0x20] sm:$0xff] %vm485, 0
      %491 = vst.msk [vmem:[#allocation3 + $0x28] sm:$0xff] %vm485, 0
      %492 = vst.msk [vmem:[#allocation3 + $0x30] sm:$0xff] %vm485, 0
      %493 = vst.msk [vmem:[#allocation3 + $0x38] sm:$0xff] %vm485, 0
      %494 = vst.msk [vmem:[#allocation3 + $0x40] sm:$0xff] %vm485, 0
      %495 = vst.msk [vmem:[#allocation3 + $0x48] sm:$0xff] %vm485, 0
      %496 = vst.msk [vmem:[#allocation3 + $0x50] sm:$0xff] %vm485, 0
      %497 = vst.msk [vmem:[#allocation3 + $0x58] sm:$0xff] %vm485, 0
      %498 = vst.msk [vmem:[#allocation3 + $0x60] sm:$0xff] %vm485, 0
      %499 = vst.msk [vmem:[#allocation3 + $0x68] sm:$0xff] %vm485, 0
      %500 = vst.msk [vmem:[#allocation3 + $0x70] sm:$0xff] %vm485, 0
      %501 = vst.msk [vmem:[#allocation3 + $0x78] sm:$0xff] %vm485, 0
      %502 = vst.msk [vmem:[#allocation3 + $0x80] sm:$0xff] %vm485, 0
      %503 = vst.msk [vmem:[#allocation3 + $0x88] sm:$0xff] %vm485, 0
      %v504 = vld [vmem:[%s452] sm:$0xff]
      %v505 = vld [vmem:[%s461] sm:$0xff]
      %507 = vst [vmem:[#allocation1] ss:$2 sm:$0xff] %v504
      %v508 = vld.sshfl [vmem:[#allocation1] sm:$0xff pattern:$0x75316420]
      %v509 = vld.sshfl [vmem:[#allocation1 + $0x8] sm:$0xff pattern:$0x75316420]
      %v512 = vpack.c.bf16 %v509, %v508
      %v514 = vrot.slane %v512, 2
      %vm515 = vcmask 1041408
      %v518 = vsel %vm515, %v512, %v514
      %vm520 = vcmask 502786
      %vm521 = vmor %vm520, %vm515
      %522 = vst.msk [vmem:[#allocation2] sm:$0xf] %vm521, %v518
      %v523 = vld [vmem:[#allocation2] sm:$0xf]
      %525 = vst [vmem:[#allocation1] ss:$2 sm:$0xff] %v523
      %v526 = vld.sshfl [vmem:[#allocation1] sm:$0xff pattern:$0x75643120]
      %vm528 = vcmask 259076
      %vm529 = vmor %vm528, %vm515
      %530 = vst.msk [vmem:[#allocation3] sm:$0x33] %vm529, %v526
      %v531 = vld [vmem:[#allocation2] sm:$0xf]
      %533 = vst [vmem:[#allocation1] ss:$2 sm:$0xff] %v531
      %v534 = vld.sshfl [vmem:[#allocation1] sm:$0xff pattern:$0x75643120]
      %536 = vrot.lane.b32.xlu0 %v534, 127
      %v537 = vpop.permute.xlu0 %536
      %v538 = vrot.slane %v537, 4
      %vm539 = vcmask 1039360
      %v540 = vsel %vm539, %v537, %v538
      %542 = vst.msk [vmem:[#allocation3 + $0x10] sm:$0x33] %vm529, %v540
      %v543 = vld [vmem:[#allocation2] sm:$0xf]
      %545 = vst [vmem:[#allocation1] ss:$2 sm:$0xff] %v543
      %v546 = vld.sshfl [vmem:[#allocation1] sm:$0xff pattern:$0x75643120]
      %548 = vrot.lane.b32.xlu0 %v546, 126
      %v549 = vpop.permute.xlu0 %548
      %v550 = vrot.slane %v549, 4
      %vm551 = vcmask 1031168
      %v552 = vsel %vm551, %v549, %v550
      %554 = vst.msk [vmem:[#allocation3 + $0x20] sm:$0x33] %vm529, %v552
      %v555 = vld [vmem:[#allocation2] sm:$0xf]
      %557 = vst [vmem:[#allocation1] ss:$2 sm:$0xff] %v555
      %v558 = vld.sshfl [vmem:[#allocation1] sm:$0xff pattern:$0x75643120]
      %560 = vrot.lane.b32.xlu0 %v558, 118
      %v561 = vpop.permute.xlu0 %560
      %v562 = vrot.slane %v561, 4
      %vm563 = vcmask 965632
      %v564 = vsel %vm563, %v561, %v562
      %566 = vst.msk [vmem:[#allocation3 + $0x30] sm:$0x33] %vm529, %v564
      %v567 = vld [vmem:[#allocation2] sm:$0xf]
      %569 = vst [vmem:[#allocation1] ss:$2 sm:$0xff] %v567
      %v570 = vld.sshfl [vmem:[#allocation1] sm:$0xff pattern:$0x75643120]
      %572 = vrot.lane.b32.xlu0 %v570, 117
      %v573 = vpop.permute.xlu0 %572
      %v574 = vrot.slane %v573, 4
      %vm575 = vcmask 957440
      %v576 = vsel %vm575, %v573, %v574
      %578 = vst.msk [vmem:[#allocation3 + $0x40] sm:$0x33] %vm529, %v576
      %v579 = vld [vmem:[#allocation2] sm:$0xf]
      %581 = vst [vmem:[#allocation1] ss:$2 sm:$0xff] %v579
      %v582 = vld.sshfl [vmem:[#allocation1] sm:$0xff pattern:$0x75643120]
      %584 = vrot.lane.b32.xlu0 %v582, 116
      %v585 = vpop.permute.xlu0 %584
      %v586 = vrot.slane %v585, 4
      %vm587 = vcmask 949248
      %v588 = vsel %vm587, %v585, %v586
      %590 = vst.msk [vmem:[#allocation3 + $0x50] sm:$0x33] %vm529, %v588
      %v591 = vld [vmem:[#allocation2] sm:$0xf]
      %593 = vst [vmem:[#allocation1] ss:$2 sm:$0xff] %v591
      %v594 = vld.sshfl [vmem:[#allocation1] sm:$0xff pattern:$0x75643120]
      %596 = vrot.lane.b32.xlu0 %v594, 108
      %v597 = vpop.permute.xlu0 %596
      %v598 = vrot.slane %v597, 4
      %vm599 = vcmask 883712
      %v600 = vsel %vm599, %v597, %v598
      %602 = vst.msk [vmem:[#allocation3 + $0x60] sm:$0x33] %vm529, %v600
      %v603 = vld [vmem:[#allocation2] sm:$0xf]
      %605 = vst [vmem:[#allocation1] ss:$2 sm:$0xff] %v603
      %v606 = vld.sshfl [vmem:[#allocation1] sm:$0xff pattern:$0x75643120]
      %608 = vrot.lane.b32.xlu0 %v606, 107
      %v609 = vpop.permute.xlu0 %608
      %v610 = vrot.slane %v609, 4
      %vm611 = vcmask 875520
      %v612 = vsel %vm611, %v609, %v610
      %614 = vst.msk [vmem:[#allocation3 + $0x70] sm:$0x33] %vm529, %v612
      %v615 = vld [vmem:[#allocation2] sm:$0xf]
      %617 = vst [vmem:[#allocation1] ss:$2 sm:$0xff] %v615
      %v618 = vld.sshfl [vmem:[#allocation1] sm:$0xff pattern:$0x75643120]
      %620 = vrot.lane.b32.xlu0 %v618, 106
      %v621 = vpop.permute.xlu0 %620
      %v622 = vrot.slane %v621, 4
      %vm623 = vcmask 867328
      %v624 = vsel %vm623, %v621, %v622
      %626 = vst.msk [vmem:[#allocation3 + $0x80] sm:$0x33] %vm529, %v624
      %v627 = vld [vmem:[%s2] sm:$0xf]
      %v628 = vld [vmem:[#allocation3] sm:$0xff]
      %v629 = vld [vmem:[#allocation3 + $0x8] sm:$0xff]
      %v630 = vld [vmem:[#allocation3 + $0x10] sm:$0xff]
      %v631 = vld [vmem:[#allocation3 + $0x18] sm:$0xff]
      %v632 = vld [vmem:[#allocation3 + $0x20] sm:$0xff]
      %v633 = vld [vmem:[#allocation3 + $0x28] sm:$0xff]
      %v634 = vld [vmem:[#allocation3 + $0x30] sm:$0xff]
      %v635 = vld [vmem:[#allocation3 + $0x38] sm:$0xff]
      %v636 = vld [vmem:[#allocation3 + $0x40] sm:$0xff]
      %v637 = vld [vmem:[#allocation3 + $0x48] sm:$0xff]
      %v638 = vld [vmem:[#allocation3 + $0x50] sm:$0xff]
      %v639 = vld [vmem:[#allocation3 + $0x58] sm:$0xff]
      %v640 = vld [vmem:[#allocation3 + $0x60] sm:$0xff]
      %v641 = vld [vmem:[#allocation3 + $0x68] sm:$0xff]
      %v642 = vld [vmem:[#allocation3 + $0x70] sm:$0xff]
      %v643 = vld [vmem:[#allocation3 + $0x78] sm:$0xff]
      %v644 = vld [vmem:[#allocation3 + $0x80] sm:$0xff]
      %v645 = vld [vmem:[#allocation3 + $0x88] sm:$0xff]
      %v646 = vld [vmem:[%s3] sm:$0xf]
      %648 = vset.pattern.permute.xlu0 0
      %649 = vperm.xlu0 %648, %v646
      %v650 = vpop.permute.xlu0 %649
      %653 = vst [vmem:[#allocation1] ss:$4 sm:$0xff] %v627
      %v654 = vld.sshfl [vmem:[#allocation1] sm:$0xff pattern:$0x73625140]
      %v655 = vld.sshfl [vmem:[#allocation1 + $0x8] sm:$0xff pattern:$0x73625140]
      %v675 = vunpack.c.l.b16 %v628
      %v676 = vunpack.c.h.b16 %v628
      %v677 = vunpack.c.l.b16 %v629
      %v678 = vunpack.c.h.b16 %v629
      %v679 = vunpack.c.l.b16 %v630
      %v680 = vunpack.c.h.b16 %v630
      %v681 = vunpack.c.l.b16 %v631
      %v682 = vunpack.c.h.b16 %v631
      %v683 = vunpack.c.l.b16 %v632
      %v684 = vunpack.c.h.b16 %v632
      %v685 = vunpack.c.l.b16 %v633
      %v686 = vunpack.c.h.b16 %v633
      %v687 = vunpack.c.l.b16 %v634
      %v688 = vunpack.c.h.b16 %v634
      %v689 = vunpack.c.l.b16 %v635
      %v690 = vunpack.c.h.b16 %v635
      %v691 = vunpack.c.l.b16 %v636
      %v692 = vunpack.c.h.b16 %v636
      %v693 = vunpack.c.l.b16 %v637
      %v694 = vunpack.c.h.b16 %v637
      %v695 = vunpack.c.l.b16 %v638
      %v696 = vunpack.c.h.b16 %v638
      %v697 = vunpack.c.l.b16 %v639
      %v698 = vunpack.c.h.b16 %v639
      %v699 = vunpack.c.l.b16 %v640
      %v700 = vunpack.c.h.b16 %v640
      %v701 = vunpack.c.l.b16 %v641
      %v702 = vunpack.c.h.b16 %v641
      %v703 = vunpack.c.l.b16 %v642
      %v704 = vunpack.c.h.b16 %v642
      %v705 = vunpack.c.l.b16 %v643
      %v706 = vunpack.c.h.b16 %v643
      %v707 = vunpack.c.l.b16 %v644
      %v708 = vunpack.c.h.b16 %v644
      %v709 = vunpack.c.l.b16 %v645
      %v710 = vunpack.c.h.b16 %v645
      %v711 = vpack.c.b16 %v677, %v675
      %v712 = vpack.c.b16 %v678, %v676
      %v713 = vpack.c.b16 %v681, %v679
      %v714 = vpack.c.b16 %v682, %v680
      %v715 = vpack.c.b16 %v685, %v683
      %v716 = vpack.c.b16 %v686, %v684
      %v717 = vpack.c.b16 %v689, %v687
      %v718 = vpack.c.b16 %v690, %v688
      %v719 = vpack.c.b16 %v693, %v691
      %v720 = vpack.c.b16 %v694, %v692
      %v721 = vpack.c.b16 %v697, %v695
      %v722 = vpack.c.b16 %v698, %v696
      %v723 = vpack.c.b16 %v701, %v699
      %v724 = vpack.c.b16 %v702, %v700
      %v725 = vpack.c.b16 %v705, %v703
      %v726 = vpack.c.b16 %v706, %v704
      %v727 = vpack.c.b16 %v709, %v707
      %v728 = vpack.c.b16 %v710, %v708
      %vm747 = vcmask 130048
      %v748 = vsel %vm747, %v655, 0
      %750 = vmatpush.bf16.msra.mxu0 %v725
      %751 = vmatpush.bf16.msra.mxu0 %v723
      %752 = vmatpush.bf16.msra.mxu0 %v721
      %753 = vmatpush.bf16.msra.mxu0 %v719
      %754 = vmatpush.bf16.msra.mxu0 %v717
      %755 = vmatpush.bf16.msra.mxu0 %v715
      %756 = vmatpush.bf16.msra.mxu0 %v713
      %757 = vmatpush.bf16.msra.mxu0 %v711
      %758 = vmatmul.bf16.gmra.mxu0 %v654
      %v759 = vpop.f32.mrf.mxu0
      %v760 = vadd.f32 %v650, %v759
      %v761 = vpop.f32.mrf.mxu0
      %762 = vdwg.mxu0
      %763 = vmatpush.bf16.msra.mxu0 0
      %764 = vmatpush.bf16.msra.mxu0 0
      %765 = vmatpush.bf16.msra.mxu0 0
      %766 = vmatpush.bf16.msra.mxu0 0
      %767 = vmatpush.bf16.msra.mxu0 0
      %768 = vmatpush.bf16.msra.mxu0 0
      %769 = vmatpush.bf16.msra.mxu0 0
      %770 = vmatpush.bf16.msra.mxu0 %v727
      %771 = vmatmul.bf16.gmra.mxu0 %v748
      %v772 = vpop.f32.mrf.mxu0
      %v773 = vadd.f32 %v760, %v772
      %v774 = vpop.f32.mrf.mxu0
      %775 = vdwg.mxu0
      %776 = vmatpush.bf16.msra.mxu0 %v726
      %777 = vmatpush.bf16.msra.mxu0 %v724
      %778 = vmatpush.bf16.msra.mxu0 %v722
      %779 = vmatpush.bf16.msra.mxu0 %v720
      %780 = vmatpush.bf16.msra.mxu0 %v718
      %781 = vmatpush.bf16.msra.mxu0 %v716
      %782 = vmatpush.bf16.msra.mxu0 %v714
      %783 = vmatpush.bf16.msra.mxu0 %v712
      %784 = vmatmul.bf16.gmra.mxu0 %v654
      %v785 = vpop.f32.mrf.mxu0
      %v786 = vadd.f32 %v650, %v785
      %v787 = vpop.f32.mrf.mxu0
      %788 = vdwg.mxu0
      %789 = vmatpush.bf16.msra.mxu0 0
      %790 = vmatpush.bf16.msra.mxu0 0
      %791 = vmatpush.bf16.msra.mxu0 0
      %792 = vmatpush.bf16.msra.mxu0 0
      %793 = vmatpush.bf16.msra.mxu0 0
      %794 = vmatpush.bf16.msra.mxu0 0
      %795 = vmatpush.bf16.msra.mxu0 0
      %796 = vmatpush.bf16.msra.mxu0 %v728
      %797 = vmatmul.bf16.gmra.mxu0 %v748
      %v798 = vpop.f32.mrf.mxu0
      %v799 = vadd.f32 %v786, %v798
      %v800 = vpop.f32.mrf.mxu0
      %801 = vdwg.mxu0
      %v802 = vmax.f32 %v773, 0.0
      %v803 = vmax.f32 %v799, 0.0
      %v804 = vld [vmem:[%s4] sm:$0x3]
      %v805 = vpack.c.bf16 %v802, %v802
      %v806 = vpack.c.bf16 %v803, %v803
      %v807 = vld [vmem:[%s5] sm:$0xf]
      %809 = vset.pattern.permute.xlu0 0
      %810 = vperm.xlu0 %809, %v807
      %v811 = vpop.permute.xlu0 %810
      %vm813 = vcmask 31744
      %v815 = vsel %vm813, %v804, 0
      %v818 = vsel %vm515, %v805, 0
      %v821 = vsel %vm515, %v806, 0
      %823 = vmatpush.bf16.msra.mxu0 0
      %824 = vmatpush.bf16.msra.mxu0 0
      %825 = vmatpush.bf16.msra.mxu0 0
      %826 = vmatpush.bf16.msra.mxu0 0
      %827 = vmatpush.bf16.msra.mxu0 0
      %828 = vmatpush.bf16.msra.mxu0 0
      %829 = vmatpush.bf16.msra.mxu0 0
      %830 = vmatpush.bf16.msra.mxu0 %v818
      %831 = vmatmul.bf16.gmra.mxu0 %v815
      %v832 = vpop.f32.mrf.mxu0
      %v833 = vadd.f32 %v811, %v832
      %v834 = vpop.f32.mrf.mxu0
      %835 = vdwg.mxu0
      %836 = vmatpush.bf16.msra.mxu0 0
      %837 = vmatpush.bf16.msra.mxu0 0
      %838 = vmatpush.bf16.msra.mxu0 0
      %839 = vmatpush.bf16.msra.mxu0 0
      %840 = vmatpush.bf16.msra.mxu0 0
      %841 = vmatpush.bf16.msra.mxu0 0
      %842 = vmatpush.bf16.msra.mxu0 0
      %843 = vmatpush.bf16.msra.mxu0 %v821
      %844 = vmatmul.bf16.gmra.mxu0 %v815
      %v845 = vpop.f32.mrf.mxu0
      %v846 = vadd.f32 %v811, %v845
      %v847 = vpop.f32.mrf.mxu0
      %848 = vdwg.mxu0
      %v849 = vtanh.pop %v833
      %v850 = vtanh.pop %v846
      %v853 = vrot.slane %v850, 4
      %v854 = vsel %vm483, %v849, %v853
      %855 = vrot.lane.b32.xlu0 %v854, 11
      %v856 = vpop.permute.xlu0 %855
      %v857 = vrot.slane %v856, 4
      %vm858 = vcmask 89088
      %v859 = vsel %vm858, %v857, %v856
      %v861 = vsub.f32 %v505, %v859
      %863 = vrot.lane.b32.xlu0 %v861, 117
      %v864 = vpop.permute.xlu0 %863
      %v865 = vrot.slane %v864, 4
      %vm866 = vcmask 957440
      %v867 = vsel %vm866, %v864, %v865
      %869 = vst.msk [vmem:[%s470] sm:$0xff] %vm485, %v867
      %v870 = vld [vmem:[%s461] sm:$0xff]
      %872 = vst [vmem:[#allocation1] ss:$2 sm:$0xff] %v870
      %v873 = vld.sshfl [vmem:[#allocation1] sm:$0xff pattern:$0x75316420]
      %v874 = vld.sshfl [vmem:[#allocation1 + $0x8] sm:$0xff pattern:$0x75316420]
      %v877 = vpack.c.bf16 %v874, %v873
      %v879 = vrot.slane %v877, 2
      %v882 = vsel %vm515, %v877, %v879
      %884 = vst.msk [vmem:[#allocation2] sm:$0xf] %vm521, %v882
      %v885 = vld [vmem:[#allocation2] sm:$0xf]
      %887 = vst [vmem:[#allocation1] ss:$2 sm:$0xff] %v885
      %v888 = vld.sshfl [vmem:[#allocation1] sm:$0xff pattern:$0x75643120]
      %890 = vst.msk [vmem:[#allocation3] sm:$0x33] %vm529, %v888
      %v891 = vld [vmem:[#allocation2] sm:$0xf]
      %893 = vst [vmem:[#allocation1] ss:$2 sm:$0xff] %v891
      %v894 = vld.sshfl [vmem:[#allocation1] sm:$0xff pattern:$0x75643120]
      %896 = vrot.lane.b32.xlu0 %v894, 127
      %v897 = vpop.permute.xlu0 %896
      %v898 = vrot.slane %v897, 4
      %v899 = vsel %vm539, %v897, %v898
      %901 = vst.msk [vmem:[#allocation3 + $0x10] sm:$0x33] %vm529, %v899
      %v902 = vld [vmem:[#allocation2] sm:$0xf]
      %904 = vst [vmem:[#allocation1] ss:$2 sm:$0xff] %v902
      %v905 = vld.sshfl [vmem:[#allocation1] sm:$0xff pattern:$0x75643120]
      %907 = vrot.lane.b32.xlu0 %v905, 126
      %v908 = vpop.permute.xlu0 %907
      %v909 = vrot.slane %v908, 4
      %v910 = vsel %vm551, %v908, %v909
      %912 = vst.msk [vmem:[#allocation3 + $0x20] sm:$0x33] %vm529, %v910
      %v913 = vld [vmem:[#allocation2] sm:$0xf]
      %915 = vst [vmem:[#allocation1] ss:$2 sm:$0xff] %v913
      %v916 = vld.sshfl [vmem:[#allocation1] sm:$0xff pattern:$0x75643120]
      %918 = vrot.lane.b32.xlu0 %v916, 118
      %v919 = vpop.permute.xlu0 %918
      %v920 = vrot.slane %v919, 4
      %v921 = vsel %vm563, %v919, %v920
      %923 = vst.msk [vmem:[#allocation3 + $0x30] sm:$0x33] %vm529, %v921
      %v924 = vld [vmem:[#allocation2] sm:$0xf]
      %926 = vst [vmem:[#allocation1] ss:$2 sm:$0xff] %v924
      %v927 = vld.sshfl [vmem:[#allocation1] sm:$0xff pattern:$0x75643120]
      %929 = vrot.lane.b32.xlu0 %v927, 117
      %v930 = vpop.permute.xlu0 %929
      %v931 = vrot.slane %v930, 4
      %v932 = vsel %vm575, %v930, %v931
      %934 = vst.msk [vmem:[#allocation3 + $0x40] sm:$0x33] %vm529, %v932
      %v935 = vld [vmem:[#allocation2] sm:$0xf]
      %937 = vst [vmem:[#allocation1] ss:$2 sm:$0xff] %v935
      %v938 = vld.sshfl [vmem:[#allocation1] sm:$0xff pattern:$0x75643120]
      %940 = vrot.lane.b32.xlu0 %v938, 116
      %v941 = vpop.permute.xlu0 %940
      %v942 = vrot.slane %v941, 4
      %v943 = vsel %vm587, %v941, %v942
      %945 = vst.msk [vmem:[#allocation3 + $0x50] sm:$0x33] %vm529, %v943
      %v946 = vld [vmem:[#allocation2] sm:$0xf]
      %948 = vst [vmem:[#allocation1] ss:$2 sm:$0xff] %v946
      %v949 = vld.sshfl [vmem:[#allocation1] sm:$0xff pattern:$0x75643120]
      %951 = vrot.lane.b32.xlu0 %v949, 108
      %v952 = vpop.permute.xlu0 %951
      %v953 = vrot.slane %v952, 4
      %v954 = vsel %vm599, %v952, %v953
      %956 = vst.msk [vmem:[#allocation3 + $0x60] sm:$0x33] %vm529, %v954
      %v957 = vld [vmem:[#allocation2] sm:$0xf]
      %959 = vst [vmem:[#allocation1] ss:$2 sm:$0xff] %v957
      %v960 = vld.sshfl [vmem:[#allocation1] sm:$0xff pattern:$0x75643120]
      %962 = vrot.lane.b32.xlu0 %v960, 107
      %v963 = vpop.permute.xlu0 %962
      %v964 = vrot.slane %v963, 4
      %v965 = vsel %vm611, %v963, %v964
      %967 = vst.msk [vmem:[#allocation3 + $0x70] sm:$0x33] %vm529, %v965
      %v968 = vld [vmem:[#allocation2] sm:$0xf]
      %970 = vst [vmem:[#allocation1] ss:$2 sm:$0xff] %v968
      %v971 = vld.sshfl [vmem:[#allocation1] sm:$0xff pattern:$0x75643120]
      %973 = vrot.lane.b32.xlu0 %v971, 106
      %v974 = vpop.permute.xlu0 %973
      %v975 = vrot.slane %v974, 4
      %v976 = vsel %vm623, %v974, %v975
      %978 = vst.msk [vmem:[#allocation3 + $0x80] sm:$0x33] %vm529, %v976
      %v979 = vld [vmem:[%s6] sm:$0xf]
      %v980 = vld [vmem:[#allocation3] sm:$0xff]
      %v981 = vld [vmem:[#allocation3 + $0x8] sm:$0xff]
      %v982 = vld [vmem:[#allocation3 + $0x10] sm:$0xff]
      %v983 = vld [vmem:[#allocation3 + $0x18] sm:$0xff]
      %v984 = vld [vmem:[#allocation3 + $0x20] sm:$0xff]
      %v985 = vld [vmem:[#allocation3 + $0x28] sm:$0xff]
      %v986 = vld [vmem:[#allocation3 + $0x30] sm:$0xff]
      %v987 = vld [vmem:[#allocation3 + $0x38] sm:$0xff]
      %v988 = vld [vmem:[#allocation3 + $0x40] sm:$0xff]
      %v989 = vld [vmem:[#allocation3 + $0x48] sm:$0xff]
      %v990 = vld [vmem:[#allocation3 + $0x50] sm:$0xff]
      %v991 = vld [vmem:[#allocation3 + $0x58] sm:$0xff]
      %v992 = vld [vmem:[#allocation3 + $0x60] sm:$0xff]
      %v993 = vld [vmem:[#allocation3 + $0x68] sm:$0xff]
      %v994 = vld [vmem:[#allocation3 + $0x70] sm:$0xff]
      %v995 = vld [vmem:[#allocation3 + $0x78] sm:$0xff]
      %v996 = vld [vmem:[#allocation3 + $0x80] sm:$0xff]
      %v997 = vld [vmem:[#allocation3 + $0x88] sm:$0xff]
      %v998 = vld [vmem:[%s7] sm:$0xf]
      %1000 = vset.pattern.permute.xlu0 0
      %1001 = vperm.xlu0 %1000, %v998
      %v1002 = vpop.permute.xlu0 %1001
      %1005 = vst [vmem:[#allocation1] ss:$4 sm:$0xff] %v979
      %v1006 = vld.sshfl [vmem:[#allocation1] sm:$0xff pattern:$0x73625140]
      %v1007 = vld.sshfl [vmem:[#allocation1 + $0x8] sm:$0xff pattern:$0x73625140]
      %v1027 = vunpack.c.l.b16 %v980
      %v1028 = vunpack.c.h.b16 %v980
      %v1029 = vunpack.c.l.b16 %v981
      %v1030 = vunpack.c.h.b16 %v981
      %v1031 = vunpack.c.l.b16 %v982
      %v1032 = vunpack.c.h.b16 %v982
      %v1033 = vunpack.c.l.b16 %v983
      %v1034 = vunpack.c.h.b16 %v983
      %v1035 = vunpack.c.l.b16 %v984
      %v1036 = vunpack.c.h.b16 %v984
      %v1037 = vunpack.c.l.b16 %v985
      %v1038 = vunpack.c.h.b16 %v985
      %v1039 = vunpack.c.l.b16 %v986
      %v1040 = vunpack.c.h.b16 %v986
      %v1041 = vunpack.c.l.b16 %v987
      %v1042 = vunpack.c.h.b16 %v987
      %v1043 = vunpack.c.l.b16 %v988
      %v1044 = vunpack.c.h.b16 %v988
      %v1045 = vunpack.c.l.b16 %v989
      %v1046 = vunpack.c.h.b16 %v989
      %v1047 = vunpack.c.l.b16 %v990
      %v1048 = vunpack.c.h.b16 %v990
      %v1049 = vunpack.c.l.b16 %v991
      %v1050 = vunpack.c.h.b16 %v991
      %v1051 = vunpack.c.l.b16 %v992
      %v1052 = vunpack.c.h.b16 %v992
      %v1053 = vunpack.c.l.b16 %v993
      %v1054 = vunpack.c.h.b16 %v993
      %v1055 = vunpack.c.l.b16 %v994
      %v1056 = vunpack.c.h.b16 %v994
      %v1057 = vunpack.c.l.b16 %v995
      %v1058 = vunpack.c.h.b16 %v995
      %v1059 = vunpack.c.l.b16 %v996
      %v1060 = vunpack.c.h.b16 %v996
      %v1061 = vunpack.c.l.b16 %v997
      %v1062 = vunpack.c.h.b16 %v997
      %v1063 = vpack.c.b16 %v1029, %v1027
      %v1064 = vpack.c.b16 %v1030, %v1028
      %v1065 = vpack.c.b16 %v1033, %v1031
      %v1066 = vpack.c.b16 %v1034, %v1032
      %v1067 = vpack.c.b16 %v1037, %v1035
      %v1068 = vpack.c.b16 %v1038, %v1036
      %v1069 = vpack.c.b16 %v1041, %v1039
      %v1070 = vpack.c.b16 %v1042, %v1040
      %v1071 = vpack.c.b16 %v1045, %v1043
      %v1072 = vpack.c.b16 %v1046, %v1044
      %v1073 = vpack.c.b16 %v1049, %v1047
      %v1074 = vpack.c.b16 %v1050, %v1048
      %v1075 = vpack.c.b16 %v1053, %v1051
      %v1076 = vpack.c.b16 %v1054, %v1052
      %v1077 = vpack.c.b16 %v1057, %v1055
      %v1078 = vpack.c.b16 %v1058, %v1056
      %v1079 = vpack.c.b16 %v1061, %v1059
      %v1080 = vpack.c.b16 %v1062, %v1060
      %v1099 = vsel %vm747, %v1007, 0
      %1101 = vmatpush.bf16.msra.mxu0 %v1077
      %1102 = vmatpush.bf16.msra.mxu0 %v1075
      %1103 = vmatpush.bf16.msra.mxu0 %v1073
      %1104 = vmatpush.bf16.msra.mxu0 %v1071
      %1105 = vmatpush.bf16.msra.mxu0 %v1069
      %1106 = vmatpush.bf16.msra.mxu0 %v1067
      %1107 = vmatpush.bf16.msra.mxu0 %v1065
      %1108 = vmatpush.bf16.msra.mxu0 %v1063
      %1109 = vmatmul.bf16.gmra.mxu0 %v1006
      %v1110 = vpop.f32.mrf.mxu0
      %v1111 = vadd.f32 %v1002, %v1110
      %v1112 = vpop.f32.mrf.mxu0
      %1113 = vdwg.mxu0
      %1114 = vmatpush.bf16.msra.mxu0 0
      %1115 = vmatpush.bf16.msra.mxu0 0
      %1116 = vmatpush.bf16.msra.mxu0 0
      %1117 = vmatpush.bf16.msra.mxu0 0
      %1118 = vmatpush.bf16.msra.mxu0 0
      %1119 = vmatpush.bf16.msra.mxu0 0
      %1120 = vmatpush.bf16.msra.mxu0 0
      %1121 = vmatpush.bf16.msra.mxu0 %v1079
      %1122 = vmatmul.bf16.gmra.mxu0 %v1099
      %v1123 = vpop.f32.mrf.mxu0
      %v1124 = vadd.f32 %v1111, %v1123
      %v1125 = vpop.f32.mrf.mxu0
      %1126 = vdwg.mxu0
      %1127 = vmatpush.bf16.msra.mxu0 %v1078
      %1128 = vmatpush.bf16.msra.mxu0 %v1076
      %1129 = vmatpush.bf16.msra.mxu0 %v1074
      %1130 = vmatpush.bf16.msra.mxu0 %v1072
      %1131 = vmatpush.bf16.msra.mxu0 %v1070
      %1132 = vmatpush.bf16.msra.mxu0 %v1068
      %1133 = vmatpush.bf16.msra.mxu0 %v1066
      %1134 = vmatpush.bf16.msra.mxu0 %v1064
      %1135 = vmatmul.bf16.gmra.mxu0 %v1006
      %v1136 = vpop.f32.mrf.mxu0
      %v1137 = vadd.f32 %v1002, %v1136
      %v1138 = vpop.f32.mrf.mxu0
      %1139 = vdwg.mxu0
      %1140 = vmatpush.bf16.msra.mxu0 0
      %1141 = vmatpush.bf16.msra.mxu0 0
      %1142 = vmatpush.bf16.msra.mxu0 0
      %1143 = vmatpush.bf16.msra.mxu0 0
      %1144 = vmatpush.bf16.msra.mxu0 0
      %1145 = vmatpush.bf16.msra.mxu0 0
      %1146 = vmatpush.bf16.msra.mxu0 0
      %1147 = vmatpush.bf16.msra.mxu0 %v1080
      %1148 = vmatmul.bf16.gmra.mxu0 %v1099
      %v1149 = vpop.f32.mrf.mxu0
      %v1150 = vadd.f32 %v1137, %v1149
      %v1151 = vpop.f32.mrf.mxu0
      %1152 = vdwg.mxu0
      %v1153 = vmax.f32 %v1124, 0.0
      %v1154 = vmax.f32 %v1150, 0.0
      %v1155 = vld [vmem:[%s8] sm:$0x3]
      %v1156 = vpack.c.bf16 %v1153, %v1153
      %v1157 = vpack.c.bf16 %v1154, %v1154
      %v1158 = vld [vmem:[%s9] sm:$0xf]
      %1160 = vset.pattern.permute.xlu0 0
      %1161 = vperm.xlu0 %1160, %v1158
      %v1162 = vpop.permute.xlu0 %1161
      %v1165 = vsel %vm813, %v1155, 0
      %v1168 = vsel %vm515, %v1156, 0
      %v1171 = vsel %vm515, %v1157, 0
      %1173 = vmatpush.bf16.msra.mxu0 0
      %1174 = vmatpush.bf16.msra.mxu0 0
      %1175 = vmatpush.bf16.msra.mxu0 0
      %1176 = vmatpush.bf16.msra.mxu0 0
      %1177 = vmatpush.bf16.msra.mxu0 0
      %1178 = vmatpush.bf16.msra.mxu0 0
      %1179 = vmatpush.bf16.msra.mxu0 0
      %1180 = vmatpush.bf16.msra.mxu0 %v1168
      %1181 = vmatmul.bf16.gmra.mxu0 %v1165
      %v1182 = vpop.f32.mrf.mxu0
      %v1183 = vadd.f32 %v1162, %v1182
      %v1184 = vpop.f32.mrf.mxu0
      %1185 = vdwg.mxu0
      %1186 = vmatpush.bf16.msra.mxu0 0
      %1187 = vmatpush.bf16.msra.mxu0 0
      %1188 = vmatpush.bf16.msra.mxu0 0
      %1189 = vmatpush.bf16.msra.mxu0 0
      %1190 = vmatpush.bf16.msra.mxu0 0
      %1191 = vmatpush.bf16.msra.mxu0 0
      %1192 = vmatpush.bf16.msra.mxu0 0
      %1193 = vmatpush.bf16.msra.mxu0 %v1171
      %1194 = vmatmul.bf16.gmra.mxu0 %v1165
      %v1195 = vpop.f32.mrf.mxu0
      %v1196 = vadd.f32 %v1162, %v1195
      %v1197 = vpop.f32.mrf.mxu0
      %1198 = vdwg.mxu0
      %v1199 = vtanh.pop %v1183
      %v1200 = vtanh.pop %v1196
      %v1203 = vrot.slane %v1200, 4
      %v1204 = vsel %vm483, %v1199, %v1203
      %1205 = vrot.lane.b32.xlu0 %v1204, 11
      %v1206 = vpop.permute.xlu0 %1205
      %v1207 = vrot.slane %v1206, 4
      %v1208 = vsel %vm858, %v1207, %v1206
      %v1210 = vadd.f32 %v504, %v1208
      %1212 = vrot.lane.b32.xlu0 %v1210, 117
      %v1213 = vpop.permute.xlu0 %1212
      %v1214 = vrot.slane %v1213, 4
      %v1215 = vsel %vm866, %v1213, %v1214
      %1217 = vst.msk [vmem:[%s480] sm:$0xff] %vm485, %v1215
      %s1218 = smul.u32 2, %s28
      %p1219 = scmp.lt.s32.totalorder %s27, 1
      %s1220 = scalar_select %p1219, %s27, 1
      %p1221 = scmp.lt.s32.totalorder %s1218, 1
      %s1222 = scalar_select %p1221, %s1218, 1
      %s1223 = smul.addr %s1220, 2
      %s1224 = sadd.s32 %s1222, %s1223
      %s1225 = smul.addr %s1224, 4
      %s1226 = scalar_lea.vmem %s10, %s1225
      %s1227 = smul.u32 2, %s28
      %p1228 = scmp.lt.s32.totalorder %s27, 1
      %s1229 = scalar_select %p1228, %s27, 1
      %p1230 = scmp.lt.s32.totalorder %s1227, 1
      %s1231 = scalar_select %p1230, %s1227, 1
      %s1232 = smul.addr %s1229, 2
      %s1233 = sadd.s32 %s1231, %s1232
      %s1234 = smul.addr %s1233, 4
      %s1235 = scalar_lea.vmem %s11, %s1234
      // Predicated region
      $region61: #{lift_down_pool.2} parent=59 // pred_check
        %p1236 = pneg %p279
      $region62: #{lift_down_pool.2} parent=59 // pred_check_branch
        %1238 = sbr.rel (%p1236) target = $region64
      $region63: #{lift_down_pool.2} parent=59 // pred_region
        %s1239 = smul.u32 2, %s28
      $region64: #{lift_down_pool.2} parent=59 // pred_fallthru
        _
      // Predicated region
      $region65: #{lift_down_pool.2} parent=59 // pred_check
        %p1240 = pneg %p307
      $region66: #{lift_down_pool.2} parent=59 // pred_check_branch
        %1242 = sbr.rel (%p1240) target = $region68
      $region67: #{lift_down_pool.2} parent=59 // pred_region
        %s1243 = smul.u32 2, %s28
      $region68: #{lift_down_pool.2} parent=59 // pred_fallthru
        _
    $region60: #{lift_down_pool.2} parent=5 // pred_fallthru
      _
    %p1244 = scmp.le.s32.totalorder 2, %s18
    // Predicated region
    $region69: #{lift_down_pool.2} parent=5 // pred_check
      %p1245 = pneg %p1244
    $region70: #{lift_down_pool.2} parent=5 // pred_check_branch
      %1247 = sbr.rel (%p1245) target = $region72
    $region71: #{lift_down_pool.2} parent=5 // pred_region
      %s1248 = ssub.s32 %s18, 2
      // Predicated region
      $region73: #{lift_down_pool.2} parent=71 // pred_check
        %p1249 = pneg %p285
      $region74: #{lift_down_pool.2} parent=71 // pred_check_branch
        %1251 = sbr.rel (%p1249) target = $region76
      $region75: #{lift_down_pool.2} parent=71 // pred_region
        %s1252 = smul.u32 2, %s30
        %p1253 = scmp.lt.s32.totalorder %s29, 1
        %s1254 = scalar_select %p1253, %s29, 1
        %p1255 = scmp.lt.s32.totalorder %s1252, 1
        %s1256 = scalar_select %p1255, %s1252, 1
        %s1257 = smul.addr %s1254, 2
        %s1258 = sadd.s32 %s1256, %s1257
        %s1259 = smul.addr %s1258, 4
        %s1260 = scalar_lea.vmem %s10, %s1259
      $region76: #{lift_down_pool.2} parent=71 // pred_fallthru
        _
      // Predicated region
      $region77: #{lift_down_pool.2} parent=71 // pred_check
        %p1261 = pneg %p313
      $region78: #{lift_down_pool.2} parent=71 // pred_check_branch
        %1263 = sbr.rel (%p1261) target = $region80
      $region79: #{lift_down_pool.2} parent=71 // pred_region
        %s1264 = smul.u32 2, %s30
        %p1265 = scmp.lt.s32.totalorder %s29, 1
        %s1266 = scalar_select %p1265, %s29, 1
        %p1267 = scmp.lt.s32.totalorder %s1264, 1
        %s1268 = scalar_select %p1267, %s1264, 1
        %s1269 = smul.addr %s1266, 2
        %s1270 = sadd.s32 %s1268, %s1269
        %s1271 = smul.addr %s1270, 4
        %s1272 = scalar_lea.vmem %s11, %s1271
      $region80: #{lift_down_pool.2} parent=71 // pred_fallthru
        _
    $region72: #{lift_down_pool.2} parent=5 // pred_fallthru
      _
  $region6: #{lift_down_pool.2} parent=0 // loop_footer
    %s22 = sadd.s32 1, %s18
  $region7: #{lift_down_pool.2} parent=0 // loop_footer_branch
    %17 = sbr.rel target = $region3
  $region8: #{lift_down_pool.2} parent=0 // loop_exit
    _

// kernel: lift_down_pool.3
$region0: #{lift_down_pool.3}
  #allocation0 [shape = 'u32[]', space=smem, size = 0x4, offset = 0x4, fixed_abs, tag = 'smem constant byte address 0x4 - core index']
  #allocation1 [shape = 'u32[72,128]{1,0:T(1,128)}', space=vmem, size = 0x9000, scoped, tag = 'internal scratch']
  #allocation2 [shape = 'bf16[4,110]{1,0:T(4,128)(2,1)}', space=vmem, size = 0x400, scoped, tag = 'scratch operand']
  #allocation3 [shape = 'bf16[144,80]{1,0:T(8,128)(2,1)}', space=vmem, size = 0x9000, scoped, tag = 'scratch operand']
  %s0 = inlined_call_operand.vmem [shape: f32[2,1,4,110], index: 0, kind: input, shape index: {}]
  %s1 = inlined_call_operand.vmem [shape: f32[2,1,4,110], index: 1, kind: input, shape index: {}]
  %s2 = inlined_call_operand.vmem [shape: f32[2,1,4,110], index: 2, kind: input, shape index: {}]
  %s3 = inlined_call_operand.vmem [shape: f32[2,1,4,110], index: 3, kind: input, shape index: {}]
  %s4 = inlined_call_operand.vmem [shape: bf16[4,144], index: 4, kind: input, shape index: {}]
  %s5 = inlined_call_operand.vmem [shape: f32[4,1], index: 5, kind: input, shape index: {}]
  %s6 = inlined_call_operand.vmem [shape: bf16[4,4], index: 6, kind: input, shape index: {}]
  %s7 = inlined_call_operand.vmem [shape: f32[4,1], index: 7, kind: input, shape index: {}]
  %s8 = inlined_call_operand.vmem [shape: bf16[4,144], index: 8, kind: input, shape index: {}]
  %s9 = inlined_call_operand.vmem [shape: f32[4,1], index: 9, kind: input, shape index: {}]
  %s10 = inlined_call_operand.vmem [shape: bf16[4,4], index: 10, kind: input, shape index: {}]
  %s11 = inlined_call_operand.vmem [shape: f32[4,1], index: 11, kind: input, shape index: {}]
  %s12 = inlined_call_operand.vmem [shape: f32[2,4,80], index: 12, kind: output, shape index: {}]
  %s13 = sld [smem:[#allocation0]]
  $region81: #{lift_down_pool.3} parent=0
    _
  %s15 = ssub.s32 1, %s13
  %s16 = scalar_select 0, %s15, %s13
  loop: start=0, step=1, limit=4
  $region2: #{lift_down_pool.3} parent=0 // loop_pre_header
    _
  $region3: #{lift_down_pool.3} parent=0 // loop_header
    %s18 = sphi 0, %s22
    %p19 = scmp.ge.s32.totalorder %s18, 4
    %s25 = sphi 0, %s37
    %s26 = sphi 0, %s33
    %s27 = sphi 0, %s25
    %s28 = sphi 0, %s26
    %s29 = sphi 0, %s27
    %s30 = sphi 0, %s28
    %s42 = sphi 0, %s44
    %s45 = sphi 0, %s42
    %s46 = sphi 0, %s45
    %s62 = sphi 0, %s46
    %s70 = sphi 0, %s72
    %s73 = sphi 0, %s70
    %s74 = sphi 0, %s73
    %s90 = sphi 0, %s74
    %s98 = sphi 0, %s100
    %s101 = sphi 0, %s98
    %s102 = sphi 0, %s101
    %s118 = sphi 0, %s102
    %s126 = sphi 0, %s128
    %s129 = sphi 0, %s126
    %s130 = sphi 0, %s129
    %s146 = sphi 0, %s130
    %s150 = sphi 0, %s150
    %s152 = sphi 0, %s150
    %s153 = sphi 0, %s152
    %s167 = sphi 0, %s153
    %s171 = sphi 0, %s171
    %s173 = sphi 0, %s171
    %s174 = sphi 0, %s173
    %s188 = sphi 0, %s174
    %s192 = sphi 0, %s192
    %s194 = sphi 0, %s192
    %s195 = sphi 0, %s194
    %s209 = sphi 0, %s195
    %s213 = sphi 0, %s213
    %s215 = sphi 0, %s213
    %s216 = sphi 0, %s215
    %s230 = sphi 0, %s216
    %s234 = sphi 0, %s234
    %s236 = sphi 0, %s234
    %s237 = sphi 0, %s236
    %s251 = sphi 0, %s237
    %s255 = sphi 0, %s255
    %s257 = sphi 0, %s255
    %s258 = sphi 0, %s257
    %s272 = sphi 0, %s258
    %s276 = sphi 0, %s276
    %s278 = sphi 0, %s276
    %s279 = sphi 0, %s278
    %s293 = sphi 0, %s279
    %s297 = sphi 0, %s297
    %s299 = sphi 0, %s297
    %s300 = sphi 0, %s299
    %s314 = sphi 0, %s300
    %s322 = sphi 0, %s324
    %s325 = sphi 0, %s322
    %s326 = sphi 0, %s325
    %s342 = sphi 0, %s326
  $region4: #{lift_down_pool.3} parent=0 // loop_header_branch
    %21 = sbr.rel (%p19) target = $region8
  $region5: #{lift_down_pool.3} parent=0 // loop_body
    %s23 = ssub.s32 %s18, 1
    %s24 = ssub.s32 %s18, 2
    %s31 = sadd.s32 1, %s26
    %p32 = scmp.ge.s32.totalorder %s31, 1
    %s33 = scalar_select %p32, 0, %s31
    %s34 = sadd.s32 1, %s25
    %s35 = scalar_select %p32, %s34, %s25
    %p36 = scmp.ge.s32.totalorder %s35, 2
    %s37 = scalar_select %p36, 0, %s35
    %s38 = ssub.s32 %s25, %s37
    %s39 = ssub.s32 %s26, %s33
    %s40 = sor.u32 %s38, %s39
    %p41 = scmp.eq.s32.totalorder %s40, 0
    %s43 = sadd.s32 %s42, 1
    %s44 = scalar_select %p41, %s42, %s43
    %p47 = pneg %p41
    %p48 = scmp.eq.s32.totalorder %s18, 1
    %p49 = por %p47, %p48
    %p50 = scmp.ne.s32.totalorder %s42, %s45
    %p51 = scmp.eq.s32.totalorder %s18, 0
    %p52 = por %p50, %p51
    %p53 = scmp.ne.s32.totalorder %s42, %s45
    %p54 = scmp.eq.s32.totalorder %s23, 1
    %p55 = por %p53, %p54
    %p56 = scmp.ne.s32.totalorder %s45, %s46
    %p57 = scmp.eq.s32.totalorder %s23, 0
    %p58 = por %p56, %p57
    %p59 = scmp.ne.s32.totalorder %s45, %s46
    %p60 = scmp.eq.s32.totalorder %s24, 1
    %p61 = por %p59, %p60
    %p63 = scmp.ne.s32.totalorder %s46, %s62
    %p64 = scmp.eq.s32.totalorder %s24, 0
    %p65 = por %p63, %p64
    %s66 = ssub.s32 %s25, %s37
    %s67 = ssub.s32 %s26, %s33
    %s68 = sor.u32 %s66, %s67
    %p69 = scmp.eq.s32.totalorder %s68, 0
    %s71 = sadd.s32 %s70, 1
    %s72 = scalar_select %p69, %s70, %s71
    %p75 = pneg %p69
    %p76 = scmp.eq.s32.totalorder %s18, 1
    %p77 = por %p75, %p76
    %p78 = scmp.ne.s32.totalorder %s70, %s73
    %p79 = scmp.eq.s32.totalorder %s18, 0
    %p80 = por %p78, %p79
    %p81 = scmp.ne.s32.totalorder %s70, %s73
    %p82 = scmp.eq.s32.totalorder %s23, 1
    %p83 = por %p81, %p82
    %p84 = scmp.ne.s32.totalorder %s73, %s74
    %p85 = scmp.eq.s32.totalorder %s23, 0
    %p86 = por %p84, %p85
    %p87 = scmp.ne.s32.totalorder %s73, %s74
    %p88 = scmp.eq.s32.totalorder %s24, 1
    %p89 = por %p87, %p88
    %p91 = scmp.ne.s32.totalorder %s74, %s90
    %p92 = scmp.eq.s32.totalorder %s24, 0
    %p93 = por %p91, %p92
    %s94 = ssub.s32 %s25, %s37
    %s95 = ssub.s32 %s26, %s33
    %s96 = sor.u32 %s94, %s95
    %p97 = scmp.eq.s32.totalorder %s96, 0
    %s99 = sadd.s32 %s98, 1
    %s100 = scalar_select %p97, %s98, %s99
    %p103 = pneg %p97
    %p104 = scmp.eq.s32.totalorder %s18, 1
    %p105 = por %p103, %p104
    %p106 = scmp.ne.s32.totalorder %s98, %s101
    %p107 = scmp.eq.s32.totalorder %s18, 0
    %p108 = por %p106, %p107
    %p109 = scmp.ne.s32.totalorder %s98, %s101
    %p110 = scmp.eq.s32.totalorder %s23, 1
    %p111 = por %p109, %p110
    %p112 = scmp.ne.s32.totalorder %s101, %s102
    %p113 = scmp.eq.s32.totalorder %s23, 0
    %p114 = por %p112, %p113
    %p115 = scmp.ne.s32.totalorder %s101, %s102
    %p116 = scmp.eq.s32.totalorder %s24, 1
    %p117 = por %p115, %p116
    %p119 = scmp.ne.s32.totalorder %s102, %s118
    %p120 = scmp.eq.s32.totalorder %s24, 0
    %p121 = por %p119, %p120
    %s122 = ssub.s32 %s25, %s37
    %s123 = ssub.s32 %s26, %s33
    %s124 = sor.u32 %s122, %s123
    %p125 = scmp.eq.s32.totalorder %s124, 0
    %s127 = sadd.s32 %s126, 1
    %s128 = scalar_select %p125, %s126, %s127
    %p131 = pneg %p125
    %p132 = scmp.eq.s32.totalorder %s18, 1
    %p133 = por %p131, %p132
    %p134 = scmp.ne.s32.totalorder %s126, %s129
    %p135 = scmp.eq.s32.totalorder %s18, 0
    %p136 = por %p134, %p135
    %p137 = scmp.ne.s32.totalorder %s126, %s129
    %p138 = scmp.eq.s32.totalorder %s23, 1
    %p139 = por %p137, %p138
    %p140 = scmp.ne.s32.totalorder %s129, %s130
    %p141 = scmp.eq.s32.totalorder %s23, 0
    %p142 = por %p140, %p141
    %p143 = scmp.ne.s32.totalorder %s129, %s130
    %p144 = scmp.eq.s32.totalorder %s24, 1
    %p145 = por %p143, %p144
    %p147 = scmp.ne.s32.totalorder %s130, %s146
    %p148 = scmp.eq.s32.totalorder %s24, 0
    %p149 = por %p147, %p148
    %s151 = sadd.s32 %s150, 1
    %p154 = scmp.eq.s32.totalorder %s18, 1
    %p155 = scmp.ne.s32.totalorder %s150, %s152
    %p156 = scmp.eq.s32.totalorder %s18, 0
    %p157 = por %p155, %p156
    %p158 = scmp.ne.s32.totalorder %s150, %s152
    %p159 = scmp.eq.s32.totalorder %s23, 1
    %p160 = por %p158, %p159
    %p161 = scmp.ne.s32.totalorder %s152, %s153
    %p162 = scmp.eq.s32.totalorder %s23, 0
    %p163 = por %p161, %p162
    %p164 = scmp.ne.s32.totalorder %s152, %s153
    %p165 = scmp.eq.s32.totalorder %s24, 1
    %p166 = por %p164, %p165
    %p168 = scmp.ne.s32.totalorder %s153, %s167
    %p169 = scmp.eq.s32.totalorder %s24, 0
    %p170 = por %p168, %p169
    %s172 = sadd.s32 %s171, 1
    %p175 = scmp.eq.s32.totalorder %s18, 1
    %p176 = scmp.ne.s32.totalorder %s171, %s173
    %p177 = scmp.eq.s32.totalorder %s18, 0
    %p178 = por %p176, %p177
    %p179 = scmp.ne.s32.totalorder %s171, %s173
    %p180 = scmp.eq.s32.totalorder %s23, 1
    %p181 = por %p179, %p180
    %p182 = scmp.ne.s32.totalorder %s173, %s174
    %p183 = scmp.eq.s32.totalorder %s23, 0
    %p184 = por %p182, %p183
    %p185 = scmp.ne.s32.totalorder %s173, %s174
    %p186 = scmp.eq.s32.totalorder %s24, 1
    %p187 = por %p185, %p186
    %p189 = scmp.ne.s32.totalorder %s174, %s188
    %p190 = scmp.eq.s32.totalorder %s24, 0
    %p191 = por %p189, %p190
    %s193 = sadd.s32 %s192, 1
    %p196 = scmp.eq.s32.totalorder %s18, 1
    %p197 = scmp.ne.s32.totalorder %s192, %s194
    %p198 = scmp.eq.s32.totalorder %s18, 0
    %p199 = por %p197, %p198
    %p200 = scmp.ne.s32.totalorder %s192, %s194
    %p201 = scmp.eq.s32.totalorder %s23, 1
    %p202 = por %p200, %p201
    %p203 = scmp.ne.s32.totalorder %s194, %s195
    %p204 = scmp.eq.s32.totalorder %s23, 0
    %p205 = por %p203, %p204
    %p206 = scmp.ne.s32.totalorder %s194, %s195
    %p207 = scmp.eq.s32.totalorder %s24, 1
    %p208 = por %p206, %p207
    %p210 = scmp.ne.s32.totalorder %s195, %s209
    %p211 = scmp.eq.s32.totalorder %s24, 0
    %p212 = por %p210, %p211
    %s214 = sadd.s32 %s213, 1
    %p217 = scmp.eq.s32.totalorder %s18, 1
    %p218 = scmp.ne.s32.totalorder %s213, %s215
    %p219 = scmp.eq.s32.totalorder %s18, 0
    %p220 = por %p218, %p219
    %p221 = scmp.ne.s32.totalorder %s213, %s215
    %p222 = scmp.eq.s32.totalorder %s23, 1
    %p223 = por %p221, %p222
    %p224 = scmp.ne.s32.totalorder %s215, %s216
    %p225 = scmp.eq.s32.totalorder %s23, 0
    %p226 = por %p224, %p225
    %p227 = scmp.ne.s32.totalorder %s215, %s216
    %p228 = scmp.eq.s32.totalorder %s24, 1
    %p229 = por %p227, %p228
    %p231 = scmp.ne.s32.totalorder %s216, %s230
    %p232 = scmp.eq.s32.totalorder %s24, 0
    %p233 = por %p231, %p232
    %s235 = sadd.s32 %s234, 1
    %p238 = scmp.eq.s32.totalorder %s18, 1
    %p239 = scmp.ne.s32.totalorder %s234, %s236
    %p240 = scmp.eq.s32.totalorder %s18, 0
    %p241 = por %p239, %p240
    %p242 = scmp.ne.s32.totalorder %s234, %s236
    %p243 = scmp.eq.s32.totalorder %s23, 1
    %p244 = por %p242, %p243
    %p245 = scmp.ne.s32.totalorder %s236, %s237
    %p246 = scmp.eq.s32.totalorder %s23, 0
    %p247 = por %p245, %p246
    %p248 = scmp.ne.s32.totalorder %s236, %s237
    %p249 = scmp.eq.s32.totalorder %s24, 1
    %p250 = por %p248, %p249
    %p252 = scmp.ne.s32.totalorder %s237, %s251
    %p253 = scmp.eq.s32.totalorder %s24, 0
    %p254 = por %p252, %p253
    %s256 = sadd.s32 %s255, 1
    %p259 = scmp.eq.s32.totalorder %s18, 1
    %p260 = scmp.ne.s32.totalorder %s255, %s257
    %p261 = scmp.eq.s32.totalorder %s18, 0
    %p262 = por %p260, %p261
    %p263 = scmp.ne.s32.totalorder %s255, %s257
    %p264 = scmp.eq.s32.totalorder %s23, 1
    %p265 = por %p263, %p264
    %p266 = scmp.ne.s32.totalorder %s257, %s258
    %p267 = scmp.eq.s32.totalorder %s23, 0
    %p268 = por %p266, %p267
    %p269 = scmp.ne.s32.totalorder %s257, %s258
    %p270 = scmp.eq.s32.totalorder %s24, 1
    %p271 = por %p269, %p270
    %p273 = scmp.ne.s32.totalorder %s258, %s272
    %p274 = scmp.eq.s32.totalorder %s24, 0
    %p275 = por %p273, %p274
    %s277 = sadd.s32 %s276, 1
    %p280 = scmp.eq.s32.totalorder %s18, 1
    %p281 = scmp.ne.s32.totalorder %s276, %s278
    %p282 = scmp.eq.s32.totalorder %s18, 0
    %p283 = por %p281, %p282
    %p284 = scmp.ne.s32.totalorder %s276, %s278
    %p285 = scmp.eq.s32.totalorder %s23, 1
    %p286 = por %p284, %p285
    %p287 = scmp.ne.s32.totalorder %s278, %s279
    %p288 = scmp.eq.s32.totalorder %s23, 0
    %p289 = por %p287, %p288
    %p290 = scmp.ne.s32.totalorder %s278, %s279
    %p291 = scmp.eq.s32.totalorder %s24, 1
    %p292 = por %p290, %p291
    %p294 = scmp.ne.s32.totalorder %s279, %s293
    %p295 = scmp.eq.s32.totalorder %s24, 0
    %p296 = por %p294, %p295
    %s298 = sadd.s32 %s297, 1
    %p301 = scmp.eq.s32.totalorder %s18, 1
    %p302 = scmp.ne.s32.totalorder %s297, %s299
    %p303 = scmp.eq.s32.totalorder %s18, 0
    %p304 = por %p302, %p303
    %p305 = scmp.ne.s32.totalorder %s297, %s299
    %p306 = scmp.eq.s32.totalorder %s23, 1
    %p307 = por %p305, %p306
    %p308 = scmp.ne.s32.totalorder %s299, %s300
    %p309 = scmp.eq.s32.totalorder %s23, 0
    %p310 = por %p308, %p309
    %p311 = scmp.ne.s32.totalorder %s299, %s300
    %p312 = scmp.eq.s32.totalorder %s24, 1
    %p313 = por %p311, %p312
    %p315 = scmp.ne.s32.totalorder %s300, %s314
    %p316 = scmp.eq.s32.totalorder %s24, 0
    %p317 = por %p315, %p316
    %s318 = ssub.s32 %s25, %s37
    %s319 = ssub.s32 %s26, %s33
    %s320 = sor.u32 %s318, %s319
    %p321 = scmp.eq.s32.totalorder %s320, 0
    %s323 = sadd.s32 %s322, 1
    %s324 = scalar_select %p321, %s322, %s323
    %p327 = pneg %p321
    %p328 = scmp.eq.s32.totalorder %s18, 1
    %p329 = por %p327, %p328
    %p330 = scmp.ne.s32.totalorder %s322, %s325
    %p331 = scmp.eq.s32.totalorder %s18, 0
    %p332 = por %p330, %p331
    %p333 = scmp.ne.s32.totalorder %s322, %s325
    %p334 = scmp.eq.s32.totalorder %s23, 1
    %p335 = por %p333, %p334
    %p336 = scmp.ne.s32.totalorder %s325, %s326
    %p337 = scmp.eq.s32.totalorder %s23, 0
    %p338 = por %p336, %p337
    %p339 = scmp.ne.s32.totalorder %s325, %s326
    %p340 = scmp.eq.s32.totalorder %s24, 1
    %p341 = por %p339, %p340
    %p343 = scmp.ne.s32.totalorder %s326, %s342
    %p344 = scmp.eq.s32.totalorder %s24, 0
    %p345 = por %p343, %p344
    %p346 = scmp.le.s32.totalorder 1, %s18
    %p347 = scmp.lt.s32.totalorder %s18, 3
    %p348 = pnand %p346, %p347
    %p349 = pneg %p348
    // Predicated region
    $region9: #{lift_down_pool.3} parent=5 // pred_check
      _
    $region10: #{lift_down_pool.3} parent=5 // pred_check_branch
      %351 = sbr.rel (%p348) target = $region12
    $region11: #{lift_down_pool.3} parent=5 // pred_region
      %s352 = ssub.s32 %s18, 1
      // Predicated region
      $region13: #{lift_down_pool.3} parent=11 // pred_check
        %p353 = pneg %p163
      $region14: #{lift_down_pool.3} parent=11 // pred_check_branch
        %355 = sbr.rel (%p353) target = $region16
      $region15: #{lift_down_pool.3} parent=11 // pred_region
        _
      $region16: #{lift_down_pool.3} parent=11 // pred_fallthru
        _
      // Predicated region
      $region17: #{lift_down_pool.3} parent=11 // pred_check
        %p356 = pneg %p184
      $region18: #{lift_down_pool.3} parent=11 // pred_check_branch
        %358 = sbr.rel (%p356) target = $region20
      $region19: #{lift_down_pool.3} parent=11 // pred_region
        _
      $region20: #{lift_down_pool.3} parent=11 // pred_fallthru
        _
      // Predicated region
      $region21: #{lift_down_pool.3} parent=11 // pred_check
        %p359 = pneg %p205
      $region22: #{lift_down_pool.3} parent=11 // pred_check_branch
        %361 = sbr.rel (%p359) target = $region24
      $region23: #{lift_down_pool.3} parent=11 // pred_region
        _
      $region24: #{lift_down_pool.3} parent=11 // pred_fallthru
        _
      // Predicated region
      $region25: #{lift_down_pool.3} parent=11 // pred_check
        %p362 = pneg %p226
      $region26: #{lift_down_pool.3} parent=11 // pred_check_branch
        %364 = sbr.rel (%p362) target = $region28
      $region27: #{lift_down_pool.3} parent=11 // pred_region
        _
      $region28: #{lift_down_pool.3} parent=11 // pred_fallthru
        _
      // Predicated region
      $region29: #{lift_down_pool.3} parent=11 // pred_check
        %p365 = pneg %p247
      $region30: #{lift_down_pool.3} parent=11 // pred_check_branch
        %367 = sbr.rel (%p365) target = $region32
      $region31: #{lift_down_pool.3} parent=11 // pred_region
        _
      $region32: #{lift_down_pool.3} parent=11 // pred_fallthru
        _
      // Predicated region
      $region33: #{lift_down_pool.3} parent=11 // pred_check
        %p368 = pneg %p268
      $region34: #{lift_down_pool.3} parent=11 // pred_check_branch
        %370 = sbr.rel (%p368) target = $region36
      $region35: #{lift_down_pool.3} parent=11 // pred_region
        _
      $region36: #{lift_down_pool.3} parent=11 // pred_fallthru
        _
      // Predicated region
      $region37: #{lift_down_pool.3} parent=11 // pred_check
        %p371 = pneg %p289
      $region38: #{lift_down_pool.3} parent=11 // pred_check_branch
        %373 = sbr.rel (%p371) target = $region40
      $region39: #{lift_down_pool.3} parent=11 // pred_region
        _
      $region40: #{lift_down_pool.3} parent=11 // pred_fallthru
        _
      // Predicated region
      $region41: #{lift_down_pool.3} parent=11 // pred_check
        %p374 = pneg %p310
      $region42: #{lift_down_pool.3} parent=11 // pred_check_branch
        %376 = sbr.rel (%p374) target = $region44
      $region43: #{lift_down_pool.3} parent=11 // pred_region
        _
      $region44: #{lift_down_pool.3} parent=11 // pred_fallthru
        _
    $region12: #{lift_down_pool.3} parent=5 // pred_fallthru
      _
    %p377 = scmp.lt.s32.totalorder %s18, 2
    // Predicated region
    $region45: #{lift_down_pool.3} parent=5 // pred_check
      %p378 = pneg %p377
    $region46: #{lift_down_pool.3} parent=5 // pred_check_branch
      %380 = sbr.rel (%p378) target = $region48
    $region47: #{lift_down_pool.3} parent=5 // pred_region
      // Predicated region
      $region49: #{lift_down_pool.3} parent=47 // pred_check
        %p381 = pneg %p52
      $region50: #{lift_down_pool.3} parent=47 // pred_check_branch
        %383 = sbr.rel (%p381) target = $region52
      $region51: #{lift_down_pool.3} parent=47 // pred_region
        %p384 = scmp.lt.s32.totalorder %s25, 1
        %s385 = scalar_select %p384, %s25, 1
        %p386 = scmp.lt.s32.totalorder %s26, 0
        %s387 = scalar_select %p386, %s26, 0
        %s388 = sadd.s32 %s387, %s385
        %s389 = smul.addr %s388, 4
        %s390 = scalar_lea.vmem %s0, %s389
      $region52: #{lift_down_pool.3} parent=47 // pred_fallthru
        _
      // Predicated region
      $region53: #{lift_down_pool.3} parent=47 // pred_check
        %p391 = pneg %p80
      $region54: #{lift_down_pool.3} parent=47 // pred_check_branch
        %393 = sbr.rel (%p391) target = $region56
      $region55: #{lift_down_pool.3} parent=47 // pred_region
        %p394 = scmp.lt.s32.totalorder %s25, 1
        %s395 = scalar_select %p394, %s25, 1
        %p396 = scmp.lt.s32.totalorder %s26, 0
        %s397 = scalar_select %p396, %s26, 0
        %s398 = sadd.s32 %s397, %s395
        %s399 = smul.addr %s398, 4
        %s400 = scalar_lea.vmem %s1, %s399
      $region56: #{lift_down_pool.3} parent=47 // pred_fallthru
        _
      // Predicated region
      $region57: #{lift_down_pool.3} parent=47 // pred_check
        %p401 = pneg %p108
      $region58: #{lift_down_pool.3} parent=47 // pred_check_branch
        %403 = sbr.rel (%p401) target = $region60
      $region59: #{lift_down_pool.3} parent=47 // pred_region
        %p404 = scmp.lt.s32.totalorder %s25, 1
        %s405 = scalar_select %p404, %s25, 1
        %p406 = scmp.lt.s32.totalorder %s26, 0
        %s407 = scalar_select %p406, %s26, 0
        %s408 = sadd.s32 %s407, %s405
        %s409 = smul.addr %s408, 4
        %s410 = scalar_lea.vmem %s2, %s409
      $region60: #{lift_down_pool.3} parent=47 // pred_fallthru
        _
      // Predicated region
      $region61: #{lift_down_pool.3} parent=47 // pred_check
        %p411 = pneg %p136
      $region62: #{lift_down_pool.3} parent=47 // pred_check_branch
        %413 = sbr.rel (%p411) target = $region64
      $region63: #{lift_down_pool.3} parent=47 // pred_region
        %p414 = scmp.lt.s32.totalorder %s25, 1
        %s415 = scalar_select %p414, %s25, 1
        %p416 = scmp.lt.s32.totalorder %s26, 0
        %s417 = scalar_select %p416, %s26, 0
        %s418 = sadd.s32 %s417, %s415
        %s419 = smul.addr %s418, 4
        %s420 = scalar_lea.vmem %s3, %s419
      $region64: #{lift_down_pool.3} parent=47 // pred_fallthru
        _
    $region48: #{lift_down_pool.3} parent=5 // pred_fallthru
      _
    %p421 = scmp.le.s32.totalorder 1, %s18
    %p422 = scmp.lt.s32.totalorder %s18, 3
    %p423 = pnand %p421, %p422
    %p424 = pneg %p423
    // Predicated region
    $region65: #{lift_down_pool.3} parent=5 // pred_check
      _
    $region66: #{lift_down_pool.3} parent=5 // pred_check_branch
      %426 = sbr.rel (%p423) target = $region68
    $region67: #{lift_down_pool.3} parent=5 // pred_region
      %s427 = ssub.s32 %s18, 1
      %p428 = scmp.lt.s32.totalorder %s27, 1
      %s429 = scalar_select %p428, %s27, 1
      %p430 = scmp.lt.s32.totalorder %s28, 0
      %s431 = scalar_select %p430, %s28, 0
      %s432 = sadd.s32 %s431, %s429
      %s433 = smul.addr %s432, 4
      %s434 = scalar_lea.vmem %s0, %s433
      %p435 = pneg %p58
      %p436 = pneg %p55
      %p437 = scmp.lt.s32.totalorder %s27, 1
      %s438 = scalar_select %p437, %s27, 1
      %p439 = scmp.lt.s32.totalorder %s28, 0
      %s440 = scalar_select %p439, %s28, 0
      %s441 = sadd.s32 %s440, %s438
      %s442 = smul.addr %s441, 4
      %s443 = scalar_lea.vmem %s1, %s442
      %p444 = pneg %p86
      %p445 = pneg %p83
      %p446 = scmp.lt.s32.totalorder %s27, 1
      %s447 = scalar_select %p446, %s27, 1
      %p448 = scmp.lt.s32.totalorder %s28, 0
      %s449 = scalar_select %p448, %s28, 0
      %s450 = sadd.s32 %s449, %s447
      %s451 = smul.addr %s450, 4
      %s452 = scalar_lea.vmem %s2, %s451
      %p453 = pneg %p114
      %p454 = pneg %p111
      %p455 = scmp.lt.s32.totalorder %s27, 1
      %s456 = scalar_select %p455, %s27, 1
      %p457 = scmp.lt.s32.totalorder %s28, 0
      %s458 = scalar_select %p457, %s28, 0
      %s459 = sadd.s32 %s458, %s456
      %s460 = smul.addr %s459, 4
      %s461 = scalar_lea.vmem %s3, %s460
      %p462 = pneg %p142
      %p463 = pneg %p139
      %p464 = pneg %p163
      %p465 = pneg %p160
      %p466 = pneg %p184
      %p467 = pneg %p181
      %p468 = pneg %p205
      %p469 = pneg %p202
      %p470 = pneg %p226
      %p471 = pneg %p223
      %p472 = pneg %p247
      %p473 = pneg %p244
      %p474 = pneg %p268
      %p475 = pneg %p265
      %p476 = pneg %p289
      %p477 = pneg %p286
      %p478 = pneg %p310
      %p479 = pneg %p307
      %p480 = pneg %p338
      %p481 = pneg %p335
      %p482 = scmp.lt.s32.totalorder %s27, 1
      %s483 = scalar_select %p482, %s27, 1
      %p484 = scmp.lt.s32.totalorder %s28, 0
      %s485 = scalar_select %p484, %s28, 0
      %s486 = sadd.s32 %s485, %s483
      %s487 = smul.addr %s486, 4
      %s488 = scalar_lea.vmem %s12, %s487
      %p489 = scmp.lt.s32.totalorder %s27, 1
      %s490 = scalar_select %p489, %s27, 1
      %p491 = scmp.lt.s32.totalorder %s28, 0
      %s492 = scalar_select %p491, %s28, 0
      %s493 = sadd.s32 %s492, %s490
      %s494 = smul.addr %s493, 4
      %s495 = scalar_lea.vmem %s0, %s494
      %p496 = scmp.lt.s32.totalorder %s27, 1
      %s497 = scalar_select %p496, %s27, 1
      %p498 = scmp.lt.s32.totalorder %s28, 0
      %s499 = scalar_select %p498, %s28, 0
      %s500 = sadd.s32 %s499, %s497
      %s501 = smul.addr %s500, 4
      %s502 = scalar_lea.vmem %s1, %s501
      %p503 = scmp.lt.s32.totalorder %s27, 1
      %s504 = scalar_select %p503, %s27, 1
      %p505 = scmp.lt.s32.totalorder %s28, 0
      %s506 = scalar_select %p505, %s28, 0
      %s507 = sadd.s32 %s506, %s504
      %s508 = smul.addr %s507, 4
      %s509 = scalar_lea.vmem %s2, %s508
      %p510 = scmp.lt.s32.totalorder %s27, 1
      %s511 = scalar_select %p510, %s27, 1
      %p512 = scmp.lt.s32.totalorder %s28, 0
      %s513 = scalar_select %p512, %s28, 0
      %s514 = sadd.s32 %s513, %s511
      %s515 = smul.addr %s514, 4
      %s516 = scalar_lea.vmem %s3, %s515
      %p517 = scmp.lt.s32.totalorder %s27, 1
      %s518 = scalar_select %p517, %s27, 1
      %p519 = scmp.lt.s32.totalorder %s28, 0
      %s520 = scalar_select %p519, %s28, 0
      %s521 = sadd.s32 %s520, %s518
      %s522 = smul.addr %s521, 4
      %s523 = scalar_lea.vmem %s12, %s522
      %vm525 = vcmask 650240
      %526 = vst.msk [vmem:[#allocation3] sm:$0xf] %vm525, 0
      %527 = vst.msk [vmem:[#allocation3 + $0x4] sm:$0xf] %vm525, 0
      %528 = vst.msk [vmem:[#allocation3 + $0x8] sm:$0xf] %vm525, 0
      %529 = vst.msk [vmem:[#allocation3 + $0xc] sm:$0xf] %vm525, 0
      %530 = vst.msk [vmem:[#allocation3 + $0x10] sm:$0xf] %vm525, 0
      %531 = vst.msk [vmem:[#allocation3 + $0x14] sm:$0xf] %vm525, 0
      %532 = vst.msk [vmem:[#allocation3 + $0x18] sm:$0xf] %vm525, 0
      %533 = vst.msk [vmem:[#allocation3 + $0x1c] sm:$0xf] %vm525, 0
      %534 = vst.msk [vmem:[#allocation3 + $0x20] sm:$0xf] %vm525, 0
      %535 = vst.msk [vmem:[#allocation3 + $0x24] sm:$0xf] %vm525, 0
      %536 = vst.msk [vmem:[#allocation3 + $0x28] sm:$0xf] %vm525, 0
      %537 = vst.msk [vmem:[#allocation3 + $0x2c] sm:$0xf] %vm525, 0
      %538 = vst.msk [vmem:[#allocation3 + $0x30] sm:$0xf] %vm525, 0
      %539 = vst.msk [vmem:[#allocation3 + $0x34] sm:$0xf] %vm525, 0
      %540 = vst.msk [vmem:[#allocation3 + $0x38] sm:$0xf] %vm525, 0
      %541 = vst.msk [vmem:[#allocation3 + $0x3c] sm:$0xf] %vm525, 0
      %542 = vst.msk [vmem:[#allocation3 + $0x40] sm:$0xf] %vm525, 0
      %543 = vst.msk [vmem:[#allocation3 + $0x44] sm:$0xf] %vm525, 0
      %v544 = vld [vmem:[%s495] sm:$0xf]
      %v545 = vld [vmem:[%s502] sm:$0xf]
      %v546 = vld [vmem:[%s509] sm:$0xf]
      %v547 = vld [vmem:[%s516] sm:$0xf]
      %v548 = vpack.c.bf16 %v544, %v544
      %vm549 = vcmask 893952
      %550 = vst.msk [vmem:[#allocation2] sm:$0x3] %vm549, %v548
      %v551 = vld [vmem:[#allocation2] sm:$0x3]
      %vm552 = vcmask 648192
      %553 = vst.msk [vmem:[#allocation3] sm:$0x3] %vm552, %v551
      %v554 = vld [vmem:[#allocation2] sm:$0x3]
      %556 = vst [vmem:[#allocation1] ss:$2 sm:$0xff] %v554
      %v557 = vld.sshfl [vmem:[#allocation1] sm:$0xff pattern:$0x75643120]
      %559 = vrot.lane.b32.xlu0 %v557, 127
      %v560 = vpop.permute.xlu0 %559
      %562 = vst.msk [vmem:[#allocation3 + $0x8] sm:$0x3] %vm552, %v560
      %v563 = vld [vmem:[#allocation2] sm:$0x3]
      %565 = vst [vmem:[#allocation1] ss:$2 sm:$0xff] %v563
      %v566 = vld.sshfl [vmem:[#allocation1] sm:$0xff pattern:$0x75643120]
      %568 = vrot.lane.b32.xlu0 %v566, 126
      %v569 = vpop.permute.xlu0 %568
      %571 = vst.msk [vmem:[#allocation3 + $0x10] sm:$0x3] %vm552, %v569
      %v572 = vld [vmem:[#allocation2] sm:$0x3]
      %574 = vst [vmem:[#allocation1] ss:$2 sm:$0xff] %v572
      %v575 = vld.sshfl [vmem:[#allocation1] sm:$0xff pattern:$0x75643120]
      %577 = vrot.lane.b32.xlu0 %v575, 118
      %v578 = vpop.permute.xlu0 %577
      %580 = vst.msk [vmem:[#allocation3 + $0x18] sm:$0x3] %vm552, %v578
      %v581 = vld [vmem:[#allocation2] sm:$0x3]
      %583 = vst [vmem:[#allocation1] ss:$2 sm:$0xff] %v581
      %v584 = vld.sshfl [vmem:[#allocation1] sm:$0xff pattern:$0x75643120]
      %586 = vrot.lane.b32.xlu0 %v584, 117
      %v587 = vpop.permute.xlu0 %586
      %589 = vst.msk [vmem:[#allocation3 + $0x20] sm:$0x3] %vm552, %v587
      %v590 = vld [vmem:[#allocation2] sm:$0x3]
      %592 = vst [vmem:[#allocation1] ss:$2 sm:$0xff] %v590
      %v593 = vld.sshfl [vmem:[#allocation1] sm:$0xff pattern:$0x75643120]
      %595 = vrot.lane.b32.xlu0 %v593, 116
      %v596 = vpop.permute.xlu0 %595
      %598 = vst.msk [vmem:[#allocation3 + $0x28] sm:$0x3] %vm552, %v596
      %v599 = vld [vmem:[#allocation2] sm:$0x3]
      %601 = vst [vmem:[#allocation1] ss:$2 sm:$0xff] %v599
      %v602 = vld.sshfl [vmem:[#allocation1] sm:$0xff pattern:$0x75643120]
      %604 = vrot.lane.b32.xlu0 %v602, 108
      %v605 = vpop.permute.xlu0 %604
      %607 = vst.msk [vmem:[#allocation3 + $0x30] sm:$0x3] %vm552, %v605
      %v608 = vld [vmem:[#allocation2] sm:$0x3]
      %610 = vst [vmem:[#allocation1] ss:$2 sm:$0xff] %v608
      %v611 = vld.sshfl [vmem:[#allocation1] sm:$0xff pattern:$0x75643120]
      %613 = vrot.lane.b32.xlu0 %v611, 107
      %v614 = vpop.permute.xlu0 %613
      %616 = vst.msk [vmem:[#allocation3 + $0x38] sm:$0x3] %vm552, %v614
      %v617 = vld [vmem:[#allocation2] sm:$0x3]
      %619 = vst [vmem:[#allocation1] ss:$2 sm:$0xff] %v617
      %v620 = vld.sshfl [vmem:[#allocation1] sm:$0xff pattern:$0x75643120]
      %622 = vrot.lane.b32.xlu0 %v620, 106
      %v623 = vpop.permute.xlu0 %622
      %625 = vst.msk [vmem:[#allocation3 + $0x40] sm:$0x3] %vm552, %v623
      %v626 = vld [vmem:[%s4] sm:$0xf]
      %v627 = vld [vmem:[#allocation3] sm:$0xf]
      %v628 = vld [vmem:[#allocation3 + $0x4] sm:$0xf]
      %v629 = vld [vmem:[#allocation3 + $0x8] sm:$0xf]
      %v630 = vld [vmem:[#allocation3 + $0xc] sm:$0xf]
      %v631 = vld [vmem:[#allocation3 + $0x10] sm:$0xf]
      %v632 = vld [vmem:[#allocation3 + $0x14] sm:$0xf]
      %v633 = vld [vmem:[#allocation3 + $0x18] sm:$0xf]
      %v634 = vld [vmem:[#allocation3 + $0x1c] sm:$0xf]
      %v635 = vld [vmem:[#allocation3 + $0x20] sm:$0xf]
      %v636 = vld [vmem:[#allocation3 + $0x24] sm:$0xf]
      %v637 = vld [vmem:[#allocation3 + $0x28] sm:$0xf]
      %v638 = vld [vmem:[#allocation3 + $0x2c] sm:$0xf]
      %v639 = vld [vmem:[#allocation3 + $0x30] sm:$0xf]
      %v640 = vld [vmem:[#allocation3 + $0x34] sm:$0xf]
      %v641 = vld [vmem:[#allocation3 + $0x38] sm:$0xf]
      %v642 = vld [vmem:[#allocation3 + $0x3c] sm:$0xf]
      %v643 = vld [vmem:[#allocation3 + $0x40] sm:$0xf]
      %v644 = vld [vmem:[#allocation3 + $0x44] sm:$0xf]
      %v645 = vld [vmem:[%s5] sm:$0xf]
      %647 = vset.pattern.permute.xlu0 0
      %648 = vperm.xlu0 %647, %v645
      %v649 = vpop.permute.xlu0 %648
      %652 = vst [vmem:[#allocation1] ss:$4 sm:$0xff] %v626
      %v653 = vld.sshfl [vmem:[#allocation1] sm:$0xff pattern:$0x73625140]
      %v654 = vld.sshfl [vmem:[#allocation1 + $0x8] sm:$0xff pattern:$0x73625140]
      %v674 = vunpack.c.l.b16 %v627
      %v675 = vunpack.c.l.b16 %v628
      %v676 = vunpack.c.l.b16 %v629
      %v677 = vunpack.c.l.b16 %v630
      %v678 = vunpack.c.l.b16 %v631
      %v679 = vunpack.c.l.b16 %v632
      %v680 = vunpack.c.l.b16 %v633
      %v681 = vunpack.c.l.b16 %v634
      %v682 = vunpack.c.l.b16 %v635
      %v683 = vunpack.c.l.b16 %v636
      %v684 = vunpack.c.l.b16 %v637
      %v685 = vunpack.c.l.b16 %v638
      %v686 = vunpack.c.l.b16 %v639
      %v687 = vunpack.c.l.b16 %v640
      %v688 = vunpack.c.l.b16 %v641
      %v689 = vunpack.c.l.b16 %v642
      %v690 = vunpack.c.l.b16 %v643
      %v691 = vunpack.c.l.b16 %v644
      %v692 = vpack.c.b16 %v675, %v674
      %v693 = vpack.c.b16 %v677, %v676
      %v694 = vpack.c.b16 %v679, %v678
      %v695 = vpack.c.b16 %v681, %v680
      %v696 = vpack.c.b16 %v683, %v682
      %v697 = vpack.c.b16 %v685, %v684
      %v698 = vpack.c.b16 %v687, %v686
      %v699 = vpack.c.b16 %v689, %v688
      %v700 = vpack.c.b16 %v691, %v690
      %vm710 = vcmask 130048
      %v711 = vsel %vm710, %v654, 0
      %713 = vmatpush.bf16.msra.mxu0 %v699
      %714 = vmatpush.bf16.msra.mxu0 %v698
      %715 = vmatpush.bf16.msra.mxu0 %v697
      %716 = vmatpush.bf16.msra.mxu0 %v696
      %717 = vmatpush.bf16.msra.mxu0 %v695
      %718 = vmatpush.bf16.msra.mxu0 %v694
      %719 = vmatpush.bf16.msra.mxu0 %v693
      %720 = vmatpush.bf16.msra.mxu0 %v692
      %721 = vmatmul.bf16.gmra.mxu0 %v653
      %v722 = vpop.f32.mrf.mxu0
      %v723 = vadd.f32 %v649, %v722
      %v724 = vpop.f32.mrf.mxu0
      %725 = vdwg.mxu0
      %726 = vmatpush.bf16.msra.mxu0 0
      %727 = vmatpush.bf16.msra.mxu0 0
      %728 = vmatpush.bf16.msra.mxu0 0
      %729 = vmatpush.bf16.msra.mxu0 0
      %730 = vmatpush.bf16.msra.mxu0 0
      %731 = vmatpush.bf16.msra.mxu0 0
      %732 = vmatpush.bf16.msra.mxu0 0
      %733 = vmatpush.bf16.msra.mxu0 %v700
      %734 = vmatmul.bf16.gmra.mxu0 %v711
      %v735 = vpop.f32.mrf.mxu0
      %v736 = vadd.f32 %v723, %v735
      %v737 = vpop.f32.mrf.mxu0
      %738 = vdwg.mxu0
      %v739 = vmax.f32 %v736, 0.0
      %v740 = vld [vmem:[%s6] sm:$0x3]
      %v741 = vpack.c.bf16 %v739, %v739
      %v742 = vld [vmem:[%s7] sm:$0xf]
      %744 = vset.pattern.permute.xlu0 0
      %745 = vperm.xlu0 %744, %v742
      %v746 = vpop.permute.xlu0 %745
      %vm748 = vcmask 31744
      %v750 = vsel %vm748, %v740, 0
      %vm752 = vcmask 1041408
      %v754 = vsel %vm752, %v741, 0
      %756 = vmatpush.bf16.msra.mxu0 0
      %757 = vmatpush.bf16.msra.mxu0 0
      %758 = vmatpush.bf16.msra.mxu0 0
      %759 = vmatpush.bf16.msra.mxu0 0
      %760 = vmatpush.bf16.msra.mxu0 0
      %761 = vmatpush.bf16.msra.mxu0 0
      %762 = vmatpush.bf16.msra.mxu0 0
      %763 = vmatpush.bf16.msra.mxu0 %v754
      %764 = vmatmul.bf16.gmra.mxu0 %v750
      %v765 = vpop.f32.mrf.mxu0
      %v766 = vadd.f32 %v746, %v765
      %v767 = vpop.f32.mrf.mxu0
      %768 = vdwg.mxu0
      %v769 = vtanh.pop %v766
      %771 = vrot.lane.b32.xlu0 %v769, 11
      %v772 = vpop.permute.xlu0 %771
      %v774 = vsub.f32 %v545, %v772
      %v775 = vld [vmem:[%s502] sm:$0xf]
      %v776 = vpack.c.bf16 %v775, %v775
      %777 = vst.msk [vmem:[#allocation2] sm:$0x3] %vm549, %v776
      %v778 = vld [vmem:[#allocation2] sm:$0x3]
      %779 = vst.msk [vmem:[#allocation3] sm:$0x3] %vm552, %v778
      %v780 = vld [vmem:[#allocation2] sm:$0x3]
      %782 = vst [vmem:[#allocation1] ss:$2 sm:$0xff] %v780
      %v783 = vld.sshfl [vmem:[#allocation1] sm:$0xff pattern:$0x75643120]
      %785 = vrot.lane.b32.xlu0 %v783, 127
      %v786 = vpop.permute.xlu0 %785
      %788 = vst.msk [vmem:[#allocation3 + $0x8] sm:$0x3] %vm552, %v786
      %v789 = vld [vmem:[#allocation2] sm:$0x3]
      %791 = vst [vmem:[#allocation1] ss:$2 sm:$0xff] %v789
      %v792 = vld.sshfl [vmem:[#allocation1] sm:$0xff pattern:$0x75643120]
      %794 = vrot.lane.b32.xlu0 %v792, 126
      %v795 = vpop.permute.xlu0 %794
      %797 = vst.msk [vmem:[#allocation3 + $0x10] sm:$0x3] %vm552, %v795
      %v798 = vld [vmem:[#allocation2] sm:$0x3]
      %800 = vst [vmem:[#allocation1] ss:$2 sm:$0xff] %v798
      %v801 = vld.sshfl [vmem:[#allocation1] sm:$0xff pattern:$0x75643120]
      %803 = vrot.lane.b32.xlu0 %v801, 118
      %v804 = vpop.permute.xlu0 %803
      %806 = vst.msk [vmem:[#allocation3 + $0x18] sm:$0x3] %vm552, %v804
      %v807 = vld [vmem:[#allocation2] sm:$0x3]
      %809 = vst [vmem:[#allocation1] ss:$2 sm:$0xff] %v807
      %v810 = vld.sshfl [vmem:[#allocation1] sm:$0xff pattern:$0x75643120]
      %812 = vrot.lane.b32.xlu0 %v810, 117
      %v813 = vpop.permute.xlu0 %812
      %815 = vst.msk [vmem:[#allocation3 + $0x20] sm:$0x3] %vm552, %v813
      %v816 = vld [vmem:[#allocation2] sm:$0x3]
      %818 = vst [vmem:[#allocation1] ss:$2 sm:$0xff] %v816
      %v819 = vld.sshfl [vmem:[#allocation1] sm:$0xff pattern:$0x75643120]
      %821 = vrot.lane.b32.xlu0 %v819, 116
      %v822 = vpop.permute.xlu0 %821
      %824 = vst.msk [vmem:[#allocation3 + $0x28] sm:$0x3] %vm552, %v822
      %v825 = vld [vmem:[#allocation2] sm:$0x3]
      %827 = vst [vmem:[#allocation1] ss:$2 sm:$0xff] %v825
      %v828 = vld.sshfl [vmem:[#allocation1] sm:$0xff pattern:$0x75643120]
      %830 = vrot.lane.b32.xlu0 %v828, 108
      %v831 = vpop.permute.xlu0 %830
      %833 = vst.msk [vmem:[#allocation3 + $0x30] sm:$0x3] %vm552, %v831
      %v834 = vld [vmem:[#allocation2] sm:$0x3]
      %836 = vst [vmem:[#allocation1] ss:$2 sm:$0xff] %v834
      %v837 = vld.sshfl [vmem:[#allocation1] sm:$0xff pattern:$0x75643120]
      %839 = vrot.lane.b32.xlu0 %v837, 107
      %v840 = vpop.permute.xlu0 %839
      %842 = vst.msk [vmem:[#allocation3 + $0x38] sm:$0x3] %vm552, %v840
      %v843 = vld [vmem:[#allocation2] sm:$0x3]
      %845 = vst [vmem:[#allocation1] ss:$2 sm:$0xff] %v843
      %v846 = vld.sshfl [vmem:[#allocation1] sm:$0xff pattern:$0x75643120]
      %848 = vrot.lane.b32.xlu0 %v846, 106
      %v849 = vpop.permute.xlu0 %848
      %851 = vst.msk [vmem:[#allocation3 + $0x40] sm:$0x3] %vm552, %v849
      %v852 = vld [vmem:[%s8] sm:$0xf]
      %v853 = vld [vmem:[#allocation3] sm:$0xf]
      %v854 = vld [vmem:[#allocation3 + $0x4] sm:$0xf]
      %v855 = vld [vmem:[#allocation3 + $0x8] sm:$0xf]
      %v856 = vld [vmem:[#allocation3 + $0xc] sm:$0xf]
      %v857 = vld [vmem:[#allocation3 + $0x10] sm:$0xf]
      %v858 = vld [vmem:[#allocation3 + $0x14] sm:$0xf]
      %v859 = vld [vmem:[#allocation3 + $0x18] sm:$0xf]
      %v860 = vld [vmem:[#allocation3 + $0x1c] sm:$0xf]
      %v861 = vld [vmem:[#allocation3 + $0x20] sm:$0xf]
      %v862 = vld [vmem:[#allocation3 + $0x24] sm:$0xf]
      %v863 = vld [vmem:[#allocation3 + $0x28] sm:$0xf]
      %v864 = vld [vmem:[#allocation3 + $0x2c] sm:$0xf]
      %v865 = vld [vmem:[#allocation3 + $0x30] sm:$0xf]
      %v866 = vld [vmem:[#allocation3 + $0x34] sm:$0xf]
      %v867 = vld [vmem:[#allocation3 + $0x38] sm:$0xf]
      %v868 = vld [vmem:[#allocation3 + $0x3c] sm:$0xf]
      %v869 = vld [vmem:[#allocation3 + $0x40] sm:$0xf]
      %v870 = vld [vmem:[#allocation3 + $0x44] sm:$0xf]
      %v871 = vld [vmem:[%s9] sm:$0xf]
      %873 = vset.pattern.permute.xlu0 0
      %874 = vperm.xlu0 %873, %v871
      %v875 = vpop.permute.xlu0 %874
      %878 = vst [vmem:[#allocation1] ss:$4 sm:$0xff] %v852
      %v879 = vld.sshfl [vmem:[#allocation1] sm:$0xff pattern:$0x73625140]
      %v880 = vld.sshfl [vmem:[#allocation1 + $0x8] sm:$0xff pattern:$0x73625140]
      %v900 = vunpack.c.l.b16 %v853
      %v901 = vunpack.c.l.b16 %v854
      %v902 = vunpack.c.l.b16 %v855
      %v903 = vunpack.c.l.b16 %v856
      %v904 = vunpack.c.l.b16 %v857
      %v905 = vunpack.c.l.b16 %v858
      %v906 = vunpack.c.l.b16 %v859
      %v907 = vunpack.c.l.b16 %v860
      %v908 = vunpack.c.l.b16 %v861
      %v909 = vunpack.c.l.b16 %v862
      %v910 = vunpack.c.l.b16 %v863
      %v911 = vunpack.c.l.b16 %v864
      %v912 = vunpack.c.l.b16 %v865
      %v913 = vunpack.c.l.b16 %v866
      %v914 = vunpack.c.l.b16 %v867
      %v915 = vunpack.c.l.b16 %v868
      %v916 = vunpack.c.l.b16 %v869
      %v917 = vunpack.c.l.b16 %v870
      %v918 = vpack.c.b16 %v901, %v900
      %v919 = vpack.c.b16 %v903, %v902
      %v920 = vpack.c.b16 %v905, %v904
      %v921 = vpack.c.b16 %v907, %v906
      %v922 = vpack.c.b16 %v909, %v908
      %v923 = vpack.c.b16 %v911, %v910
      %v924 = vpack.c.b16 %v913, %v912
      %v925 = vpack.c.b16 %v915, %v914
      %v926 = vpack.c.b16 %v917, %v916
      %v936 = vsel %vm710, %v880, 0
      %938 = vmatpush.bf16.msra.mxu0 %v925
      %939 = vmatpush.bf16.msra.mxu0 %v924
      %940 = vmatpush.bf16.msra.mxu0 %v923
      %941 = vmatpush.bf16.msra.mxu0 %v922
      %942 = vmatpush.bf16.msra.mxu0 %v921
      %943 = vmatpush.bf16.msra.mxu0 %v920
      %944 = vmatpush.bf16.msra.mxu0 %v919
      %945 = vmatpush.bf16.msra.mxu0 %v918
      %946 = vmatmul.bf16.gmra.mxu0 %v879
      %v947 = vpop.f32.mrf.mxu0
      %v948 = vadd.f32 %v875, %v947
      %v949 = vpop.f32.mrf.mxu0
      %950 = vdwg.mxu0
      %951 = vmatpush.bf16.msra.mxu0 0
      %952 = vmatpush.bf16.msra.mxu0 0
      %953 = vmatpush.bf16.msra.mxu0 0
      %954 = vmatpush.bf16.msra.mxu0 0
      %955 = vmatpush.bf16.msra.mxu0 0
      %956 = vmatpush.bf16.msra.mxu0 0
      %957 = vmatpush.bf16.msra.mxu0 0
      %958 = vmatpush.bf16.msra.mxu0 %v926
      %959 = vmatmul.bf16.gmra.mxu0 %v936
      %v960 = vpop.f32.mrf.mxu0
      %v961 = vadd.f32 %v948, %v960
      %v962 = vpop.f32.mrf.mxu0
      %963 = vdwg.mxu0
      %v964 = vmax.f32 %v961, 0.0
      %v965 = vld [vmem:[%s10] sm:$0x3]
      %v966 = vpack.c.bf16 %v964, %v964
      %v967 = vld [vmem:[%s11] sm:$0xf]
      %969 = vset.pattern.permute.xlu0 0
      %970 = vperm.xlu0 %969, %v967
      %v971 = vpop.permute.xlu0 %970
      %v974 = vsel %vm748, %v965, 0
      %v977 = vsel %vm752, %v966, 0
      %979 = vmatpush.bf16.msra.mxu0 0
      %980 = vmatpush.bf16.msra.mxu0 0
      %981 = vmatpush.bf16.msra.mxu0 0
      %982 = vmatpush.bf16.msra.mxu0 0
      %983 = vmatpush.bf16.msra.mxu0 0
      %984 = vmatpush.bf16.msra.mxu0 0
      %985 = vmatpush.bf16.msra.mxu0 0
      %986 = vmatpush.bf16.msra.mxu0 %v977
      %987 = vmatmul.bf16.gmra.mxu0 %v974
      %v988 = vpop.f32.mrf.mxu0
      %v989 = vadd.f32 %v971, %v988
      %v990 = vpop.f32.mrf.mxu0
      %991 = vdwg.mxu0
      %v992 = vtanh.pop %v989
      %994 = vrot.lane.b32.xlu0 %v992, 11
      %v995 = vpop.permute.xlu0 %994
      %v997 = vadd.f32 %v544, %v995
      %v998 = vadd.f32 %v774, %v997
      %v999 = vld [vmem:[%s509] sm:$0xf]
      %v1000 = vpack.c.bf16 %v999, %v999
      %1001 = vst.msk [vmem:[#allocation2] sm:$0x3] %vm549, %v1000
      %v1002 = vld [vmem:[#allocation2] sm:$0x3]
      %1003 = vst.msk [vmem:[#allocation3] sm:$0x3] %vm552, %v1002
      %v1004 = vld [vmem:[#allocation2] sm:$0x3]
      %1006 = vst [vmem:[#allocation1] ss:$2 sm:$0xff] %v1004
      %v1007 = vld.sshfl [vmem:[#allocation1] sm:$0xff pattern:$0x75643120]
      %1009 = vrot.lane.b32.xlu0 %v1007, 127
      %v1010 = vpop.permute.xlu0 %1009
      %1012 = vst.msk [vmem:[#allocation3 + $0x8] sm:$0x3] %vm552, %v1010
      %v1013 = vld [vmem:[#allocation2] sm:$0x3]
      %1015 = vst [vmem:[#allocation1] ss:$2 sm:$0xff] %v1013
      %v1016 = vld.sshfl [vmem:[#allocation1] sm:$0xff pattern:$0x75643120]
      %1018 = vrot.lane.b32.xlu0 %v1016, 126
      %v1019 = vpop.permute.xlu0 %1018
      %1021 = vst.msk [vmem:[#allocation3 + $0x10] sm:$0x3] %vm552, %v1019
      %v1022 = vld [vmem:[#allocation2] sm:$0x3]
      %1024 = vst [vmem:[#allocation1] ss:$2 sm:$0xff] %v1022
      %v1025 = vld.sshfl [vmem:[#allocation1] sm:$0xff pattern:$0x75643120]
      %1027 = vrot.lane.b32.xlu0 %v1025, 118
      %v1028 = vpop.permute.xlu0 %1027
      %1030 = vst.msk [vmem:[#allocation3 + $0x18] sm:$0x3] %vm552, %v1028
      %v1031 = vld [vmem:[#allocation2] sm:$0x3]
      %1033 = vst [vmem:[#allocation1] ss:$2 sm:$0xff] %v1031
      %v1034 = vld.sshfl [vmem:[#allocation1] sm:$0xff pattern:$0x75643120]
      %1036 = vrot.lane.b32.xlu0 %v1034, 117
      %v1037 = vpop.permute.xlu0 %1036
      %1039 = vst.msk [vmem:[#allocation3 + $0x20] sm:$0x3] %vm552, %v1037
      %v1040 = vld [vmem:[#allocation2] sm:$0x3]
      %1042 = vst [vmem:[#allocation1] ss:$2 sm:$0xff] %v1040
      %v1043 = vld.sshfl [vmem:[#allocation1] sm:$0xff pattern:$0x75643120]
      %1045 = vrot.lane.b32.xlu0 %v1043, 116
      %v1046 = vpop.permute.xlu0 %1045
      %1048 = vst.msk [vmem:[#allocation3 + $0x28] sm:$0x3] %vm552, %v1046
      %v1049 = vld [vmem:[#allocation2] sm:$0x3]
      %1051 = vst [vmem:[#allocation1] ss:$2 sm:$0xff] %v1049
      %v1052 = vld.sshfl [vmem:[#allocation1] sm:$0xff pattern:$0x75643120]
      %1054 = vrot.lane.b32.xlu0 %v1052, 108
      %v1055 = vpop.permute.xlu0 %1054
      %1057 = vst.msk [vmem:[#allocation3 + $0x30] sm:$0x3] %vm552, %v1055
      %v1058 = vld [vmem:[#allocation2] sm:$0x3]
      %1060 = vst [vmem:[#allocation1] ss:$2 sm:$0xff] %v1058
      %v1061 = vld.sshfl [vmem:[#allocation1] sm:$0xff pattern:$0x75643120]
      %1063 = vrot.lane.b32.xlu0 %v1061, 107
      %v1064 = vpop.permute.xlu0 %1063
      %1066 = vst.msk [vmem:[#allocation3 + $0x38] sm:$0x3] %vm552, %v1064
      %v1067 = vld [vmem:[#allocation2] sm:$0x3]
      %1069 = vst [vmem:[#allocation1] ss:$2 sm:$0xff] %v1067
      %v1070 = vld.sshfl [vmem:[#allocation1] sm:$0xff pattern:$0x75643120]
      %1072 = vrot.lane.b32.xlu0 %v1070, 106
      %v1073 = vpop.permute.xlu0 %1072
      %1075 = vst.msk [vmem:[#allocation3 + $0x40] sm:$0x3] %vm552, %v1073
      %v1076 = vld [vmem:[%s4] sm:$0xf]
      %v1077 = vld [vmem:[#allocation3] sm:$0xf]
      %v1078 = vld [vmem:[#allocation3 + $0x4] sm:$0xf]
      %v1079 = vld [vmem:[#allocation3 + $0x8] sm:$0xf]
      %v1080 = vld [vmem:[#allocation3 + $0xc] sm:$0xf]
      %v1081 = vld [vmem:[#allocation3 + $0x10] sm:$0xf]
      %v1082 = vld [vmem:[#allocation3 + $0x14] sm:$0xf]
      %v1083 = vld [vmem:[#allocation3 + $0x18] sm:$0xf]
      %v1084 = vld [vmem:[#allocation3 + $0x1c] sm:$0xf]
      %v1085 = vld [vmem:[#allocation3 + $0x20] sm:$0xf]
      %v1086 = vld [vmem:[#allocation3 + $0x24] sm:$0xf]
      %v1087 = vld [vmem:[#allocation3 + $0x28] sm:$0xf]
      %v1088 = vld [vmem:[#allocation3 + $0x2c] sm:$0xf]
      %v1089 = vld [vmem:[#allocation3 + $0x30] sm:$0xf]
      %v1090 = vld [vmem:[#allocation3 + $0x34] sm:$0xf]
      %v1091 = vld [vmem:[#allocation3 + $0x38] sm:$0xf]
      %v1092 = vld [vmem:[#allocation3 + $0x3c] sm:$0xf]
      %v1093 = vld [vmem:[#allocation3 + $0x40] sm:$0xf]
      %v1094 = vld [vmem:[#allocation3 + $0x44] sm:$0xf]
      %v1095 = vld [vmem:[%s5] sm:$0xf]
      %1097 = vset.pattern.permute.xlu0 0
      %1098 = vperm.xlu0 %1097, %v1095
      %v1099 = vpop.permute.xlu0 %1098
      %1102 = vst [vmem:[#allocation1] ss:$4 sm:$0xff] %v1076
      %v1103 = vld.sshfl [vmem:[#allocation1] sm:$0xff pattern:$0x73625140]
      %v1104 = vld.sshfl [vmem:[#allocation1 + $0x8] sm:$0xff pattern:$0x73625140]
      %v1124 = vunpack.c.l.b16 %v1077
      %v1125 = vunpack.c.l.b16 %v1078
      %v1126 = vunpack.c.l.b16 %v1079
      %v1127 = vunpack.c.l.b16 %v1080
      %v1128 = vunpack.c.l.b16 %v1081
      %v1129 = vunpack.c.l.b16 %v1082
      %v1130 = vunpack.c.l.b16 %v1083
      %v1131 = vunpack.c.l.b16 %v1084
      %v1132 = vunpack.c.l.b16 %v1085
      %v1133 = vunpack.c.l.b16 %v1086
      %v1134 = vunpack.c.l.b16 %v1087
      %v1135 = vunpack.c.l.b16 %v1088
      %v1136 = vunpack.c.l.b16 %v1089
      %v1137 = vunpack.c.l.b16 %v1090
      %v1138 = vunpack.c.l.b16 %v1091
      %v1139 = vunpack.c.l.b16 %v1092
      %v1140 = vunpack.c.l.b16 %v1093
      %v1141 = vunpack.c.l.b16 %v1094
      %v1142 = vpack.c.b16 %v1125, %v1124
      %v1143 = vpack.c.b16 %v1127, %v1126
      %v1144 = vpack.c.b16 %v1129, %v1128
      %v1145 = vpack.c.b16 %v1131, %v1130
      %v1146 = vpack.c.b16 %v1133, %v1132
      %v1147 = vpack.c.b16 %v1135, %v1134
      %v1148 = vpack.c.b16 %v1137, %v1136
      %v1149 = vpack.c.b16 %v1139, %v1138
      %v1150 = vpack.c.b16 %v1141, %v1140
      %v1160 = vsel %vm710, %v1104, 0
      %1162 = vmatpush.bf16.msra.mxu0 %v1149
      %1163 = vmatpush.bf16.msra.mxu0 %v1148
      %1164 = vmatpush.bf16.msra.mxu0 %v1147
      %1165 = vmatpush.bf16.msra.mxu0 %v1146
      %1166 = vmatpush.bf16.msra.mxu0 %v1145
      %1167 = vmatpush.bf16.msra.mxu0 %v1144
      %1168 = vmatpush.bf16.msra.mxu0 %v1143
      %1169 = vmatpush.bf16.msra.mxu0 %v1142
      %1170 = vmatmul.bf16.gmra.mxu0 %v1103
      %v1171 = vpop.f32.mrf.mxu0
      %v1172 = vadd.f32 %v1099, %v1171
      %v1173 = vpop.f32.mrf.mxu0
      %1174 = vdwg.mxu0
      %1175 = vmatpush.bf16.msra.mxu0 0
      %1176 = vmatpush.bf16.msra.mxu0 0
      %1177 = vmatpush.bf16.msra.mxu0 0
      %1178 = vmatpush.bf16.msra.mxu0 0
      %1179 = vmatpush.bf16.msra.mxu0 0
      %1180 = vmatpush.bf16.msra.mxu0 0
      %1181 = vmatpush.bf16.msra.mxu0 0
      %1182 = vmatpush.bf16.msra.mxu0 %v1150
      %1183 = vmatmul.bf16.gmra.mxu0 %v1160
      %v1184 = vpop.f32.mrf.mxu0
      %v1185 = vadd.f32 %v1172, %v1184
      %v1186 = vpop.f32.mrf.mxu0
      %1187 = vdwg.mxu0
      %v1188 = vmax.f32 %v1185, 0.0
      %v1189 = vld [vmem:[%s6] sm:$0x3]
      %v1190 = vpack.c.bf16 %v1188, %v1188
      %v1191 = vld [vmem:[%s7] sm:$0xf]
      %1193 = vset.pattern.permute.xlu0 0
      %1194 = vperm.xlu0 %1193, %v1191
      %v1195 = vpop.permute.xlu0 %1194
      %v1198 = vsel %vm748, %v1189, 0
      %v1201 = vsel %vm752, %v1190, 0
      %1203 = vmatpush.bf16.msra.mxu0 0
      %1204 = vmatpush.bf16.msra.mxu0 0
      %1205 = vmatpush.bf16.msra.mxu0 0
      %1206 = vmatpush.bf16.msra.mxu0 0
      %1207 = vmatpush.bf16.msra.mxu0 0
      %1208 = vmatpush.bf16.msra.mxu0 0
      %1209 = vmatpush.bf16.msra.mxu0 0
      %1210 = vmatpush.bf16.msra.mxu0 %v1201
      %1211 = vmatmul.bf16.gmra.mxu0 %v1198
      %v1212 = vpop.f32.mrf.mxu0
      %v1213 = vadd.f32 %v1195, %v1212
      %v1214 = vpop.f32.mrf.mxu0
      %1215 = vdwg.mxu0
      %v1216 = vtanh.pop %v1213
      %1218 = vrot.lane.b32.xlu0 %v1216, 11
      %v1219 = vpop.permute.xlu0 %1218
      %v1221 = vsub.f32 %v547, %v1219
      %v1222 = vadd.f32 %v998, %v1221
      %v1223 = vld [vmem:[%s516] sm:$0xf]
      %v1224 = vpack.c.bf16 %v1223, %v1223
      %1225 = vst.msk [vmem:[#allocation2] sm:$0x3] %vm549, %v1224
      %v1226 = vld [vmem:[#allocation2] sm:$0x3]
      %1227 = vst.msk [vmem:[#allocation3] sm:$0x3] %vm552, %v1226
      %v1228 = vld [vmem:[#allocation2] sm:$0x3]
      %1230 = vst [vmem:[#allocation1] ss:$2 sm:$0xff] %v1228
      %v1231 = vld.sshfl [vmem:[#allocation1] sm:$0xff pattern:$0x75643120]
      %1233 = vrot.lane.b32.xlu0 %v1231, 127
      %v1234 = vpop.permute.xlu0 %1233
      %1236 = vst.msk [vmem:[#allocation3 + $0x8] sm:$0x3] %vm552, %v1234
      %v1237 = vld [vmem:[#allocation2] sm:$0x3]
      %1239 = vst [vmem:[#allocation1] ss:$2 sm:$0xff] %v1237
      %v1240 = vld.sshfl [vmem:[#allocation1] sm:$0xff pattern:$0x75643120]
      %1242 = vrot.lane.b32.xlu0 %v1240, 126
      %v1243 = vpop.permute.xlu0 %1242
      %1245 = vst.msk [vmem:[#allocation3 + $0x10] sm:$0x3] %vm552, %v1243
      %v1246 = vld [vmem:[#allocation2] sm:$0x3]
      %1248 = vst [vmem:[#allocation1] ss:$2 sm:$0xff] %v1246
      %v1249 = vld.sshfl [vmem:[#allocation1] sm:$0xff pattern:$0x75643120]
      %1251 = vrot.lane.b32.xlu0 %v1249, 118
      %v1252 = vpop.permute.xlu0 %1251
      %1254 = vst.msk [vmem:[#allocation3 + $0x18] sm:$0x3] %vm552, %v1252
      %v1255 = vld [vmem:[#allocation2] sm:$0x3]
      %1257 = vst [vmem:[#allocation1] ss:$2 sm:$0xff] %v1255
      %v1258 = vld.sshfl [vmem:[#allocation1] sm:$0xff pattern:$0x75643120]
      %1260 = vrot.lane.b32.xlu0 %v1258, 117
      %v1261 = vpop.permute.xlu0 %1260
      %1263 = vst.msk [vmem:[#allocation3 + $0x20] sm:$0x3] %vm552, %v1261
      %v1264 = vld [vmem:[#allocation2] sm:$0x3]
      %1266 = vst [vmem:[#allocation1] ss:$2 sm:$0xff] %v1264
      %v1267 = vld.sshfl [vmem:[#allocation1] sm:$0xff pattern:$0x75643120]
      %1269 = vrot.lane.b32.xlu0 %v1267, 116
      %v1270 = vpop.permute.xlu0 %1269
      %1272 = vst.msk [vmem:[#allocation3 + $0x28] sm:$0x3] %vm552, %v1270
      %v1273 = vld [vmem:[#allocation2] sm:$0x3]
      %1275 = vst [vmem:[#allocation1] ss:$2 sm:$0xff] %v1273
      %v1276 = vld.sshfl [vmem:[#allocation1] sm:$0xff pattern:$0x75643120]
      %1278 = vrot.lane.b32.xlu0 %v1276, 108
      %v1279 = vpop.permute.xlu0 %1278
      %1281 = vst.msk [vmem:[#allocation3 + $0x30] sm:$0x3] %vm552, %v1279
      %v1282 = vld [vmem:[#allocation2] sm:$0x3]
      %1284 = vst [vmem:[#allocation1] ss:$2 sm:$0xff] %v1282
      %v1285 = vld.sshfl [vmem:[#allocation1] sm:$0xff pattern:$0x75643120]
      %1287 = vrot.lane.b32.xlu0 %v1285, 107
      %v1288 = vpop.permute.xlu0 %1287
      %1290 = vst.msk [vmem:[#allocation3 + $0x38] sm:$0x3] %vm552, %v1288
      %v1291 = vld [vmem:[#allocation2] sm:$0x3]
      %1293 = vst [vmem:[#allocation1] ss:$2 sm:$0xff] %v1291
      %v1294 = vld.sshfl [vmem:[#allocation1] sm:$0xff pattern:$0x75643120]
      %1296 = vrot.lane.b32.xlu0 %v1294, 106
      %v1297 = vpop.permute.xlu0 %1296
      %1299 = vst.msk [vmem:[#allocation3 + $0x40] sm:$0x3] %vm552, %v1297
      %v1300 = vld [vmem:[%s8] sm:$0xf]
      %v1301 = vld [vmem:[#allocation3] sm:$0xf]
      %v1302 = vld [vmem:[#allocation3 + $0x4] sm:$0xf]
      %v1303 = vld [vmem:[#allocation3 + $0x8] sm:$0xf]
      %v1304 = vld [vmem:[#allocation3 + $0xc] sm:$0xf]
      %v1305 = vld [vmem:[#allocation3 + $0x10] sm:$0xf]
      %v1306 = vld [vmem:[#allocation3 + $0x14] sm:$0xf]
      %v1307 = vld [vmem:[#allocation3 + $0x18] sm:$0xf]
      %v1308 = vld [vmem:[#allocation3 + $0x1c] sm:$0xf]
      %v1309 = vld [vmem:[#allocation3 + $0x20] sm:$0xf]
      %v1310 = vld [vmem:[#allocation3 + $0x24] sm:$0xf]
      %v1311 = vld [vmem:[#allocation3 + $0x28] sm:$0xf]
      %v1312 = vld [vmem:[#allocation3 + $0x2c] sm:$0xf]
      %v1313 = vld [vmem:[#allocation3 + $0x30] sm:$0xf]
      %v1314 = vld [vmem:[#allocation3 + $0x34] sm:$0xf]
      %v1315 = vld [vmem:[#allocation3 + $0x38] sm:$0xf]
      %v1316 = vld [vmem:[#allocation3 + $0x3c] sm:$0xf]
      %v1317 = vld [vmem:[#allocation3 + $0x40] sm:$0xf]
      %v1318 = vld [vmem:[#allocation3 + $0x44] sm:$0xf]
      %v1319 = vld [vmem:[%s9] sm:$0xf]
      %1321 = vset.pattern.permute.xlu0 0
      %1322 = vperm.xlu0 %1321, %v1319
      %v1323 = vpop.permute.xlu0 %1322
      %1326 = vst [vmem:[#allocation1] ss:$4 sm:$0xff] %v1300
      %v1327 = vld.sshfl [vmem:[#allocation1] sm:$0xff pattern:$0x73625140]
      %v1328 = vld.sshfl [vmem:[#allocation1 + $0x8] sm:$0xff pattern:$0x73625140]
      %v1348 = vunpack.c.l.b16 %v1301
      %v1349 = vunpack.c.l.b16 %v1302
      %v1350 = vunpack.c.l.b16 %v1303
      %v1351 = vunpack.c.l.b16 %v1304
      %v1352 = vunpack.c.l.b16 %v1305
      %v1353 = vunpack.c.l.b16 %v1306
      %v1354 = vunpack.c.l.b16 %v1307
      %v1355 = vunpack.c.l.b16 %v1308
      %v1356 = vunpack.c.l.b16 %v1309
      %v1357 = vunpack.c.l.b16 %v1310
      %v1358 = vunpack.c.l.b16 %v1311
      %v1359 = vunpack.c.l.b16 %v1312
      %v1360 = vunpack.c.l.b16 %v1313
      %v1361 = vunpack.c.l.b16 %v1314
      %v1362 = vunpack.c.l.b16 %v1315
      %v1363 = vunpack.c.l.b16 %v1316
      %v1364 = vunpack.c.l.b16 %v1317
      %v1365 = vunpack.c.l.b16 %v1318
      %v1366 = vpack.c.b16 %v1349, %v1348
      %v1367 = vpack.c.b16 %v1351, %v1350
      %v1368 = vpack.c.b16 %v1353, %v1352
      %v1369 = vpack.c.b16 %v1355, %v1354
      %v1370 = vpack.c.b16 %v1357, %v1356
      %v1371 = vpack.c.b16 %v1359, %v1358
      %v1372 = vpack.c.b16 %v1361, %v1360
      %v1373 = vpack.c.b16 %v1363, %v1362
      %v1374 = vpack.c.b16 %v1365, %v1364
      %v1384 = vsel %vm710, %v1328, 0
      %1386 = vmatpush.bf16.msra.mxu0 %v1373
      %1387 = vmatpush.bf16.msra.mxu0 %v1372
      %1388 = vmatpush.bf16.msra.mxu0 %v1371
      %1389 = vmatpush.bf16.msra.mxu0 %v1370
      %1390 = vmatpush.bf16.msra.mxu0 %v1369
      %1391 = vmatpush.bf16.msra.mxu0 %v1368
      %1392 = vmatpush.bf16.msra.mxu0 %v1367
      %1393 = vmatpush.bf16.msra.mxu0 %v1366
      %1394 = vmatmul.bf16.gmra.mxu0 %v1327
      %v1395 = vpop.f32.mrf.mxu0
      %v1396 = vadd.f32 %v1323, %v1395
      %v1397 = vpop.f32.mrf.mxu0
      %1398 = vdwg.mxu0
      %1399 = vmatpush.bf16.msra.mxu0 0
      %1400 = vmatpush.bf16.msra.mxu0 0
      %1401 = vmatpush.bf16.msra.mxu0 0
      %1402 = vmatpush.bf16.msra.mxu0 0
      %1403 = vmatpush.bf16.msra.mxu0 0
      %1404 = vmatpush.bf16.msra.mxu0 0
      %1405 = vmatpush.bf16.msra.mxu0 0
      %1406 = vmatpush.bf16.msra.mxu0 %v1374
      %1407 = vmatmul.bf16.gmra.mxu0 %v1384
      %v1408 = vpop.f32.mrf.mxu0
      %v1409 = vadd.f32 %v1396, %v1408
      %v1410 = vpop.f32.mrf.mxu0
      %1411 = vdwg.mxu0
      %v1412 = vmax.f32 %v1409, 0.0
      %v1413 = vld [vmem:[%s10] sm:$0x3]
      %v1414 = vpack.c.bf16 %v1412, %v1412
      %v1415 = vld [vmem:[%s11] sm:$0xf]
      %1417 = vset.pattern.permute.xlu0 0
      %1418 = vperm.xlu0 %1417, %v1415
      %v1419 = vpop.permute.xlu0 %1418
      %v1422 = vsel %vm748, %v1413, 0
      %v1425 = vsel %vm752, %v1414, 0
      %1427 = vmatpush.bf16.msra.mxu0 0
      %1428 = vmatpush.bf16.msra.mxu0 0
      %1429 = vmatpush.bf16.msra.mxu0 0
      %1430 = vmatpush.bf16.msra.mxu0 0
      %1431 = vmatpush.bf16.msra.mxu0 0
      %1432 = vmatpush.bf16.msra.mxu0 0
      %1433 = vmatpush.bf16.msra.mxu0 0
      %1434 = vmatpush.bf16.msra.mxu0 %v1425
      %1435 = vmatmul.bf16.gmra.mxu0 %v1422
      %v1436 = vpop.f32.mrf.mxu0
      %v1437 = vadd.f32 %v1419, %v1436
      %v1438 = vpop.f32.mrf.mxu0
      %1439 = vdwg.mxu0
      %v1440 = vtanh.pop %v1437
      %1442 = vrot.lane.b32.xlu0 %v1440, 11
      %v1443 = vpop.permute.xlu0 %1442
      %v1445 = vadd.f32 %v546, %v1443
      %v1446 = vadd.f32 %v1222, %v1445
      %1448 = vrot.lane.b32.xlu0 %v1446, 117
      %v1449 = vpop.permute.xlu0 %1448
      %1451 = vst.msk [vmem:[%s523] sm:$0xf] %vm525, %v1449
      %p1452 = scmp.lt.s32.totalorder %s27, 1
      %s1453 = scalar_select %p1452, %s27, 1
      %p1454 = scmp.lt.s32.totalorder %s28, 0
      %s1455 = scalar_select %p1454, %s28, 0
      %s1456 = sadd.s32 %s1455, %s1453
      %s1457 = smul.addr %s1456, 4
      %s1458 = scalar_lea.vmem %s12, %s1457
      // Predicated region
      $region69: #{lift_down_pool.3} parent=67 // pred_check
        %p1459 = pneg %p335
      $region70: #{lift_down_pool.3} parent=67 // pred_check_branch
        %1461 = sbr.rel (%p1459) target = $region72
      $region71: #{lift_down_pool.3} parent=67 // pred_region
        _
      $region72: #{lift_down_pool.3} parent=67 // pred_fallthru
        _
    $region68: #{lift_down_pool.3} parent=5 // pred_fallthru
      _
    %p1462 = scmp.le.s32.totalorder 2, %s18
    // Predicated region
    $region73: #{lift_down_pool.3} parent=5 // pred_check
      %p1463 = pneg %p1462
    $region74: #{lift_down_pool.3} parent=5 // pred_check_branch
      %1465 = sbr.rel (%p1463) target = $region76
    $region75: #{lift_down_pool.3} parent=5 // pred_region
      %s1466 = ssub.s32 %s18, 2
      // Predicated region
      $region77: #{lift_down_pool.3} parent=75 // pred_check
        %p1467 = pneg %p341
      $region78: #{lift_down_pool.3} parent=75 // pred_check_branch
        %1469 = sbr.rel (%p1467) target = $region80
      $region79: #{lift_down_pool.3} parent=75 // pred_region
        %p1470 = scmp.lt.s32.totalorder %s29, 1
        %s1471 = scalar_select %p1470, %s29, 1
        %p1472 = scmp.lt.s32.totalorder %s30, 0
        %s1473 = scalar_select %p1472, %s30, 0
        %s1474 = sadd.s32 %s1473, %s1471
        %s1475 = smul.addr %s1474, 4
        %s1476 = scalar_lea.vmem %s12, %s1475
      $region80: #{lift_down_pool.3} parent=75 // pred_fallthru
        _
    $region76: #{lift_down_pool.3} parent=5 // pred_fallthru
      _
  $region6: #{lift_down_pool.3} parent=0 // loop_footer
    %s22 = sadd.s32 1, %s18
  $region7: #{lift_down_pool.3} parent=0 // loop_footer_branch
    %17 = sbr.rel target = $region3
  $region8: #{lift_down_pool.3} parent=0 // loop_exit
    _

</llo_original>
